<compile_context>
chip_gen: v5e
topology: v5e:2x2
jax: 0.10.0
libtpu: 0.0.40
codegen_flags: <defaults>
</compile_context>

<pallas_src>
import math
import functools

import jax
import jax.numpy as jnp
from jax.experimental import pallas as pl
from jax.experimental.pallas import tpu as pltpu


def mha_kernel(q_ref, k_ref, v_ref, wqkv_ref, bqkv_ref, wo_ref, bo_ref,
               o_ref, ctx_ref, *, num_heads, d_k, lq, lk,
               compute_dtype, approx_softmax):
    f32 = jnp.float32
    rows_q = q_ref.shape[0]
    tb = rows_q // lq
    d_model = wo_ref.shape[1]
    inv_sqrt_dk = 1.0 / math.sqrt(d_k)

    xq = q_ref[...].astype(compute_dtype)          # (tb*lq, Dq)
    xk = k_ref[...].astype(compute_dtype)          # (tb*lk, Dq)
    xv = v_ref[...].astype(compute_dtype)          # (tb*lk, Dq)

    # Head-fused projections: one lane-dense (rows, Dq) @ (Dq, h*d_k) MXU matmul
    # per operand, f32 accumulate, single fused bias add per operand.
    q_all = jnp.dot(xq, wqkv_ref[0], preferred_element_type=f32) + bqkv_ref[0]
    k_all = jnp.dot(xk, wqkv_ref[1], preferred_element_type=f32) + bqkv_ref[1]
    v_all = jnp.dot(xv, wqkv_ref[2], preferred_element_type=f32) + bqkv_ref[2]

    # Per-head scaled-dot attention (d_k is tiny so this stays per-head); head
    # selection is a static lane slice, attention is batched over the tb tile.
    for hh in range(num_heads):
        lo, hi = hh * d_k, (hh + 1) * d_k
        qh = q_all[:, lo:hi].reshape(tb, lq, d_k).astype(compute_dtype)
        kh = k_all[:, lo:hi].reshape(tb, lk, d_k).astype(compute_dtype)
        vh = v_all[:, lo:hi].reshape(tb, lk, d_k).astype(compute_dtype)

        # K^T folded into the contraction (no explicit transpose).
        s = jnp.einsum("bqd,bkd->bqk", qh, kh,
                       preferred_element_type=f32) * inv_sqrt_dk   # (tb, lq, lk)
        # TODO(synk): attention mask (masked_fill -inf) not implemented here.
        s = s - jnp.max(s, axis=-1, keepdims=True)
        e = jnp.exp(s)
        denom = jnp.sum(e, axis=-1, keepdims=True)
        if approx_softmax:
            p = e * pl.reciprocal(denom, approx=True)   # EUP slot, ~1e-3 rel err
        else:
            p = e / denom                               # exact (validation path)
        # TODO(synk): training-mode dropout on p not implemented (eval semantics).
        ctx = jnp.einsum("bqk,bkd->bqd", p.astype(compute_dtype), vh,
                         preferred_element_type=f32)               # (tb, lq, d_k)
        # Lane-offset store into the (rows, h*d_k) context scratch — replaces the
        # per-head accumulating K=8 output matmuls (and avoids a concat).
        ctx_ref[:, lo:hi] = ctx.reshape(tb * lq, d_k)

    # Single re-fused output projection: (rows, h*d_k) @ (h*d_k, d_model) + bias.
    out = jnp.dot(ctx_ref[...].astype(compute_dtype), wo_ref[...],
                  preferred_element_type=f32) + bo_ref[...]
    o_ref[...] = out.reshape(tb, lq, d_model).astype(o_ref.dtype)


def _pick_block_batch(B, Lq, *, target_rows=1024, min_grid=1):
    """Batch-tile size: ~target_rows rows per grid step (amortizes the ~0.35us
    per-step overhead).  min_grid=1 for single-TC parts (v5e/v6e); use
    min_grid=2 on v7x so both TensorCores get work on the parallel batch axis
    (and re-check VMEM against v7x's 64 MiB if tiles are scaled up further)."""
    tb = max(1, min(B, target_rows // max(Lq, 1)))
    tb = min(tb, max(1, -(-B // min_grid)))
    if tb >= B:
        return B                       # single step; block spans the full batch
    # Multi-step grid: keep row-block sublane dims multiples of 8.
    tb = (tb // 8) * 8
    if tb < 8:
        return B
    return tb


def multi_headed_dot_attention(query, key, value, params, *, num_heads,
                               block_batch=None, min_grid=1,
                               compute_dtype=jnp.bfloat16, approx_softmax=None):
    """query: (B, Lq, Dq); key/value: (B, Lk, Dq). Returns (B, Lq, d_model)."""
    B, Lq, Dq = query.shape
    _, Lk, _ = key.shape
    dms = params["wq_t"].shape[1]              # d_model * scale
    d_model = params["wo_t"].shape[1]
    d_k = dms // num_heads
    if approx_softmax is None:
        approx_softmax = compute_dtype != jnp.float32

    # Fused weights (wrapper-side layout plumbing only); weights pre-cast to the
    # MXU input dtype, biases stay f32 (added to the f32 accumulators).
    w_qkv = jnp.stack([params["wq_t"], params["wk_t"], params["wv_t"]],
                      axis=0).astype(compute_dtype)                  # (3, Dq, dms)
    b_qkv = jnp.stack([params["bq"], params["bk"], params["bv"]],
                      axis=0).astype(jnp.float32)                    # (3, 1, dms)
    w_o = params["wo_t"].astype(compute_dtype)                       # (dms, d_model)
    b_o = params["bo"].astype(jnp.float32)                           # (1, d_model)

    # --- batch tiling ---
    tb = block_batch if block_batch is not None else _pick_block_batch(
        B, Lq, min_grid=min_grid)
    nb = -(-B // tb)
    B_pad = nb * tb
    if B_pad != B:
        pad = ((0, B_pad - B), (0, 0), (0, 0))
        query = jnp.pad(query, pad)
        key = jnp.pad(key, pad)
        value = jnp.pad(value, pad)

    # Flatten activations to row-tiled 2D (free in XLA; removes in-kernel reshapes).
    q2 = query.reshape(B_pad * Lq, Dq)
    k2 = key.reshape(B_pad * Lk, Dq)
    v2 = value.reshape(B_pad * Lk, Dq)

    kernel = functools.partial(mha_kernel, num_heads=num_heads, d_k=d_k,
                               lq=Lq, lk=Lk, compute_dtype=compute_dtype,
                               approx_softmax=approx_softmax)

    grid_spec = pltpu.PrefetchScalarGridSpec(
        num_scalar_prefetch=0,
        grid=(nb,),
        in_specs=[
            pl.BlockSpec((tb * Lq, Dq), lambda b: (b, 0)),     # query rows
            pl.BlockSpec((tb * Lk, Dq), lambda b: (b, 0)),     # key rows
            pl.BlockSpec((tb * Lk, Dq), lambda b: (b, 0)),     # value rows
            pl.BlockSpec(w_qkv.shape, lambda b: (0, 0, 0)),    # fused qkv weights
            pl.BlockSpec(b_qkv.shape, lambda b: (0, 0, 0)),    # fused qkv biases
            pl.BlockSpec(w_o.shape, lambda b: (0, 0)),         # output weights
            pl.BlockSpec(b_o.shape, lambda b: (0, 0)),         # output bias
        ],
        out_specs=pl.BlockSpec((tb, Lq, d_model), lambda b: (b, 0, 0)),
        scratch_shapes=[pltpu.VMEM((tb * Lq, dms), jnp.float32)],  # per-head ctx
    )

    out = pl.pallas_call(
        kernel,
        out_shape=jax.ShapeDtypeStruct((B_pad, Lq, d_model), query.dtype),
        grid_spec=grid_spec,
        compiler_params=pltpu.CompilerParams(dimension_semantics=("parallel",)),
    )(q2, k2, v2, w_qkv, b_qkv, w_o, b_o)

    return out[:B]


def reference(query, key, value, params, *, num_heads):
    """Pure-JAX reference mirroring the PyTorch forward (eval mode, no mask)."""
    B, Lq, _ = query.shape
    dms = params["wq_t"].shape[1]
    d_k = dms // num_heads

    def lin(x, w_t, b):
        return x @ w_t + b[0]

    q = lin(query, params["wq_t"], params["bq"])
    k = lin(key, params["wk_t"], params["bk"])
    v = lin(value, params["wv_t"], params["bv"])

    def split(x):
        return x.reshape(B, -1, num_heads, d_k).transpose(0, 2, 1, 3)

    q_, k_, v_ = split(q), split(k), split(v)
    scores = jnp.einsum("bhqd,bhkd->bhqk", q_, k_) / math.sqrt(d_k)
    p = jax.nn.softmax(scores, axis=-1)
    x = jnp.einsum("bhqk,bhkd->bhqd", p, v_)
    x = x.transpose(0, 2, 1, 3).reshape(B, Lq, num_heads * d_k)
    return lin(x, params["wo_t"], params["bo"])


def init_params(key, d_query, d_model, scale=1):
    """Deterministic PyTorch-Linear-style init (uniform +/- 1/sqrt(fan_in))."""
    ks = jax.random.split(key, 8)
    dms = d_model * scale

    def u(k, shape, fan_in):
        bound = 1.0 / math.sqrt(fan_in)
        return jax.random.uniform(k, shape, jnp.float32, -bound, bound)

    return {
        # stored transposed: (in_features, out_features)
        "wq_t": u(ks[0], (d_query, dms), d_query),
        "bq":   u(ks[1], (1, dms), d_query),
        "wk_t": u(ks[2], (d_query, dms), d_query),
        "bk":   u(ks[3], (1, dms), d_query),
        "wv_t": u(ks[4], (d_query, dms), d_query),
        "bv":   u(ks[5], (1, dms), d_query),
        "wo_t": u(ks[6], (dms, d_model), dms),
        "bo":   u(ks[7], (1, d_model), dms),
    }


if __name__ == "__main__":
    # Small shapes consistent with the module: d_query=d_model=32, h=4 (d_k=8).
    B, Lq, Lk = 16, 8, 8
    d_query, d_model, h = 32, 32, 4

    root = jax.random.PRNGKey(0)
    kq, kk, kv, kp = jax.random.split(root, 4)
    query = jax.random.normal(kq, (B, Lq, d_query), jnp.float32)
    key = jax.random.normal(kk, (B, Lk, d_query), jnp.float32)
    value = jax.random.normal(kv, (B, Lk, d_query), jnp.float32)
    params = init_params(kp, d_query, d_model)

    ref = reference(query, key, value, params, num_heads=h)

    # 1) f32 MXU-input path with exact softmax division (single grid step).
    out = multi_headed_dot_attention(query, key, value, params, num_heads=h,
                                     compute_dtype=jnp.float32)
    out = jax.block_until_ready(out)
    assert out.shape == (B, Lq, d_model)
    # Tolerance covers TPU default matmul-precision differences (XLA reference
    # einsums vs in-kernel MXU dots); softmax itself is exact on this path.
    assert jnp.allclose(out, ref, atol=2e-2, rtol=2e-2), "f32 mismatch vs reference"

    # 2) bf16 MXU-input default path (f32 accumulate + f32 softmax, approx recip).
    out_bf16 = multi_headed_dot_attention(query, key, value, params, num_heads=h)
    out_bf16 = jax.block_until_ready(out_bf16)
    assert out_bf16.shape == (B, Lq, d_model)
    assert jnp.allclose(out_bf16, ref, atol=1e-1, rtol=1e-1), "bf16 variant mismatch"

    # 3) Multi-step grid with batch padding (B=13 -> B_pad=16, tb=8, grid=(2,)):
    #    exercises the batch-tiled pipeline (v7x-style min_grid=2 sizing).
    out_pad = multi_headed_dot_attention(query[:13], key[:13], value[:13], params,
                                         num_heads=h, block_batch=8,
                                         compute_dtype=jnp.float32)
    out_pad = jax.block_until_ready(out_pad)
    assert out_pad.shape == (13, Lq, d_model)
    assert jnp.allclose(out_pad, ref[:13], atol=2e-2, rtol=2e-2), "padded-grid mismatch"

    print("KERNEL_OK")
</pallas_src>

<mosaic_0001>
module attributes {stable_mosaic.version = 11 : i64} {
  func.func @mha_kernel(%arg0: i32, %arg1: memref<128x32xf32, #tpu.memory_space<vmem>>, %arg2: memref<128x32xf32, #tpu.memory_space<vmem>>, %arg3: memref<128x32xf32, #tpu.memory_space<vmem>>, %arg4: memref<3x32x32xf32, #tpu.memory_space<vmem>>, %arg5: memref<3x1x32xf32, #tpu.memory_space<vmem>>, %arg6: memref<32x32xf32, #tpu.memory_space<vmem>>, %arg7: memref<1x32xf32, #tpu.memory_space<vmem>>, %arg8: memref<16x8x32xf32, #tpu.memory_space<vmem>>, %arg9: memref<128x32xf32, #tpu.memory_space<vmem>>) attributes {dimension_semantics = [#tpu.dimension_semantics<parallel>], iteration_bounds = array<i64: 1>, scalar_prefetch = 0 : i64, scratch_operands = 1 : i64, tpu.core_type = #tpu.core_type<tc>, window_params = [{transform_indices = @transform_0, window_bounds = array<i64: 128, 32>}, {transform_indices = @transform_1, window_bounds = array<i64: 128, 32>}, {transform_indices = @transform_2, window_bounds = array<i64: 128, 32>}, {pipeline_mode = #tpu.pipeline_mode<synchronous>, transform_indices = @transform_3, window_bounds = array<i64: 3, 32, 32>}, {pipeline_mode = #tpu.pipeline_mode<synchronous>, transform_indices = @transform_4, window_bounds = array<i64: 3, 1, 32>}, {pipeline_mode = #tpu.pipeline_mode<synchronous>, transform_indices = @transform_5, window_bounds = array<i64: 32, 32>}, {pipeline_mode = #tpu.pipeline_mode<synchronous>, transform_indices = @transform_6, window_bounds = array<i64: 1, 32>}, {transform_indices = @transform_7, window_bounds = array<i64: 16, 8, 32>}]} {
    %c0 = arith.constant 0 : index
    %c0_0 = arith.constant 0 : index
    %0 = vector.load %arg1[%c0, %c0_0] : memref<128x32xf32, #tpu.memory_space<vmem>>, vector<128x32xf32>
    %c0_1 = arith.constant 0 : index
    %c0_2 = arith.constant 0 : index
    %1 = vector.load %arg2[%c0_1, %c0_2] : memref<128x32xf32, #tpu.memory_space<vmem>>, vector<128x32xf32>
    %c0_3 = arith.constant 0 : index
    %c0_4 = arith.constant 0 : index
    %2 = vector.load %arg3[%c0_3, %c0_4] : memref<128x32xf32, #tpu.memory_space<vmem>>, vector<128x32xf32>
    %c0_5 = arith.constant 0 : index
    %c0_6 = arith.constant 0 : index
    %c0_7 = arith.constant 0 : index
    %3 = vector.load %arg4[%c0_5, %c0_6, %c0_7] : memref<3x32x32xf32, #tpu.memory_space<vmem>>, vector<1x32x32xf32>
    %4 = vector.shape_cast %3 : vector<1x32x32xf32> to vector<32x32xf32>
    %cst = arith.constant dense<0.000000e+00> : vector<128x32xf32>
    %5 = tpu.matmul %0, %4, %cst {dimension_numbers = #tpu.dot_dimension_numbers<[1], [0], [0], [1], [0, 0, 1, 1], [], []>} : vector<128x32xf32>, vector<32x32xf32>, vector<128x32xf32> -> vector<128x32xf32>
    %c0_8 = arith.constant 0 : index
    %c0_9 = arith.constant 0 : index
    %c0_10 = arith.constant 0 : index
    %6 = vector.load %arg5[%c0_8, %c0_9, %c0_10] : memref<3x1x32xf32, #tpu.memory_space<vmem>>, vector<1x1x32xf32>
    %7 = vector.shape_cast %6 : vector<1x1x32xf32> to vector<1x32xf32>
    %8 = vector.broadcast %7 : vector<1x32xf32> to vector<128x32xf32>
    %9 = arith.addf %5, %8 : vector<128x32xf32>
    %c1 = arith.constant 1 : index
    %c0_11 = arith.constant 0 : index
    %c0_12 = arith.constant 0 : index
    %10 = vector.load %arg4[%c1, %c0_11, %c0_12] : memref<3x32x32xf32, #tpu.memory_space<vmem>>, vector<1x32x32xf32>
    %11 = vector.shape_cast %10 : vector<1x32x32xf32> to vector<32x32xf32>
    %cst_13 = arith.constant dense<0.000000e+00> : vector<128x32xf32>
    %12 = tpu.matmul %1, %11, %cst_13 {dimension_numbers = #tpu.dot_dimension_numbers<[1], [0], [0], [1], [0, 0, 1, 1], [], []>} : vector<128x32xf32>, vector<32x32xf32>, vector<128x32xf32> -> vector<128x32xf32>
    %c1_14 = arith.constant 1 : index
    %c0_15 = arith.constant 0 : index
    %c0_16 = arith.constant 0 : index
    %13 = vector.load %arg5[%c1_14, %c0_15, %c0_16] : memref<3x1x32xf32, #tpu.memory_space<vmem>>, vector<1x1x32xf32>
    %14 = vector.shape_cast %13 : vector<1x1x32xf32> to vector<1x32xf32>
    %15 = vector.broadcast %14 : vector<1x32xf32> to vector<128x32xf32>
    %16 = arith.addf %12, %15 : vector<128x32xf32>
    %c2 = arith.constant 2 : index
    %c0_17 = arith.constant 0 : index
    %c0_18 = arith.constant 0 : index
    %17 = vector.load %arg4[%c2, %c0_17, %c0_18] : memref<3x32x32xf32, #tpu.memory_space<vmem>>, vector<1x32x32xf32>
    %18 = vector.shape_cast %17 : vector<1x32x32xf32> to vector<32x32xf32>
    %cst_19 = arith.constant dense<0.000000e+00> : vector<128x32xf32>
    %19 = tpu.matmul %2, %18, %cst_19 {dimension_numbers = #tpu.dot_dimension_numbers<[1], [0], [0], [1], [0, 0, 1, 1], [], []>} : vector<128x32xf32>, vector<32x32xf32>, vector<128x32xf32> -> vector<128x32xf32>
    %c2_20 = arith.constant 2 : index
    %c0_21 = arith.constant 0 : index
    %c0_22 = arith.constant 0 : index
    %20 = vector.load %arg5[%c2_20, %c0_21, %c0_22] : memref<3x1x32xf32, #tpu.memory_space<vmem>>, vector<1x1x32xf32>
    %21 = vector.shape_cast %20 : vector<1x1x32xf32> to vector<1x32xf32>
    %22 = vector.broadcast %21 : vector<1x32xf32> to vector<128x32xf32>
    %23 = arith.addf %19, %22 : vector<128x32xf32>
    %24 = vector.extract_strided_slice %9 {offsets = [0, 0], sizes = [128, 8], strides = [1, 1]} : vector<128x32xf32> to vector<128x8xf32>
    %25 = vector.shape_cast %24 : vector<128x8xf32> to vector<16x8x8xf32>
    %26 = vector.extract_strided_slice %16 {offsets = [0, 0], sizes = [128, 8], strides = [1, 1]} : vector<128x32xf32> to vector<128x8xf32>
    %27 = vector.shape_cast %26 : vector<128x8xf32> to vector<16x8x8xf32>
    %28 = vector.extract_strided_slice %23 {offsets = [0, 0], sizes = [128, 8], strides = [1, 1]} : vector<128x32xf32> to vector<128x8xf32>
    %29 = vector.shape_cast %28 : vector<128x8xf32> to vector<16x8x8xf32>
    "tpu.trace_start"() <{level = 10 : i32, message = "bqd,bkd->bqk"}> : () -> ()
    %cst_23 = arith.constant dense<0.000000e+00> : vector<16x8x8xf32>
    %30 = tpu.matmul %25, %27, %cst_23 {dimension_numbers = #tpu.dot_dimension_numbers<[2], [2], [1], [1], [0, 0, 0, 1, 1, 1], [0], [0]>} : vector<16x8x8xf32>, vector<16x8x8xf32>, vector<16x8x8xf32> -> vector<16x8x8xf32>
    "tpu.trace_stop"() : () -> ()
    %cst_24 = arith.constant 0.353553385 : f32
    %31 = vector.broadcast %cst_24 : f32 to vector<16x8x8xf32>
    %32 = arith.mulf %30, %31 : vector<16x8x8xf32>
    %cst_25 = arith.constant dense<0xFF800000> : vector<16x8xf32>
    %33 = vector.multi_reduction <maximumf>, %32, %cst_25 [2] : vector<16x8x8xf32> to vector<16x8xf32>
    %34 = vector.shape_cast %33 : vector<16x8xf32> to vector<16x8x1xf32>
    %35 = vector.broadcast %34 : vector<16x8x1xf32> to vector<16x8x8xf32>
    %36 = arith.subf %32, %35 : vector<16x8x8xf32>
    %37 = math.exp %36 : vector<16x8x8xf32>
    %cst_26 = arith.constant dense<0.000000e+00> : vector<16x8xf32>
    %38 = vector.multi_reduction <add>, %37, %cst_26 [2] : vector<16x8x8xf32> to vector<16x8xf32>
    %39 = vector.shape_cast %38 : vector<16x8xf32> to vector<16x8x1xf32>
    %40 = vector.broadcast %39 : vector<16x8x1xf32> to vector<16x8x8xf32>
    %41 = arith.divf %37, %40 : vector<16x8x8xf32>
    "tpu.trace_start"() <{level = 10 : i32, message = "bqk,bkd->bqd"}> : () -> ()
    %cst_27 = arith.constant dense<0.000000e+00> : vector<16x8x8xf32>
    %42 = tpu.matmul %41, %29, %cst_27 {dimension_numbers = #tpu.dot_dimension_numbers<[2], [1], [1], [2], [0, 0, 0, 1, 1, 2], [0], [0]>} : vector<16x8x8xf32>, vector<16x8x8xf32>, vector<16x8x8xf32> -> vector<16x8x8xf32>
    "tpu.trace_stop"() : () -> ()
    %43 = vector.shape_cast %42 : vector<16x8x8xf32> to vector<128x8xf32>
    %c0_28 = arith.constant 0 : index
    %c0_29 = arith.constant 0 : index
    %44 = vector.load %arg9[%c0_28, %c0_29] : memref<128x32xf32, #tpu.memory_space<vmem>>, vector<128x8xf32>
    tpu.vector_store %arg9[%c0_28, %c0_29], %43 {strides = array<i32>} : memref<128x32xf32, #tpu.memory_space<vmem>>, vector<128x8xf32>,
    %45 = vector.extract_strided_slice %9 {offsets = [0, 8], sizes = [128, 8], strides = [1, 1]} : vector<128x32xf32> to vector<128x8xf32>
    %46 = vector.shape_cast %45 : vector<128x8xf32> to vector<16x8x8xf32>
    %47 = vector.extract_strided_slice %16 {offsets = [0, 8], sizes = [128, 8], strides = [1, 1]} : vector<128x32xf32> to vector<128x8xf32>
    %48 = vector.shape_cast %47 : vector<128x8xf32> to vector<16x8x8xf32>
    %49 = vector.extract_strided_slice %23 {offsets = [0, 8], sizes = [128, 8], strides = [1, 1]} : vector<128x32xf32> to vector<128x8xf32>
    %50 = vector.shape_cast %49 : vector<128x8xf32> to vector<16x8x8xf32>
    "tpu.trace_start"() <{level = 10 : i32, message = "bqd,bkd->bqk"}> : () -> ()
    %cst_30 = arith.constant dense<0.000000e+00> : vector<16x8x8xf32>
    %51 = tpu.matmul %46, %48, %cst_30 {dimension_numbers = #tpu.dot_dimension_numbers<[2], [2], [1], [1], [0, 0, 0, 1, 1, 1], [0], [0]>} : vector<16x8x8xf32>, vector<16x8x8xf32>, vector<16x8x8xf32> -> vector<16x8x8xf32>
    "tpu.trace_stop"() : () -> ()
    %cst_31 = arith.constant 0.353553385 : f32
    %52 = vector.broadcast %cst_31 : f32 to vector<16x8x8xf32>
    %53 = arith.mulf %51, %52 : vector<16x8x8xf32>
    %cst_32 = arith.constant dense<0xFF800000> : vector<16x8xf32>
    %54 = vector.multi_reduction <maximumf>, %53, %cst_32 [2] : vector<16x8x8xf32> to vector<16x8xf32>
    %55 = vector.shape_cast %54 : vector<16x8xf32> to vector<16x8x1xf32>
    %56 = vector.broadcast %55 : vector<16x8x1xf32> to vector<16x8x8xf32>
    %57 = arith.subf %53, %56 : vector<16x8x8xf32>
    %58 = math.exp %57 : vector<16x8x8xf32>
    %cst_33 = arith.constant dense<0.000000e+00> : vector<16x8xf32>
    %59 = vector.multi_reduction <add>, %58, %cst_33 [2] : vector<16x8x8xf32> to vector<16x8xf32>
    %60 = vector.shape_cast %59 : vector<16x8xf32> to vector<16x8x1xf32>
    %61 = vector.broadcast %60 : vector<16x8x1xf32> to vector<16x8x8xf32>
    %62 = arith.divf %58, %61 : vector<16x8x8xf32>
    "tpu.trace_start"() <{level = 10 : i32, message = "bqk,bkd->bqd"}> : () -> ()
    %cst_34 = arith.constant dense<0.000000e+00> : vector<16x8x8xf32>
    %63 = tpu.matmul %62, %50, %cst_34 {dimension_numbers = #tpu.dot_dimension_numbers<[2], [1], [1], [2], [0, 0, 0, 1, 1, 2], [0], [0]>} : vector<16x8x8xf32>, vector<16x8x8xf32>, vector<16x8x8xf32> -> vector<16x8x8xf32>
    "tpu.trace_stop"() : () -> ()
    %64 = vector.shape_cast %63 : vector<16x8x8xf32> to vector<128x8xf32>
    %c0_35 = arith.constant 0 : index
    %c8 = arith.constant 8 : index
    %65 = vector.load %arg9[%c0_35, %c8] : memref<128x32xf32, #tpu.memory_space<vmem>>, vector<128x8xf32>
    tpu.vector_store %arg9[%c0_35, %c8], %64 {strides = array<i32>} : memref<128x32xf32, #tpu.memory_space<vmem>>, vector<128x8xf32>,
    %66 = vector.extract_strided_slice %9 {offsets = [0, 16], sizes = [128, 8], strides = [1, 1]} : vector<128x32xf32> to vector<128x8xf32>
    %67 = vector.shape_cast %66 : vector<128x8xf32> to vector<16x8x8xf32>
    %68 = vector.extract_strided_slice %16 {offsets = [0, 16], sizes = [128, 8], strides = [1, 1]} : vector<128x32xf32> to vector<128x8xf32>
    %69 = vector.shape_cast %68 : vector<128x8xf32> to vector<16x8x8xf32>
    %70 = vector.extract_strided_slice %23 {offsets = [0, 16], sizes = [128, 8], strides = [1, 1]} : vector<128x32xf32> to vector<128x8xf32>
    %71 = vector.shape_cast %70 : vector<128x8xf32> to vector<16x8x8xf32>
    "tpu.trace_start"() <{level = 10 : i32, message = "bqd,bkd->bqk"}> : () -> ()
    %cst_36 = arith.constant dense<0.000000e+00> : vector<16x8x8xf32>
    %72 = tpu.matmul %67, %69, %cst_36 {dimension_numbers = #tpu.dot_dimension_numbers<[2], [2], [1], [1], [0, 0, 0, 1, 1, 1], [0], [0]>} : vector<16x8x8xf32>, vector<16x8x8xf32>, vector<16x8x8xf32> -> vector<16x8x8xf32>
    "tpu.trace_stop"() : () -> ()
    %cst_37 = arith.constant 0.353553385 : f32
    %73 = vector.broadcast %cst_37 : f32 to vector<16x8x8xf32>
    %74 = arith.mulf %72, %73 : vector<16x8x8xf32>
    %cst_38 = arith.constant dense<0xFF800000> : vector<16x8xf32>
    %75 = vector.multi_reduction <maximumf>, %74, %cst_38 [2] : vector<16x8x8xf32> to vector<16x8xf32>
    %76 = vector.shape_cast %75 : vector<16x8xf32> to vector<16x8x1xf32>
    %77 = vector.broadcast %76 : vector<16x8x1xf32> to vector<16x8x8xf32>
    %78 = arith.subf %74, %77 : vector<16x8x8xf32>
    %79 = math.exp %78 : vector<16x8x8xf32>
    %cst_39 = arith.constant dense<0.000000e+00> : vector<16x8xf32>
    %80 = vector.multi_reduction <add>, %79, %cst_39 [2] : vector<16x8x8xf32> to vector<16x8xf32>
    %81 = vector.shape_cast %80 : vector<16x8xf32> to vector<16x8x1xf32>
    %82 = vector.broadcast %81 : vector<16x8x1xf32> to vector<16x8x8xf32>
    %83 = arith.divf %79, %82 : vector<16x8x8xf32>
    "tpu.trace_start"() <{level = 10 : i32, message = "bqk,bkd->bqd"}> : () -> ()
    %cst_40 = arith.constant dense<0.000000e+00> : vector<16x8x8xf32>
    %84 = tpu.matmul %83, %71, %cst_40 {dimension_numbers = #tpu.dot_dimension_numbers<[2], [1], [1], [2], [0, 0, 0, 1, 1, 2], [0], [0]>} : vector<16x8x8xf32>, vector<16x8x8xf32>, vector<16x8x8xf32> -> vector<16x8x8xf32>
    "tpu.trace_stop"() : () -> ()
    %85 = vector.shape_cast %84 : vector<16x8x8xf32> to vector<128x8xf32>
    %c0_41 = arith.constant 0 : index
    %c16 = arith.constant 16 : index
    %86 = vector.load %arg9[%c0_41, %c16] : memref<128x32xf32, #tpu.memory_space<vmem>>, vector<128x8xf32>
    tpu.vector_store %arg9[%c0_41, %c16], %85 {strides = array<i32>} : memref<128x32xf32, #tpu.memory_space<vmem>>, vector<128x8xf32>,
    %87 = vector.extract_strided_slice %9 {offsets = [0, 24], sizes = [128, 8], strides = [1, 1]} : vector<128x32xf32> to vector<128x8xf32>
    %88 = vector.shape_cast %87 : vector<128x8xf32> to vector<16x8x8xf32>
    %89 = vector.extract_strided_slice %16 {offsets = [0, 24], sizes = [128, 8], strides = [1, 1]} : vector<128x32xf32> to vector<128x8xf32>
    %90 = vector.shape_cast %89 : vector<128x8xf32> to vector<16x8x8xf32>
    %91 = vector.extract_strided_slice %23 {offsets = [0, 24], sizes = [128, 8], strides = [1, 1]} : vector<128x32xf32> to vector<128x8xf32>
    %92 = vector.shape_cast %91 : vector<128x8xf32> to vector<16x8x8xf32>
    "tpu.trace_start"() <{level = 10 : i32, message = "bqd,bkd->bqk"}> : () -> ()
    %cst_42 = arith.constant dense<0.000000e+00> : vector<16x8x8xf32>
    %93 = tpu.matmul %88, %90, %cst_42 {dimension_numbers = #tpu.dot_dimension_numbers<[2], [2], [1], [1], [0, 0, 0, 1, 1, 1], [0], [0]>} : vector<16x8x8xf32>, vector<16x8x8xf32>, vector<16x8x8xf32> -> vector<16x8x8xf32>
    "tpu.trace_stop"() : () -> ()
    %cst_43 = arith.constant 0.353553385 : f32
    %94 = vector.broadcast %cst_43 : f32 to vector<16x8x8xf32>
    %95 = arith.mulf %93, %94 : vector<16x8x8xf32>
    %cst_44 = arith.constant dense<0xFF800000> : vector<16x8xf32>
    %96 = vector.multi_reduction <maximumf>, %95, %cst_44 [2] : vector<16x8x8xf32> to vector<16x8xf32>
    %97 = vector.shape_cast %96 : vector<16x8xf32> to vector<16x8x1xf32>
    %98 = vector.broadcast %97 : vector<16x8x1xf32> to vector<16x8x8xf32>
    %99 = arith.subf %95, %98 : vector<16x8x8xf32>
    %100 = math.exp %99 : vector<16x8x8xf32>
    %cst_45 = arith.constant dense<0.000000e+00> : vector<16x8xf32>
    %101 = vector.multi_reduction <add>, %100, %cst_45 [2] : vector<16x8x8xf32> to vector<16x8xf32>
    %102 = vector.shape_cast %101 : vector<16x8xf32> to vector<16x8x1xf32>
    %103 = vector.broadcast %102 : vector<16x8x1xf32> to vector<16x8x8xf32>
    %104 = arith.divf %100, %103 : vector<16x8x8xf32>
    "tpu.trace_start"() <{level = 10 : i32, message = "bqk,bkd->bqd"}> : () -> ()
    %cst_46 = arith.constant dense<0.000000e+00> : vector<16x8x8xf32>
    %105 = tpu.matmul %104, %92, %cst_46 {dimension_numbers = #tpu.dot_dimension_numbers<[2], [1], [1], [2], [0, 0, 0, 1, 1, 2], [0], [0]>} : vector<16x8x8xf32>, vector<16x8x8xf32>, vector<16x8x8xf32> -> vector<16x8x8xf32>
    "tpu.trace_stop"() : () -> ()
    %106 = vector.shape_cast %105 : vector<16x8x8xf32> to vector<128x8xf32>
    %c0_47 = arith.constant 0 : index
    %c24 = arith.constant 24 : index
    %107 = vector.load %arg9[%c0_47, %c24] : memref<128x32xf32, #tpu.memory_space<vmem>>, vector<128x8xf32>
    tpu.vector_store %arg9[%c0_47, %c24], %106 {strides = array<i32>} : memref<128x32xf32, #tpu.memory_space<vmem>>, vector<128x8xf32>,
    %c0_48 = arith.constant 0 : index
    %c0_49 = arith.constant 0 : index
    %108 = vector.load %arg9[%c0_48, %c0_49] : memref<128x32xf32, #tpu.memory_space<vmem>>, vector<128x32xf32>
    %c0_50 = arith.constant 0 : index
    %c0_51 = arith.constant 0 : index
    %109 = vector.load %arg6[%c0_50, %c0_51] : memref<32x32xf32, #tpu.memory_space<vmem>>, vector<32x32xf32>
    %cst_52 = arith.constant dense<0.000000e+00> : vector<128x32xf32>
    %110 = tpu.matmul %108, %109, %cst_52 {dimension_numbers = #tpu.dot_dimension_numbers<[1], [0], [0], [1], [0, 0, 1, 1], [], []>} : vector<128x32xf32>, vector<32x32xf32>, vector<128x32xf32> -> vector<128x32xf32>
    %c0_53 = arith.constant 0 : index
    %c0_54 = arith.constant 0 : index
    %111 = vector.load %arg7[%c0_53, %c0_54] : memref<1x32xf32, #tpu.memory_space<vmem>>, vector<1x32xf32>
    %112 = vector.broadcast %111 : vector<1x32xf32> to vector<128x32xf32>
    %113 = arith.addf %110, %112 : vector<128x32xf32>
    %114 = vector.shape_cast %113 : vector<128x32xf32> to vector<16x8x32xf32>
    %c0_55 = arith.constant 0 : index
    %c0_56 = arith.constant 0 : index
    %c0_57 = arith.constant 0 : index
    %115 = vector.load %arg8[%c0_55, %c0_56, %c0_57] : memref<16x8x32xf32, #tpu.memory_space<vmem>>, vector<16x8x32xf32>
    tpu.vector_store %arg8[%c0_55, %c0_56, %c0_57], %114 {strides = array<i32>} : memref<16x8x32xf32, #tpu.memory_space<vmem>>, vector<16x8x32xf32>,
    return
  }
  func.func @transform_0(%arg0: i32) -> (i32, i32) {
    %c0_i32 = arith.constant 0 : i32
    %c0_i32_0 = arith.constant 0 : i32
    return %arg0, %c0_i32 : i32, i32
  }
  func.func @transform_1(%arg0: i32) -> (i32, i32) {
    %c0_i32 = arith.constant 0 : i32
    %c0_i32_0 = arith.constant 0 : i32
    return %arg0, %c0_i32 : i32, i32
  }
  func.func @transform_2(%arg0: i32) -> (i32, i32) {
    %c0_i32 = arith.constant 0 : i32
    %c0_i32_0 = arith.constant 0 : i32
    return %arg0, %c0_i32 : i32, i32
  }
  func.func @transform_3(%arg0: i32) -> (i32, i32, i32) {
    %c0_i32 = arith.constant 0 : i32
    %c0_i32_0 = arith.constant 0 : i32
    %c0_i32_1 = arith.constant 0 : i32
    %c0_i32_2 = arith.constant 0 : i32
    return %c0_i32, %c0_i32_0, %c0_i32_1 : i32, i32, i32
  }
  func.func @transform_4(%arg0: i32) -> (i32, i32, i32) {
    %c0_i32 = arith.constant 0 : i32
    %c0_i32_0 = arith.constant 0 : i32
    %c0_i32_1 = arith.constant 0 : i32
    %c0_i32_2 = arith.constant 0 : i32
    return %c0_i32, %c0_i32_0, %c0_i32_1 : i32, i32, i32
  }
  func.func @transform_5(%arg0: i32) -> (i32, i32) {
    %c0_i32 = arith.constant 0 : i32
    %c0_i32_0 = arith.constant 0 : i32
    %c0_i32_1 = arith.constant 0 : i32
    return %c0_i32, %c0_i32_0 : i32, i32
  }
  func.func @transform_6(%arg0: i32) -> (i32, i32) {
    %c0_i32 = arith.constant 0 : i32
    %c0_i32_0 = arith.constant 0 : i32
    %c0_i32_1 = arith.constant 0 : i32
    return %c0_i32, %c0_i32_0 : i32, i32
  }
  func.func @transform_7(%arg0: i32) -> (i32, i32, i32) {
    %c0_i32 = arith.constant 0 : i32
    %c0_i32_0 = arith.constant 0 : i32
    %c0_i32_1 = arith.constant 0 : i32
    return %arg0, %c0_i32, %c0_i32_0 : i32, i32, i32
  }
}

</mosaic_0001>

<llo_original>
// kernel: tpu_custom_call.1
$region0: #{tpu_custom_call.1}
  #allocation0 [shape = 'u32[]', space=smem, size = 0x4, offset = 0x4, fixed_abs, tag = 'smem constant byte address 0x4 - core index']
  #allocation1 [shape = 'u32[72,128]{1,0:T(1,128)}', space=vmem, size = 0x9000, scoped, tag = 'internal scratch']
  #allocation2 [shape = 'f32[128,32]{1,0:T(8,128)}', space=vmem, size = 0x10000, scoped, tag = 'scratch operand']
  %s0 = inlined_call_operand.vmem [shape: f32[128,32], index: 0, kind: input, shape index: {}]
  %s1 = inlined_call_operand.vmem [shape: f32[128,32], index: 1, kind: input, shape index: {}]
  %s2 = inlined_call_operand.vmem [shape: f32[128,32], index: 2, kind: input, shape index: {}]
  %s3 = inlined_call_operand.vmem [shape: f32[3,32,32], index: 3, kind: input, shape index: {}]
  %s4 = inlined_call_operand.vmem [shape: f32[3,1,32], index: 4, kind: input, shape index: {}]
  %s5 = inlined_call_operand.vmem [shape: f32[32,32], index: 5, kind: input, shape index: {}]
  %s6 = inlined_call_operand.vmem [shape: f32[1,32], index: 6, kind: input, shape index: {}]
  %s7 = inlined_call_operand.hbm [shape: f32[16,8,32], index: 7, kind: output, shape index: {}]
  %s8 = sld [smem:[#allocation0]]
  $region38: #{tpu_custom_call.1} parent=0
    _
  %s10 = ssub.s32 1, %s8
  %s11 = scalar_select 0, %s10, %s8
  $region1: #{tpu_custom_call.1} parent=0
    #allocation3 [shape = 'u8[65536]{0}', space=vmem, size = 0x10000, scoped, tag = 'output window, operand 0, single buffered']
    #allocation4 [shape = 's32[1]{0}', space=sflag, size = 0x4, scoped, tag = 'scoped memory for tpu_custom_call.1']
    %12 = vsyncpa [#allocation4], 0
    // Predicated region
    $region2: #{tpu_custom_call.1} parent=1 // pred_check
      _
    $region3: #{tpu_custom_call.1} parent=1 // pred_check_branch
      %14 = sbr.rel (0) target = $region5
    $region4: #{tpu_custom_call.1} parent=1 // pred_region
      _
    $region5: #{tpu_custom_call.1} parent=1 // pred_fallthru
      _
    // Predicated region
    $region6: #{tpu_custom_call.1} parent=1 // pred_check
      _
    $region7: #{tpu_custom_call.1} parent=1 // pred_check_branch
      %16 = sbr.rel (0) target = $region9
    $region8: #{tpu_custom_call.1} parent=1 // pred_region
      _
    $region9: #{tpu_custom_call.1} parent=1 // pred_fallthru
      _
    // Predicated region
    $region10: #{tpu_custom_call.1} parent=1 // pred_check
      _
    $region11: #{tpu_custom_call.1} parent=1 // pred_check_branch
      %18 = sbr.rel (0) target = $region13
    $region12: #{tpu_custom_call.1} parent=1 // pred_region
      _
    $region13: #{tpu_custom_call.1} parent=1 // pred_fallthru
      _
    // Predicated region
    $region14: #{tpu_custom_call.1} parent=1 // pred_check
      _
    $region15: #{tpu_custom_call.1} parent=1 // pred_check_branch
      %20 = sbr.rel (0) target = $region17
    $region16: #{tpu_custom_call.1} parent=1 // pred_region
      _
    $region17: #{tpu_custom_call.1} parent=1 // pred_fallthru
      _
    // Predicated region
    $region18: #{tpu_custom_call.1} parent=1 // pred_check
      _
    $region19: #{tpu_custom_call.1} parent=1 // pred_check_branch
      %22 = sbr.rel (0) target = $region21
    $region20: #{tpu_custom_call.1} parent=1 // pred_region
      _
    $region21: #{tpu_custom_call.1} parent=1 // pred_fallthru
      _
    // Predicated region
    $region22: #{tpu_custom_call.1} parent=1 // pred_check
      _
    $region23: #{tpu_custom_call.1} parent=1 // pred_check_branch
      %24 = sbr.rel (0) target = $region25
    $region24: #{tpu_custom_call.1} parent=1 // pred_region
      _
    $region25: #{tpu_custom_call.1} parent=1 // pred_fallthru
      _
    // Predicated region
    $region26: #{tpu_custom_call.1} parent=1 // pred_check
      _
    $region27: #{tpu_custom_call.1} parent=1 // pred_check_branch
      %26 = sbr.rel (0) target = $region29
    $region28: #{tpu_custom_call.1} parent=1 // pred_region
      _
    $region29: #{tpu_custom_call.1} parent=1 // pred_fallthru
      _
    %v27 = vld [vmem:[%s0] sm:$0xff]
    %v28 = vld [vmem:[%s0 + $0x8] sm:$0xff]
    %v29 = vld [vmem:[%s0 + $0x10] sm:$0xff]
    %v30 = vld [vmem:[%s0 + $0x18] sm:$0xff]
    %v31 = vld [vmem:[%s0 + $0x20] sm:$0xff]
    %v32 = vld [vmem:[%s0 + $0x28] sm:$0xff]
    %v33 = vld [vmem:[%s0 + $0x30] sm:$0xff]
    %v34 = vld [vmem:[%s0 + $0x38] sm:$0xff]
    %v35 = vld [vmem:[%s0 + $0x40] sm:$0xff]
    %v36 = vld [vmem:[%s0 + $0x48] sm:$0xff]
    %v37 = vld [vmem:[%s0 + $0x50] sm:$0xff]
    %v38 = vld [vmem:[%s0 + $0x58] sm:$0xff]
    %v39 = vld [vmem:[%s0 + $0x60] sm:$0xff]
    %v40 = vld [vmem:[%s0 + $0x68] sm:$0xff]
    %v41 = vld [vmem:[%s0 + $0x70] sm:$0xff]
    %v42 = vld [vmem:[%s0 + $0x78] sm:$0xff]
    %v43 = vld [vmem:[%s1] sm:$0xff]
    %v44 = vld [vmem:[%s1 + $0x8] sm:$0xff]
    %v45 = vld [vmem:[%s1 + $0x10] sm:$0xff]
    %v46 = vld [vmem:[%s1 + $0x18] sm:$0xff]
    %v47 = vld [vmem:[%s1 + $0x20] sm:$0xff]
    %v48 = vld [vmem:[%s1 + $0x28] sm:$0xff]
    %v49 = vld [vmem:[%s1 + $0x30] sm:$0xff]
    %v50 = vld [vmem:[%s1 + $0x38] sm:$0xff]
    %v51 = vld [vmem:[%s1 + $0x40] sm:$0xff]
    %v52 = vld [vmem:[%s1 + $0x48] sm:$0xff]
    %v53 = vld [vmem:[%s1 + $0x50] sm:$0xff]
    %v54 = vld [vmem:[%s1 + $0x58] sm:$0xff]
    %v55 = vld [vmem:[%s1 + $0x60] sm:$0xff]
    %v56 = vld [vmem:[%s1 + $0x68] sm:$0xff]
    %v57 = vld [vmem:[%s1 + $0x70] sm:$0xff]
    %v58 = vld [vmem:[%s1 + $0x78] sm:$0xff]
    %v59 = vld [vmem:[%s2] sm:$0xff]
    %v60 = vld [vmem:[%s2 + $0x8] sm:$0xff]
    %v61 = vld [vmem:[%s2 + $0x10] sm:$0xff]
    %v62 = vld [vmem:[%s2 + $0x18] sm:$0xff]
    %v63 = vld [vmem:[%s2 + $0x20] sm:$0xff]
    %v64 = vld [vmem:[%s2 + $0x28] sm:$0xff]
    %v65 = vld [vmem:[%s2 + $0x30] sm:$0xff]
    %v66 = vld [vmem:[%s2 + $0x38] sm:$0xff]
    %v67 = vld [vmem:[%s2 + $0x40] sm:$0xff]
    %v68 = vld [vmem:[%s2 + $0x48] sm:$0xff]
    %v69 = vld [vmem:[%s2 + $0x50] sm:$0xff]
    %v70 = vld [vmem:[%s2 + $0x58] sm:$0xff]
    %v71 = vld [vmem:[%s2 + $0x60] sm:$0xff]
    %v72 = vld [vmem:[%s2 + $0x68] sm:$0xff]
    %v73 = vld [vmem:[%s2 + $0x70] sm:$0xff]
    %v74 = vld [vmem:[%s2 + $0x78] sm:$0xff]
    %v75 = vld [vmem:[%s3] sm:$0xff]
    %v76 = vld [vmem:[%s3 + $0x8] sm:$0xff]
    %v77 = vld [vmem:[%s3 + $0x10] sm:$0xff]
    %v78 = vld [vmem:[%s3 + $0x18] sm:$0xff]
    %v79 = vld [vmem:[%s4] sm:$0x1]
    %v81 = vperm.slane %v79, 0
    %vm83 = vcmask 261120
    %v85 = vsel %vm83, %v27, 0
    %v88 = vsel %vm83, %v28, 0
    %v91 = vsel %vm83, %v29, 0
    %v94 = vsel %vm83, %v30, 0
    %v97 = vsel %vm83, %v31, 0
    %v100 = vsel %vm83, %v32, 0
    %v103 = vsel %vm83, %v33, 0
    %v106 = vsel %vm83, %v34, 0
    %v109 = vsel %vm83, %v35, 0
    %v112 = vsel %vm83, %v36, 0
    %v115 = vsel %vm83, %v37, 0
    %v118 = vsel %vm83, %v38, 0
    %v121 = vsel %vm83, %v39, 0
    %v124 = vsel %vm83, %v40, 0
    %v127 = vsel %vm83, %v41, 0
    %v130 = vsel %vm83, %v42, 0
    %132 = vmatpush.msra.mxu0 0.0
    %133 = vmatpush.msra.mxu0 0.0
    %134 = vmatpush.msra.mxu0 0.0
    %135 = vmatpush.msra.mxu0 0.0
    %136 = vmatpush.msra.mxu0 0.0
    %137 = vmatpush.msra.mxu0 0.0
    %138 = vmatpush.msra.mxu0 0.0
    %139 = vmatpush.msra.mxu0 0.0
    %140 = vmatpush.msra.mxu0 0.0
    %141 = vmatpush.msra.mxu0 0.0
    %142 = vmatpush.msra.mxu0 0.0
    %143 = vmatpush.msra.mxu0 0.0
    %144 = vmatpush.msra.mxu0 %v78
    %145 = vmatpush.msra.mxu0 %v77
    %146 = vmatpush.msra.mxu0 %v76
    %147 = vmatpush.msra.mxu0 %v75
    %148 = vmatmul.f32.gmra.mxu0 %v85
    %v149 = vpop.f32.mrf.mxu0
    %v150 = vadd.f32 %v81, %v149
    %151 = vmatmul.f32.gmra.mxu0 %v88
    %v152 = vpop.f32.mrf.mxu0
    %v153 = vadd.f32 %v81, %v152
    %154 = vmatmul.f32.gmra.mxu0 %v91
    %v155 = vpop.f32.mrf.mxu0
    %v156 = vadd.f32 %v81, %v155
    %157 = vmatmul.f32.gmra.mxu0 %v94
    %v158 = vpop.f32.mrf.mxu0
    %v159 = vadd.f32 %v81, %v158
    %160 = vmatmul.f32.gmra.mxu0 %v97
    %v161 = vpop.f32.mrf.mxu0
    %v162 = vadd.f32 %v81, %v161
    %163 = vmatmul.f32.gmra.mxu0 %v100
    %v164 = vpop.f32.mrf.mxu0
    %v165 = vadd.f32 %v81, %v164
    %166 = vmatmul.f32.gmra.mxu0 %v103
    %v167 = vpop.f32.mrf.mxu0
    %v168 = vadd.f32 %v81, %v167
    %169 = vmatmul.f32.gmra.mxu0 %v106
    %v170 = vpop.f32.mrf.mxu0
    %v171 = vadd.f32 %v81, %v170
    %172 = vmatmul.f32.gmra.mxu0 %v109
    %v173 = vpop.f32.mrf.mxu0
    %v174 = vadd.f32 %v81, %v173
    %175 = vmatmul.f32.gmra.mxu0 %v112
    %v176 = vpop.f32.mrf.mxu0
    %v177 = vadd.f32 %v81, %v176
    %178 = vmatmul.f32.gmra.mxu0 %v115
    %v179 = vpop.f32.mrf.mxu0
    %v180 = vadd.f32 %v81, %v179
    %181 = vmatmul.f32.gmra.mxu0 %v118
    %v182 = vpop.f32.mrf.mxu0
    %v183 = vadd.f32 %v81, %v182
    %184 = vmatmul.f32.gmra.mxu0 %v121
    %v185 = vpop.f32.mrf.mxu0
    %v186 = vadd.f32 %v81, %v185
    %187 = vmatmul.f32.gmra.mxu0 %v124
    %v188 = vpop.f32.mrf.mxu0
    %v189 = vadd.f32 %v81, %v188
    %190 = vmatmul.f32.gmra.mxu0 %v127
    %v191 = vpop.f32.mrf.mxu0
    %v192 = vadd.f32 %v81, %v191
    %193 = vmatmul.f32.gmra.mxu0 %v130
    %v194 = vpop.f32.mrf.mxu0
    %v195 = vadd.f32 %v81, %v194
    %196 = vdwg.mxu0
    %s197 = scalar_lea.vmem %s3, 32
    %v198 = vld [vmem:[%s197] sm:$0xff]
    %v199 = vld [vmem:[%s197 + $0x8] sm:$0xff]
    %v200 = vld [vmem:[%s197 + $0x10] sm:$0xff]
    %v201 = vld [vmem:[%s197 + $0x18] sm:$0xff]
    %s202 = scalar_lea.vmem %s4, 1
    %v203 = vld [vmem:[%s202] sm:$0x1]
    %v205 = vperm.slane %v203, 0
    %v208 = vsel %vm83, %v43, 0
    %v211 = vsel %vm83, %v44, 0
    %v214 = vsel %vm83, %v45, 0
    %v217 = vsel %vm83, %v46, 0
    %v220 = vsel %vm83, %v47, 0
    %v223 = vsel %vm83, %v48, 0
    %v226 = vsel %vm83, %v49, 0
    %v229 = vsel %vm83, %v50, 0
    %v232 = vsel %vm83, %v51, 0
    %v235 = vsel %vm83, %v52, 0
    %v238 = vsel %vm83, %v53, 0
    %v241 = vsel %vm83, %v54, 0
    %v244 = vsel %vm83, %v55, 0
    %v247 = vsel %vm83, %v56, 0
    %v250 = vsel %vm83, %v57, 0
    %v253 = vsel %vm83, %v58, 0
    %255 = vmatpush.msra.mxu0 0.0
    %256 = vmatpush.msra.mxu0 0.0
    %257 = vmatpush.msra.mxu0 0.0
    %258 = vmatpush.msra.mxu0 0.0
    %259 = vmatpush.msra.mxu0 0.0
    %260 = vmatpush.msra.mxu0 0.0
    %261 = vmatpush.msra.mxu0 0.0
    %262 = vmatpush.msra.mxu0 0.0
    %263 = vmatpush.msra.mxu0 0.0
    %264 = vmatpush.msra.mxu0 0.0
    %265 = vmatpush.msra.mxu0 0.0
    %266 = vmatpush.msra.mxu0 0.0
    %267 = vmatpush.msra.mxu0 %v201
    %268 = vmatpush.msra.mxu0 %v200
    %269 = vmatpush.msra.mxu0 %v199
    %270 = vmatpush.msra.mxu0 %v198
    %271 = vmatmul.f32.gmra.mxu0 %v208
    %v272 = vpop.f32.mrf.mxu0
    %v273 = vadd.f32 %v205, %v272
    %274 = vmatmul.f32.gmra.mxu0 %v211
    %v275 = vpop.f32.mrf.mxu0
    %v276 = vadd.f32 %v205, %v275
    %277 = vmatmul.f32.gmra.mxu0 %v214
    %v278 = vpop.f32.mrf.mxu0
    %v279 = vadd.f32 %v205, %v278
    %280 = vmatmul.f32.gmra.mxu0 %v217
    %v281 = vpop.f32.mrf.mxu0
    %v282 = vadd.f32 %v205, %v281
    %283 = vmatmul.f32.gmra.mxu0 %v220
    %v284 = vpop.f32.mrf.mxu0
    %v285 = vadd.f32 %v205, %v284
    %286 = vmatmul.f32.gmra.mxu0 %v223
    %v287 = vpop.f32.mrf.mxu0
    %v288 = vadd.f32 %v205, %v287
    %289 = vmatmul.f32.gmra.mxu0 %v226
    %v290 = vpop.f32.mrf.mxu0
    %v291 = vadd.f32 %v205, %v290
    %292 = vmatmul.f32.gmra.mxu0 %v229
    %v293 = vpop.f32.mrf.mxu0
    %v294 = vadd.f32 %v205, %v293
    %295 = vmatmul.f32.gmra.mxu0 %v232
    %v296 = vpop.f32.mrf.mxu0
    %v297 = vadd.f32 %v205, %v296
    %298 = vmatmul.f32.gmra.mxu0 %v235
    %v299 = vpop.f32.mrf.mxu0
    %v300 = vadd.f32 %v205, %v299
    %301 = vmatmul.f32.gmra.mxu0 %v238
    %v302 = vpop.f32.mrf.mxu0
    %v303 = vadd.f32 %v205, %v302
    %304 = vmatmul.f32.gmra.mxu0 %v241
    %v305 = vpop.f32.mrf.mxu0
    %v306 = vadd.f32 %v205, %v305
    %307 = vmatmul.f32.gmra.mxu0 %v244
    %v308 = vpop.f32.mrf.mxu0
    %v309 = vadd.f32 %v205, %v308
    %310 = vmatmul.f32.gmra.mxu0 %v247
    %v311 = vpop.f32.mrf.mxu0
    %v312 = vadd.f32 %v205, %v311
    %313 = vmatmul.f32.gmra.mxu0 %v250
    %v314 = vpop.f32.mrf.mxu0
    %v315 = vadd.f32 %v205, %v314
    %316 = vmatmul.f32.gmra.mxu0 %v253
    %v317 = vpop.f32.mrf.mxu0
    %v318 = vadd.f32 %v205, %v317
    %319 = vdwg.mxu0
    %s320 = scalar_lea.vmem %s3, 64
    %v321 = vld [vmem:[%s320] sm:$0xff]
    %v322 = vld [vmem:[%s320 + $0x8] sm:$0xff]
    %v323 = vld [vmem:[%s320 + $0x10] sm:$0xff]
    %v324 = vld [vmem:[%s320 + $0x18] sm:$0xff]
    %s325 = scalar_lea.vmem %s4, 2
    %v326 = vld [vmem:[%s325] sm:$0x1]
    %v328 = vperm.slane %v326, 0
    %v331 = vsel %vm83, %v59, 0
    %v334 = vsel %vm83, %v60, 0
    %v337 = vsel %vm83, %v61, 0
    %v340 = vsel %vm83, %v62, 0
    %v343 = vsel %vm83, %v63, 0
    %v346 = vsel %vm83, %v64, 0
    %v349 = vsel %vm83, %v65, 0
    %v352 = vsel %vm83, %v66, 0
    %v355 = vsel %vm83, %v67, 0
    %v358 = vsel %vm83, %v68, 0
    %v361 = vsel %vm83, %v69, 0
    %v364 = vsel %vm83, %v70, 0
    %v367 = vsel %vm83, %v71, 0
    %v370 = vsel %vm83, %v72, 0
    %v373 = vsel %vm83, %v73, 0
    %v376 = vsel %vm83, %v74, 0
    %378 = vmatpush.msra.mxu0 0.0
    %379 = vmatpush.msra.mxu0 0.0
    %380 = vmatpush.msra.mxu0 0.0
    %381 = vmatpush.msra.mxu0 0.0
    %382 = vmatpush.msra.mxu0 0.0
    %383 = vmatpush.msra.mxu0 0.0
    %384 = vmatpush.msra.mxu0 0.0
    %385 = vmatpush.msra.mxu0 0.0
    %386 = vmatpush.msra.mxu0 0.0
    %387 = vmatpush.msra.mxu0 0.0
    %388 = vmatpush.msra.mxu0 0.0
    %389 = vmatpush.msra.mxu0 0.0
    %390 = vmatpush.msra.mxu0 %v324
    %391 = vmatpush.msra.mxu0 %v323
    %392 = vmatpush.msra.mxu0 %v322
    %393 = vmatpush.msra.mxu0 %v321
    %394 = vmatmul.f32.gmra.mxu0 %v331
    %v395 = vpop.f32.mrf.mxu0
    %v396 = vadd.f32 %v328, %v395
    %397 = vmatmul.f32.gmra.mxu0 %v334
    %v398 = vpop.f32.mrf.mxu0
    %v399 = vadd.f32 %v328, %v398
    %400 = vmatmul.f32.gmra.mxu0 %v337
    %v401 = vpop.f32.mrf.mxu0
    %v402 = vadd.f32 %v328, %v401
    %403 = vmatmul.f32.gmra.mxu0 %v340
    %v404 = vpop.f32.mrf.mxu0
    %v405 = vadd.f32 %v328, %v404
    %406 = vmatmul.f32.gmra.mxu0 %v343
    %v407 = vpop.f32.mrf.mxu0
    %v408 = vadd.f32 %v328, %v407
    %409 = vmatmul.f32.gmra.mxu0 %v346
    %v410 = vpop.f32.mrf.mxu0
    %v411 = vadd.f32 %v328, %v410
    %412 = vmatmul.f32.gmra.mxu0 %v349
    %v413 = vpop.f32.mrf.mxu0
    %v414 = vadd.f32 %v328, %v413
    %415 = vmatmul.f32.gmra.mxu0 %v352
    %v416 = vpop.f32.mrf.mxu0
    %v417 = vadd.f32 %v328, %v416
    %418 = vmatmul.f32.gmra.mxu0 %v355
    %v419 = vpop.f32.mrf.mxu0
    %v420 = vadd.f32 %v328, %v419
    %421 = vmatmul.f32.gmra.mxu0 %v358
    %v422 = vpop.f32.mrf.mxu0
    %v423 = vadd.f32 %v328, %v422
    %424 = vmatmul.f32.gmra.mxu0 %v361
    %v425 = vpop.f32.mrf.mxu0
    %v426 = vadd.f32 %v328, %v425
    %427 = vmatmul.f32.gmra.mxu0 %v364
    %v428 = vpop.f32.mrf.mxu0
    %v429 = vadd.f32 %v328, %v428
    %430 = vmatmul.f32.gmra.mxu0 %v367
    %v431 = vpop.f32.mrf.mxu0
    %v432 = vadd.f32 %v328, %v431
    %433 = vmatmul.f32.gmra.mxu0 %v370
    %v434 = vpop.f32.mrf.mxu0
    %v435 = vadd.f32 %v328, %v434
    %436 = vmatmul.f32.gmra.mxu0 %v373
    %v437 = vpop.f32.mrf.mxu0
    %v438 = vadd.f32 %v328, %v437
    %439 = vmatmul.f32.gmra.mxu0 %v376
    %v440 = vpop.f32.mrf.mxu0
    %v441 = vadd.f32 %v328, %v440
    %442 = vdwg.mxu0
    %vm443 = vcmask 64512
    %v445 = vsel %vm443, %v150, 0
    %v448 = vsel %vm443, %v273, 0
    %450 = vmatpush.xpose.msra.mxu0 0.0
    %451 = vmatpush.xpose.msra.mxu0 0.0
    %452 = vmatpush.xpose.msra.mxu0 0.0
    %453 = vmatpush.xpose.msra.mxu0 0.0
    %454 = vmatpush.xpose.msra.mxu0 0.0
    %455 = vmatpush.xpose.msra.mxu0 0.0
    %456 = vmatpush.xpose.msra.mxu0 0.0
    %457 = vmatpush.xpose.msra.mxu0 0.0
    %458 = vmatpush.xpose.msra.mxu0 0.0
    %459 = vmatpush.xpose.msra.mxu0 0.0
    %460 = vmatpush.xpose.msra.mxu0 0.0
    %461 = vmatpush.xpose.msra.mxu0 0.0
    %462 = vmatpush.xpose.msra.mxu0 0.0
    %463 = vmatpush.xpose.msra.mxu0 0.0
    %464 = vmatpush.xpose.msra.mxu0 0.0
    %465 = vmatpush.xpose.msra.mxu0 %v448
    %466 = vmatmul.f32.gmra.mxu0 %v445
    %v467 = vpop.f32.mrf.mxu0
    %v468 = vadd.f32 0.0, %v467
    %469 = vdwg.mxu0
    %v471 = vsel %vm443, %v153, 0
    %v474 = vsel %vm443, %v276, 0
    %476 = vmatpush.xpose.msra.mxu0 0.0
    %477 = vmatpush.xpose.msra.mxu0 0.0
    %478 = vmatpush.xpose.msra.mxu0 0.0
    %479 = vmatpush.xpose.msra.mxu0 0.0
    %480 = vmatpush.xpose.msra.mxu0 0.0
    %481 = vmatpush.xpose.msra.mxu0 0.0
    %482 = vmatpush.xpose.msra.mxu0 0.0
    %483 = vmatpush.xpose.msra.mxu0 0.0
    %484 = vmatpush.xpose.msra.mxu0 0.0
    %485 = vmatpush.xpose.msra.mxu0 0.0
    %486 = vmatpush.xpose.msra.mxu0 0.0
    %487 = vmatpush.xpose.msra.mxu0 0.0
    %488 = vmatpush.xpose.msra.mxu0 0.0
    %489 = vmatpush.xpose.msra.mxu0 0.0
    %490 = vmatpush.xpose.msra.mxu0 0.0
    %491 = vmatpush.xpose.msra.mxu0 %v474
    %492 = vmatmul.f32.gmra.mxu0 %v471
    %v493 = vpop.f32.mrf.mxu0
    %v494 = vadd.f32 0.0, %v493
    %495 = vdwg.mxu0
    %v497 = vsel %vm443, %v156, 0
    %v500 = vsel %vm443, %v279, 0
    %502 = vmatpush.xpose.msra.mxu0 0.0
    %503 = vmatpush.xpose.msra.mxu0 0.0
    %504 = vmatpush.xpose.msra.mxu0 0.0
    %505 = vmatpush.xpose.msra.mxu0 0.0
    %506 = vmatpush.xpose.msra.mxu0 0.0
    %507 = vmatpush.xpose.msra.mxu0 0.0
    %508 = vmatpush.xpose.msra.mxu0 0.0
    %509 = vmatpush.xpose.msra.mxu0 0.0
    %510 = vmatpush.xpose.msra.mxu0 0.0
    %511 = vmatpush.xpose.msra.mxu0 0.0
    %512 = vmatpush.xpose.msra.mxu0 0.0
    %513 = vmatpush.xpose.msra.mxu0 0.0
    %514 = vmatpush.xpose.msra.mxu0 0.0
    %515 = vmatpush.xpose.msra.mxu0 0.0
    %516 = vmatpush.xpose.msra.mxu0 0.0
    %517 = vmatpush.xpose.msra.mxu0 %v500
    %518 = vmatmul.f32.gmra.mxu0 %v497
    %v519 = vpop.f32.mrf.mxu0
    %v520 = vadd.f32 0.0, %v519
    %521 = vdwg.mxu0
    %v523 = vsel %vm443, %v159, 0
    %v526 = vsel %vm443, %v282, 0
    %528 = vmatpush.xpose.msra.mxu0 0.0
    %529 = vmatpush.xpose.msra.mxu0 0.0
    %530 = vmatpush.xpose.msra.mxu0 0.0
    %531 = vmatpush.xpose.msra.mxu0 0.0
    %532 = vmatpush.xpose.msra.mxu0 0.0
    %533 = vmatpush.xpose.msra.mxu0 0.0
    %534 = vmatpush.xpose.msra.mxu0 0.0
    %535 = vmatpush.xpose.msra.mxu0 0.0
    %536 = vmatpush.xpose.msra.mxu0 0.0
    %537 = vmatpush.xpose.msra.mxu0 0.0
    %538 = vmatpush.xpose.msra.mxu0 0.0
    %539 = vmatpush.xpose.msra.mxu0 0.0
    %540 = vmatpush.xpose.msra.mxu0 0.0
    %541 = vmatpush.xpose.msra.mxu0 0.0
    %542 = vmatpush.xpose.msra.mxu0 0.0
    %543 = vmatpush.xpose.msra.mxu0 %v526
    %544 = vmatmul.f32.gmra.mxu0 %v523
    %v545 = vpop.f32.mrf.mxu0
    %v546 = vadd.f32 0.0, %v545
    %547 = vdwg.mxu0
    %v549 = vsel %vm443, %v162, 0
    %v552 = vsel %vm443, %v285, 0
    %554 = vmatpush.xpose.msra.mxu0 0.0
    %555 = vmatpush.xpose.msra.mxu0 0.0
    %556 = vmatpush.xpose.msra.mxu0 0.0
    %557 = vmatpush.xpose.msra.mxu0 0.0
    %558 = vmatpush.xpose.msra.mxu0 0.0
    %559 = vmatpush.xpose.msra.mxu0 0.0
    %560 = vmatpush.xpose.msra.mxu0 0.0
    %561 = vmatpush.xpose.msra.mxu0 0.0
    %562 = vmatpush.xpose.msra.mxu0 0.0
    %563 = vmatpush.xpose.msra.mxu0 0.0
    %564 = vmatpush.xpose.msra.mxu0 0.0
    %565 = vmatpush.xpose.msra.mxu0 0.0
    %566 = vmatpush.xpose.msra.mxu0 0.0
    %567 = vmatpush.xpose.msra.mxu0 0.0
    %568 = vmatpush.xpose.msra.mxu0 0.0
    %569 = vmatpush.xpose.msra.mxu0 %v552
    %570 = vmatmul.f32.gmra.mxu0 %v549
    %v571 = vpop.f32.mrf.mxu0
    %v572 = vadd.f32 0.0, %v571
    %573 = vdwg.mxu0
    %v575 = vsel %vm443, %v165, 0
    %v578 = vsel %vm443, %v288, 0
    %580 = vmatpush.xpose.msra.mxu0 0.0
    %581 = vmatpush.xpose.msra.mxu0 0.0
    %582 = vmatpush.xpose.msra.mxu0 0.0
    %583 = vmatpush.xpose.msra.mxu0 0.0
    %584 = vmatpush.xpose.msra.mxu0 0.0
    %585 = vmatpush.xpose.msra.mxu0 0.0
    %586 = vmatpush.xpose.msra.mxu0 0.0
    %587 = vmatpush.xpose.msra.mxu0 0.0
    %588 = vmatpush.xpose.msra.mxu0 0.0
    %589 = vmatpush.xpose.msra.mxu0 0.0
    %590 = vmatpush.xpose.msra.mxu0 0.0
    %591 = vmatpush.xpose.msra.mxu0 0.0
    %592 = vmatpush.xpose.msra.mxu0 0.0
    %593 = vmatpush.xpose.msra.mxu0 0.0
    %594 = vmatpush.xpose.msra.mxu0 0.0
    %595 = vmatpush.xpose.msra.mxu0 %v578
    %596 = vmatmul.f32.gmra.mxu0 %v575
    %v597 = vpop.f32.mrf.mxu0
    %v598 = vadd.f32 0.0, %v597
    %599 = vdwg.mxu0
    %v601 = vsel %vm443, %v168, 0
    %v604 = vsel %vm443, %v291, 0
    %606 = vmatpush.xpose.msra.mxu0 0.0
    %607 = vmatpush.xpose.msra.mxu0 0.0
    %608 = vmatpush.xpose.msra.mxu0 0.0
    %609 = vmatpush.xpose.msra.mxu0 0.0
    %610 = vmatpush.xpose.msra.mxu0 0.0
    %611 = vmatpush.xpose.msra.mxu0 0.0
    %612 = vmatpush.xpose.msra.mxu0 0.0
    %613 = vmatpush.xpose.msra.mxu0 0.0
    %614 = vmatpush.xpose.msra.mxu0 0.0
    %615 = vmatpush.xpose.msra.mxu0 0.0
    %616 = vmatpush.xpose.msra.mxu0 0.0
    %617 = vmatpush.xpose.msra.mxu0 0.0
    %618 = vmatpush.xpose.msra.mxu0 0.0
    %619 = vmatpush.xpose.msra.mxu0 0.0
    %620 = vmatpush.xpose.msra.mxu0 0.0
    %621 = vmatpush.xpose.msra.mxu0 %v604
    %622 = vmatmul.f32.gmra.mxu0 %v601
    %v623 = vpop.f32.mrf.mxu0
    %v624 = vadd.f32 0.0, %v623
    %625 = vdwg.mxu0
    %v627 = vsel %vm443, %v171, 0
    %v630 = vsel %vm443, %v294, 0
    %632 = vmatpush.xpose.msra.mxu0 0.0
    %633 = vmatpush.xpose.msra.mxu0 0.0
    %634 = vmatpush.xpose.msra.mxu0 0.0
    %635 = vmatpush.xpose.msra.mxu0 0.0
    %636 = vmatpush.xpose.msra.mxu0 0.0
    %637 = vmatpush.xpose.msra.mxu0 0.0
    %638 = vmatpush.xpose.msra.mxu0 0.0
    %639 = vmatpush.xpose.msra.mxu0 0.0
    %640 = vmatpush.xpose.msra.mxu0 0.0
    %641 = vmatpush.xpose.msra.mxu0 0.0
    %642 = vmatpush.xpose.msra.mxu0 0.0
    %643 = vmatpush.xpose.msra.mxu0 0.0
    %644 = vmatpush.xpose.msra.mxu0 0.0
    %645 = vmatpush.xpose.msra.mxu0 0.0
    %646 = vmatpush.xpose.msra.mxu0 0.0
    %647 = vmatpush.xpose.msra.mxu0 %v630
    %648 = vmatmul.f32.gmra.mxu0 %v627
    %v649 = vpop.f32.mrf.mxu0
    %v650 = vadd.f32 0.0, %v649
    %651 = vdwg.mxu0
    %v653 = vsel %vm443, %v174, 0
    %v656 = vsel %vm443, %v297, 0
    %658 = vmatpush.xpose.msra.mxu0 0.0
    %659 = vmatpush.xpose.msra.mxu0 0.0
    %660 = vmatpush.xpose.msra.mxu0 0.0
    %661 = vmatpush.xpose.msra.mxu0 0.0
    %662 = vmatpush.xpose.msra.mxu0 0.0
    %663 = vmatpush.xpose.msra.mxu0 0.0
    %664 = vmatpush.xpose.msra.mxu0 0.0
    %665 = vmatpush.xpose.msra.mxu0 0.0
    %666 = vmatpush.xpose.msra.mxu0 0.0
    %667 = vmatpush.xpose.msra.mxu0 0.0
    %668 = vmatpush.xpose.msra.mxu0 0.0
    %669 = vmatpush.xpose.msra.mxu0 0.0
    %670 = vmatpush.xpose.msra.mxu0 0.0
    %671 = vmatpush.xpose.msra.mxu0 0.0
    %672 = vmatpush.xpose.msra.mxu0 0.0
    %673 = vmatpush.xpose.msra.mxu0 %v656
    %674 = vmatmul.f32.gmra.mxu0 %v653
    %v675 = vpop.f32.mrf.mxu0
    %v676 = vadd.f32 0.0, %v675
    %677 = vdwg.mxu0
    %v679 = vsel %vm443, %v177, 0
    %v682 = vsel %vm443, %v300, 0
    %684 = vmatpush.xpose.msra.mxu0 0.0
    %685 = vmatpush.xpose.msra.mxu0 0.0
    %686 = vmatpush.xpose.msra.mxu0 0.0
    %687 = vmatpush.xpose.msra.mxu0 0.0
    %688 = vmatpush.xpose.msra.mxu0 0.0
    %689 = vmatpush.xpose.msra.mxu0 0.0
    %690 = vmatpush.xpose.msra.mxu0 0.0
    %691 = vmatpush.xpose.msra.mxu0 0.0
    %692 = vmatpush.xpose.msra.mxu0 0.0
    %693 = vmatpush.xpose.msra.mxu0 0.0
    %694 = vmatpush.xpose.msra.mxu0 0.0
    %695 = vmatpush.xpose.msra.mxu0 0.0
    %696 = vmatpush.xpose.msra.mxu0 0.0
    %697 = vmatpush.xpose.msra.mxu0 0.0
    %698 = vmatpush.xpose.msra.mxu0 0.0
    %699 = vmatpush.xpose.msra.mxu0 %v682
    %700 = vmatmul.f32.gmra.mxu0 %v679
    %v701 = vpop.f32.mrf.mxu0
    %v702 = vadd.f32 0.0, %v701
    %703 = vdwg.mxu0
    %v705 = vsel %vm443, %v180, 0
    %v708 = vsel %vm443, %v303, 0
    %710 = vmatpush.xpose.msra.mxu0 0.0
    %711 = vmatpush.xpose.msra.mxu0 0.0
    %712 = vmatpush.xpose.msra.mxu0 0.0
    %713 = vmatpush.xpose.msra.mxu0 0.0
    %714 = vmatpush.xpose.msra.mxu0 0.0
    %715 = vmatpush.xpose.msra.mxu0 0.0
    %716 = vmatpush.xpose.msra.mxu0 0.0
    %717 = vmatpush.xpose.msra.mxu0 0.0
    %718 = vmatpush.xpose.msra.mxu0 0.0
    %719 = vmatpush.xpose.msra.mxu0 0.0
    %720 = vmatpush.xpose.msra.mxu0 0.0
    %721 = vmatpush.xpose.msra.mxu0 0.0
    %722 = vmatpush.xpose.msra.mxu0 0.0
    %723 = vmatpush.xpose.msra.mxu0 0.0
    %724 = vmatpush.xpose.msra.mxu0 0.0
    %725 = vmatpush.xpose.msra.mxu0 %v708
    %726 = vmatmul.f32.gmra.mxu0 %v705
    %v727 = vpop.f32.mrf.mxu0
    %v728 = vadd.f32 0.0, %v727
    %729 = vdwg.mxu0
    %v731 = vsel %vm443, %v183, 0
    %v734 = vsel %vm443, %v306, 0
    %736 = vmatpush.xpose.msra.mxu0 0.0
    %737 = vmatpush.xpose.msra.mxu0 0.0
    %738 = vmatpush.xpose.msra.mxu0 0.0
    %739 = vmatpush.xpose.msra.mxu0 0.0
    %740 = vmatpush.xpose.msra.mxu0 0.0
    %741 = vmatpush.xpose.msra.mxu0 0.0
    %742 = vmatpush.xpose.msra.mxu0 0.0
    %743 = vmatpush.xpose.msra.mxu0 0.0
    %744 = vmatpush.xpose.msra.mxu0 0.0
    %745 = vmatpush.xpose.msra.mxu0 0.0
    %746 = vmatpush.xpose.msra.mxu0 0.0
    %747 = vmatpush.xpose.msra.mxu0 0.0
    %748 = vmatpush.xpose.msra.mxu0 0.0
    %749 = vmatpush.xpose.msra.mxu0 0.0
    %750 = vmatpush.xpose.msra.mxu0 0.0
    %751 = vmatpush.xpose.msra.mxu0 %v734
    %752 = vmatmul.f32.gmra.mxu0 %v731
    %v753 = vpop.f32.mrf.mxu0
    %v754 = vadd.f32 0.0, %v753
    %755 = vdwg.mxu0
    %v757 = vsel %vm443, %v186, 0
    %v760 = vsel %vm443, %v309, 0
    %762 = vmatpush.xpose.msra.mxu0 0.0
    %763 = vmatpush.xpose.msra.mxu0 0.0
    %764 = vmatpush.xpose.msra.mxu0 0.0
    %765 = vmatpush.xpose.msra.mxu0 0.0
    %766 = vmatpush.xpose.msra.mxu0 0.0
    %767 = vmatpush.xpose.msra.mxu0 0.0
    %768 = vmatpush.xpose.msra.mxu0 0.0
    %769 = vmatpush.xpose.msra.mxu0 0.0
    %770 = vmatpush.xpose.msra.mxu0 0.0
    %771 = vmatpush.xpose.msra.mxu0 0.0
    %772 = vmatpush.xpose.msra.mxu0 0.0
    %773 = vmatpush.xpose.msra.mxu0 0.0
    %774 = vmatpush.xpose.msra.mxu0 0.0
    %775 = vmatpush.xpose.msra.mxu0 0.0
    %776 = vmatpush.xpose.msra.mxu0 0.0
    %777 = vmatpush.xpose.msra.mxu0 %v760
    %778 = vmatmul.f32.gmra.mxu0 %v757
    %v779 = vpop.f32.mrf.mxu0
    %v780 = vadd.f32 0.0, %v779
    %781 = vdwg.mxu0
    %v783 = vsel %vm443, %v189, 0
    %v786 = vsel %vm443, %v312, 0
    %788 = vmatpush.xpose.msra.mxu0 0.0
    %789 = vmatpush.xpose.msra.mxu0 0.0
    %790 = vmatpush.xpose.msra.mxu0 0.0
    %791 = vmatpush.xpose.msra.mxu0 0.0
    %792 = vmatpush.xpose.msra.mxu0 0.0
    %793 = vmatpush.xpose.msra.mxu0 0.0
    %794 = vmatpush.xpose.msra.mxu0 0.0
    %795 = vmatpush.xpose.msra.mxu0 0.0
    %796 = vmatpush.xpose.msra.mxu0 0.0
    %797 = vmatpush.xpose.msra.mxu0 0.0
    %798 = vmatpush.xpose.msra.mxu0 0.0
    %799 = vmatpush.xpose.msra.mxu0 0.0
    %800 = vmatpush.xpose.msra.mxu0 0.0
    %801 = vmatpush.xpose.msra.mxu0 0.0
    %802 = vmatpush.xpose.msra.mxu0 0.0
    %803 = vmatpush.xpose.msra.mxu0 %v786
    %804 = vmatmul.f32.gmra.mxu0 %v783
    %v805 = vpop.f32.mrf.mxu0
    %v806 = vadd.f32 0.0, %v805
    %807 = vdwg.mxu0
    %v809 = vsel %vm443, %v192, 0
    %v812 = vsel %vm443, %v315, 0
    %814 = vmatpush.xpose.msra.mxu0 0.0
    %815 = vmatpush.xpose.msra.mxu0 0.0
    %816 = vmatpush.xpose.msra.mxu0 0.0
    %817 = vmatpush.xpose.msra.mxu0 0.0
    %818 = vmatpush.xpose.msra.mxu0 0.0
    %819 = vmatpush.xpose.msra.mxu0 0.0
    %820 = vmatpush.xpose.msra.mxu0 0.0
    %821 = vmatpush.xpose.msra.mxu0 0.0
    %822 = vmatpush.xpose.msra.mxu0 0.0
    %823 = vmatpush.xpose.msra.mxu0 0.0
    %824 = vmatpush.xpose.msra.mxu0 0.0
    %825 = vmatpush.xpose.msra.mxu0 0.0
    %826 = vmatpush.xpose.msra.mxu0 0.0
    %827 = vmatpush.xpose.msra.mxu0 0.0
    %828 = vmatpush.xpose.msra.mxu0 0.0
    %829 = vmatpush.xpose.msra.mxu0 %v812
    %830 = vmatmul.f32.gmra.mxu0 %v809
    %v831 = vpop.f32.mrf.mxu0
    %v832 = vadd.f32 0.0, %v831
    %833 = vdwg.mxu0
    %v835 = vsel %vm443, %v195, 0
    %v838 = vsel %vm443, %v318, 0
    %840 = vmatpush.xpose.msra.mxu0 0.0
    %841 = vmatpush.xpose.msra.mxu0 0.0
    %842 = vmatpush.xpose.msra.mxu0 0.0
    %843 = vmatpush.xpose.msra.mxu0 0.0
    %844 = vmatpush.xpose.msra.mxu0 0.0
    %845 = vmatpush.xpose.msra.mxu0 0.0
    %846 = vmatpush.xpose.msra.mxu0 0.0
    %847 = vmatpush.xpose.msra.mxu0 0.0
    %848 = vmatpush.xpose.msra.mxu0 0.0
    %849 = vmatpush.xpose.msra.mxu0 0.0
    %850 = vmatpush.xpose.msra.mxu0 0.0
    %851 = vmatpush.xpose.msra.mxu0 0.0
    %852 = vmatpush.xpose.msra.mxu0 0.0
    %853 = vmatpush.xpose.msra.mxu0 0.0
    %854 = vmatpush.xpose.msra.mxu0 0.0
    %855 = vmatpush.xpose.msra.mxu0 %v838
    %856 = vmatmul.f32.gmra.mxu0 %v835
    %v857 = vpop.f32.mrf.mxu0
    %v858 = vadd.f32 0.0, %v857
    %859 = vdwg.mxu0
    %v860 = vmul.f32 %v468, 0.35355338
    %v861 = vmul.f32 %v494, 0.35355338
    %v862 = vmul.f32 %v520, 0.35355338
    %v863 = vmul.f32 %v546, 0.35355338
    %v864 = vmul.f32 %v572, 0.35355338
    %v865 = vmul.f32 %v598, 0.35355338
    %v866 = vmul.f32 %v624, 0.35355338
    %v867 = vmul.f32 %v650, 0.35355338
    %v868 = vmul.f32 %v676, 0.35355338
    %v869 = vmul.f32 %v702, 0.35355338
    %v870 = vmul.f32 %v728, 0.35355338
    %v871 = vmul.f32 %v754, 0.35355338
    %v872 = vmul.f32 %v780, 0.35355338
    %v873 = vmul.f32 %v806, 0.35355338
    %v874 = vmul.f32 %v832, 0.35355338
    %v875 = vmul.f32 %v858, 0.35355338
    %v876 = vsel %vm443, %v860, -inf
    %877 = vmax.xlane.f32.xlu0 %v876
    %v878 = vpop.xlane.xlu0 %877
    %v879 = vsel %vm443, %v861, -inf
    %880 = vmax.xlane.f32.xlu0 %v879
    %v881 = vpop.xlane.xlu0 %880
    %v882 = vsel %vm443, %v862, -inf
    %883 = vmax.xlane.f32.xlu0 %v882
    %v884 = vpop.xlane.xlu0 %883
    %v885 = vsel %vm443, %v863, -inf
    %886 = vmax.xlane.f32.xlu0 %v885
    %v887 = vpop.xlane.xlu0 %886
    %v888 = vsel %vm443, %v864, -inf
    %889 = vmax.xlane.f32.xlu0 %v888
    %v890 = vpop.xlane.xlu0 %889
    %v891 = vsel %vm443, %v865, -inf
    %892 = vmax.xlane.f32.xlu0 %v891
    %v893 = vpop.xlane.xlu0 %892
    %v894 = vsel %vm443, %v866, -inf
    %895 = vmax.xlane.f32.xlu0 %v894
    %v896 = vpop.xlane.xlu0 %895
    %v897 = vsel %vm443, %v867, -inf
    %898 = vmax.xlane.f32.xlu0 %v897
    %v899 = vpop.xlane.xlu0 %898
    %v900 = vsel %vm443, %v868, -inf
    %901 = vmax.xlane.f32.xlu0 %v900
    %v902 = vpop.xlane.xlu0 %901
    %v903 = vsel %vm443, %v869, -inf
    %904 = vmax.xlane.f32.xlu0 %v903
    %v905 = vpop.xlane.xlu0 %904
    %v906 = vsel %vm443, %v870, -inf
    %907 = vmax.xlane.f32.xlu0 %v906
    %v908 = vpop.xlane.xlu0 %907
    %v909 = vsel %vm443, %v871, -inf
    %910 = vmax.xlane.f32.xlu0 %v909
    %v911 = vpop.xlane.xlu0 %910
    %v912 = vsel %vm443, %v872, -inf
    %913 = vmax.xlane.f32.xlu0 %v912
    %v914 = vpop.xlane.xlu0 %913
    %v915 = vsel %vm443, %v873, -inf
    %916 = vmax.xlane.f32.xlu0 %v915
    %v917 = vpop.xlane.xlu0 %916
    %v918 = vsel %vm443, %v874, -inf
    %919 = vmax.xlane.f32.xlu0 %v918
    %v920 = vpop.xlane.xlu0 %919
    %v921 = vsel %vm443, %v875, -inf
    %922 = vmax.xlane.f32.xlu0 %v921
    %v923 = vpop.xlane.xlu0 %922
    %v924 = vsub.f32 %v860, %v878
    %v925 = vsub.f32 %v861, %v881
    %v926 = vsub.f32 %v862, %v884
    %v927 = vsub.f32 %v863, %v887
    %v928 = vsub.f32 %v864, %v890
    %v929 = vsub.f32 %v865, %v893
    %v930 = vsub.f32 %v866, %v896
    %v931 = vsub.f32 %v867, %v899
    %v932 = vsub.f32 %v868, %v902
    %v933 = vsub.f32 %v869, %v905
    %v934 = vsub.f32 %v870, %v908
    %v935 = vsub.f32 %v871, %v911
    %v936 = vsub.f32 %v872, %v914
    %v937 = vsub.f32 %v873, %v917
    %v938 = vsub.f32 %v874, %v920
    %v939 = vsub.f32 %v875, %v923
    %v940 = vmul.f32 %v924, 1.442695
    %v941 = vpow.pop %v940
    %v942 = vmul.f32 %v925, 1.442695
    %v943 = vpow.pop %v942
    %v944 = vmul.f32 %v926, 1.442695
    %v945 = vpow.pop %v944
    %v946 = vmul.f32 %v927, 1.442695
    %v947 = vpow.pop %v946
    %v948 = vmul.f32 %v928, 1.442695
    %v949 = vpow.pop %v948
    %v950 = vmul.f32 %v929, 1.442695
    %v951 = vpow.pop %v950
    %v952 = vmul.f32 %v930, 1.442695
    %v953 = vpow.pop %v952
    %v954 = vmul.f32 %v931, 1.442695
    %v955 = vpow.pop %v954
    %v956 = vmul.f32 %v932, 1.442695
    %v957 = vpow.pop %v956
    %v958 = vmul.f32 %v933, 1.442695
    %v959 = vpow.pop %v958
    %v960 = vmul.f32 %v934, 1.442695
    %v961 = vpow.pop %v960
    %v962 = vmul.f32 %v935, 1.442695
    %v963 = vpow.pop %v962
    %v964 = vmul.f32 %v936, 1.442695
    %v965 = vpow.pop %v964
    %v966 = vmul.f32 %v937, 1.442695
    %v967 = vpow.pop %v966
    %v968 = vmul.f32 %v938, 1.442695
    %v969 = vpow.pop %v968
    %v970 = vmul.f32 %v939, 1.442695
    %v971 = vpow.pop %v970
    %v972 = vsel %vm443, %v941, 0.0
    %973 = vadd.xlane.f32.xlu0 %v972
    %v974 = vpop.xlane.xlu0 %973
    %v975 = vsel %vm443, %v943, 0.0
    %976 = vadd.xlane.f32.xlu0 %v975
    %v977 = vpop.xlane.xlu0 %976
    %v978 = vsel %vm443, %v945, 0.0
    %979 = vadd.xlane.f32.xlu0 %v978
    %v980 = vpop.xlane.xlu0 %979
    %v981 = vsel %vm443, %v947, 0.0
    %982 = vadd.xlane.f32.xlu0 %v981
    %v983 = vpop.xlane.xlu0 %982
    %v984 = vsel %vm443, %v949, 0.0
    %985 = vadd.xlane.f32.xlu0 %v984
    %v986 = vpop.xlane.xlu0 %985
    %v987 = vsel %vm443, %v951, 0.0
    %988 = vadd.xlane.f32.xlu0 %v987
    %v989 = vpop.xlane.xlu0 %988
    %v990 = vsel %vm443, %v953, 0.0
    %991 = vadd.xlane.f32.xlu0 %v990
    %v992 = vpop.xlane.xlu0 %991
    %v993 = vsel %vm443, %v955, 0.0
    %994 = vadd.xlane.f32.xlu0 %v993
    %v995 = vpop.xlane.xlu0 %994
    %v996 = vsel %vm443, %v957, 0.0
    %997 = vadd.xlane.f32.xlu0 %v996
    %v998 = vpop.xlane.xlu0 %997
    %v999 = vsel %vm443, %v959, 0.0
    %1000 = vadd.xlane.f32.xlu0 %v999
    %v1001 = vpop.xlane.xlu0 %1000
    %v1002 = vsel %vm443, %v961, 0.0
    %1003 = vadd.xlane.f32.xlu0 %v1002
    %v1004 = vpop.xlane.xlu0 %1003
    %v1005 = vsel %vm443, %v963, 0.0
    %1006 = vadd.xlane.f32.xlu0 %v1005
    %v1007 = vpop.xlane.xlu0 %1006
    %v1008 = vsel %vm443, %v965, 0.0
    %1009 = vadd.xlane.f32.xlu0 %v1008
    %v1010 = vpop.xlane.xlu0 %1009
    %v1011 = vsel %vm443, %v967, 0.0
    %1012 = vadd.xlane.f32.xlu0 %v1011
    %v1013 = vpop.xlane.xlu0 %1012
    %v1014 = vsel %vm443, %v969, 0.0
    %1015 = vadd.xlane.f32.xlu0 %v1014
    %v1016 = vpop.xlane.xlu0 %1015
    %v1017 = vsel %vm443, %v971, 0.0
    %1018 = vadd.xlane.f32.xlu0 %v1017
    %v1019 = vpop.xlane.xlu0 %1018
    %v1020 = vrcp.pop %v974
    %v1021 = vmul.f32 %v974, %v1020
    %v1022 = vsub.f32 1.0, %v1021
    %v1023 = vmul.f32 %v1020, %v1022
    %v1024 = vadd.f32 %v1020, %v1023
    %vm1025 = vweird.f32 %v974
    %vm1026 = vweird.f32 %v1020
    %vm1027 = vmor %vm1025, %vm1026
    %v1028 = vsel %vm1027, %v1020, %v1024
    %v1029 = vand.u32 2147483647, %v974
    %vm1030 = vcmp.eq.f32.partialorder %v1029, 8.507059e+37
    %v1031 = vand.u32 %v974, 2147483648
    %v1032 = vor.u32 1.1754944e-38, %v1031
    %v1033 = vsel %vm1030, %v1032, %v1028
    %v1034 = vmul.f32 %v941, %v1033
    %v1035 = vrcp.pop %v977
    %v1036 = vmul.f32 %v977, %v1035
    %v1037 = vsub.f32 1.0, %v1036
    %v1038 = vmul.f32 %v1035, %v1037
    %v1039 = vadd.f32 %v1035, %v1038
    %vm1040 = vweird.f32 %v977
    %vm1041 = vweird.f32 %v1035
    %vm1042 = vmor %vm1040, %vm1041
    %v1043 = vsel %vm1042, %v1035, %v1039
    %v1044 = vand.u32 2147483647, %v977
    %vm1045 = vcmp.eq.f32.partialorder %v1044, 8.507059e+37
    %v1046 = vand.u32 %v977, 2147483648
    %v1047 = vor.u32 1.1754944e-38, %v1046
    %v1048 = vsel %vm1045, %v1047, %v1043
    %v1049 = vmul.f32 %v943, %v1048
    %v1050 = vrcp.pop %v980
    %v1051 = vmul.f32 %v980, %v1050
    %v1052 = vsub.f32 1.0, %v1051
    %v1053 = vmul.f32 %v1050, %v1052
    %v1054 = vadd.f32 %v1050, %v1053
    %vm1055 = vweird.f32 %v980
    %vm1056 = vweird.f32 %v1050
    %vm1057 = vmor %vm1055, %vm1056
    %v1058 = vsel %vm1057, %v1050, %v1054
    %v1059 = vand.u32 2147483647, %v980
    %vm1060 = vcmp.eq.f32.partialorder %v1059, 8.507059e+37
    %v1061 = vand.u32 %v980, 2147483648
    %v1062 = vor.u32 1.1754944e-38, %v1061
    %v1063 = vsel %vm1060, %v1062, %v1058
    %v1064 = vmul.f32 %v945, %v1063
    %v1065 = vrcp.pop %v983
    %v1066 = vmul.f32 %v983, %v1065
    %v1067 = vsub.f32 1.0, %v1066
    %v1068 = vmul.f32 %v1065, %v1067
    %v1069 = vadd.f32 %v1065, %v1068
    %vm1070 = vweird.f32 %v983
    %vm1071 = vweird.f32 %v1065
    %vm1072 = vmor %vm1070, %vm1071
    %v1073 = vsel %vm1072, %v1065, %v1069
    %v1074 = vand.u32 2147483647, %v983
    %vm1075 = vcmp.eq.f32.partialorder %v1074, 8.507059e+37
    %v1076 = vand.u32 %v983, 2147483648
    %v1077 = vor.u32 1.1754944e-38, %v1076
    %v1078 = vsel %vm1075, %v1077, %v1073
    %v1079 = vmul.f32 %v947, %v1078
    %v1080 = vrcp.pop %v986
    %v1081 = vmul.f32 %v986, %v1080
    %v1082 = vsub.f32 1.0, %v1081
    %v1083 = vmul.f32 %v1080, %v1082
    %v1084 = vadd.f32 %v1080, %v1083
    %vm1085 = vweird.f32 %v986
    %vm1086 = vweird.f32 %v1080
    %vm1087 = vmor %vm1085, %vm1086
    %v1088 = vsel %vm1087, %v1080, %v1084
    %v1089 = vand.u32 2147483647, %v986
    %vm1090 = vcmp.eq.f32.partialorder %v1089, 8.507059e+37
    %v1091 = vand.u32 %v986, 2147483648
    %v1092 = vor.u32 1.1754944e-38, %v1091
    %v1093 = vsel %vm1090, %v1092, %v1088
    %v1094 = vmul.f32 %v949, %v1093
    %v1095 = vrcp.pop %v989
    %v1096 = vmul.f32 %v989, %v1095
    %v1097 = vsub.f32 1.0, %v1096
    %v1098 = vmul.f32 %v1095, %v1097
    %v1099 = vadd.f32 %v1095, %v1098
    %vm1100 = vweird.f32 %v989
    %vm1101 = vweird.f32 %v1095
    %vm1102 = vmor %vm1100, %vm1101
    %v1103 = vsel %vm1102, %v1095, %v1099
    %v1104 = vand.u32 2147483647, %v989
    %vm1105 = vcmp.eq.f32.partialorder %v1104, 8.507059e+37
    %v1106 = vand.u32 %v989, 2147483648
    %v1107 = vor.u32 1.1754944e-38, %v1106
    %v1108 = vsel %vm1105, %v1107, %v1103
    %v1109 = vmul.f32 %v951, %v1108
    %v1110 = vrcp.pop %v992
    %v1111 = vmul.f32 %v992, %v1110
    %v1112 = vsub.f32 1.0, %v1111
    %v1113 = vmul.f32 %v1110, %v1112
    %v1114 = vadd.f32 %v1110, %v1113
    %vm1115 = vweird.f32 %v992
    %vm1116 = vweird.f32 %v1110
    %vm1117 = vmor %vm1115, %vm1116
    %v1118 = vsel %vm1117, %v1110, %v1114
    %v1119 = vand.u32 2147483647, %v992
    %vm1120 = vcmp.eq.f32.partialorder %v1119, 8.507059e+37
    %v1121 = vand.u32 %v992, 2147483648
    %v1122 = vor.u32 1.1754944e-38, %v1121
    %v1123 = vsel %vm1120, %v1122, %v1118
    %v1124 = vmul.f32 %v953, %v1123
    %v1125 = vrcp.pop %v995
    %v1126 = vmul.f32 %v995, %v1125
    %v1127 = vsub.f32 1.0, %v1126
    %v1128 = vmul.f32 %v1125, %v1127
    %v1129 = vadd.f32 %v1125, %v1128
    %vm1130 = vweird.f32 %v995
    %vm1131 = vweird.f32 %v1125
    %vm1132 = vmor %vm1130, %vm1131
    %v1133 = vsel %vm1132, %v1125, %v1129
    %v1134 = vand.u32 2147483647, %v995
    %vm1135 = vcmp.eq.f32.partialorder %v1134, 8.507059e+37
    %v1136 = vand.u32 %v995, 2147483648
    %v1137 = vor.u32 1.1754944e-38, %v1136
    %v1138 = vsel %vm1135, %v1137, %v1133
    %v1139 = vmul.f32 %v955, %v1138
    %v1140 = vrcp.pop %v998
    %v1141 = vmul.f32 %v998, %v1140
    %v1142 = vsub.f32 1.0, %v1141
    %v1143 = vmul.f32 %v1140, %v1142
    %v1144 = vadd.f32 %v1140, %v1143
    %vm1145 = vweird.f32 %v998
    %vm1146 = vweird.f32 %v1140
    %vm1147 = vmor %vm1145, %vm1146
    %v1148 = vsel %vm1147, %v1140, %v1144
    %v1149 = vand.u32 2147483647, %v998
    %vm1150 = vcmp.eq.f32.partialorder %v1149, 8.507059e+37
    %v1151 = vand.u32 %v998, 2147483648
    %v1152 = vor.u32 1.1754944e-38, %v1151
    %v1153 = vsel %vm1150, %v1152, %v1148
    %v1154 = vmul.f32 %v957, %v1153
    %v1155 = vrcp.pop %v1001
    %v1156 = vmul.f32 %v1001, %v1155
    %v1157 = vsub.f32 1.0, %v1156
    %v1158 = vmul.f32 %v1155, %v1157
    %v1159 = vadd.f32 %v1155, %v1158
    %vm1160 = vweird.f32 %v1001
    %vm1161 = vweird.f32 %v1155
    %vm1162 = vmor %vm1160, %vm1161
    %v1163 = vsel %vm1162, %v1155, %v1159
    %v1164 = vand.u32 2147483647, %v1001
    %vm1165 = vcmp.eq.f32.partialorder %v1164, 8.507059e+37
    %v1166 = vand.u32 %v1001, 2147483648
    %v1167 = vor.u32 1.1754944e-38, %v1166
    %v1168 = vsel %vm1165, %v1167, %v1163
    %v1169 = vmul.f32 %v959, %v1168
    %v1170 = vrcp.pop %v1004
    %v1171 = vmul.f32 %v1004, %v1170
    %v1172 = vsub.f32 1.0, %v1171
    %v1173 = vmul.f32 %v1170, %v1172
    %v1174 = vadd.f32 %v1170, %v1173
    %vm1175 = vweird.f32 %v1004
    %vm1176 = vweird.f32 %v1170
    %vm1177 = vmor %vm1175, %vm1176
    %v1178 = vsel %vm1177, %v1170, %v1174
    %v1179 = vand.u32 2147483647, %v1004
    %vm1180 = vcmp.eq.f32.partialorder %v1179, 8.507059e+37
    %v1181 = vand.u32 %v1004, 2147483648
    %v1182 = vor.u32 1.1754944e-38, %v1181
    %v1183 = vsel %vm1180, %v1182, %v1178
    %v1184 = vmul.f32 %v961, %v1183
    %v1185 = vrcp.pop %v1007
    %v1186 = vmul.f32 %v1007, %v1185
    %v1187 = vsub.f32 1.0, %v1186
    %v1188 = vmul.f32 %v1185, %v1187
    %v1189 = vadd.f32 %v1185, %v1188
    %vm1190 = vweird.f32 %v1007
    %vm1191 = vweird.f32 %v1185
    %vm1192 = vmor %vm1190, %vm1191
    %v1193 = vsel %vm1192, %v1185, %v1189
    %v1194 = vand.u32 2147483647, %v1007
    %vm1195 = vcmp.eq.f32.partialorder %v1194, 8.507059e+37
    %v1196 = vand.u32 %v1007, 2147483648
    %v1197 = vor.u32 1.1754944e-38, %v1196
    %v1198 = vsel %vm1195, %v1197, %v1193
    %v1199 = vmul.f32 %v963, %v1198
    %v1200 = vrcp.pop %v1010
    %v1201 = vmul.f32 %v1010, %v1200
    %v1202 = vsub.f32 1.0, %v1201
    %v1203 = vmul.f32 %v1200, %v1202
    %v1204 = vadd.f32 %v1200, %v1203
    %vm1205 = vweird.f32 %v1010
    %vm1206 = vweird.f32 %v1200
    %vm1207 = vmor %vm1205, %vm1206
    %v1208 = vsel %vm1207, %v1200, %v1204
    %v1209 = vand.u32 2147483647, %v1010
    %vm1210 = vcmp.eq.f32.partialorder %v1209, 8.507059e+37
    %v1211 = vand.u32 %v1010, 2147483648
    %v1212 = vor.u32 1.1754944e-38, %v1211
    %v1213 = vsel %vm1210, %v1212, %v1208
    %v1214 = vmul.f32 %v965, %v1213
    %v1215 = vrcp.pop %v1013
    %v1216 = vmul.f32 %v1013, %v1215
    %v1217 = vsub.f32 1.0, %v1216
    %v1218 = vmul.f32 %v1215, %v1217
    %v1219 = vadd.f32 %v1215, %v1218
    %vm1220 = vweird.f32 %v1013
    %vm1221 = vweird.f32 %v1215
    %vm1222 = vmor %vm1220, %vm1221
    %v1223 = vsel %vm1222, %v1215, %v1219
    %v1224 = vand.u32 2147483647, %v1013
    %vm1225 = vcmp.eq.f32.partialorder %v1224, 8.507059e+37
    %v1226 = vand.u32 %v1013, 2147483648
    %v1227 = vor.u32 1.1754944e-38, %v1226
    %v1228 = vsel %vm1225, %v1227, %v1223
    %v1229 = vmul.f32 %v967, %v1228
    %v1230 = vrcp.pop %v1016
    %v1231 = vmul.f32 %v1016, %v1230
    %v1232 = vsub.f32 1.0, %v1231
    %v1233 = vmul.f32 %v1230, %v1232
    %v1234 = vadd.f32 %v1230, %v1233
    %vm1235 = vweird.f32 %v1016
    %vm1236 = vweird.f32 %v1230
    %vm1237 = vmor %vm1235, %vm1236
    %v1238 = vsel %vm1237, %v1230, %v1234
    %v1239 = vand.u32 2147483647, %v1016
    %vm1240 = vcmp.eq.f32.partialorder %v1239, 8.507059e+37
    %v1241 = vand.u32 %v1016, 2147483648
    %v1242 = vor.u32 1.1754944e-38, %v1241
    %v1243 = vsel %vm1240, %v1242, %v1238
    %v1244 = vmul.f32 %v969, %v1243
    %v1245 = vrcp.pop %v1019
    %v1246 = vmul.f32 %v1019, %v1245
    %v1247 = vsub.f32 1.0, %v1246
    %v1248 = vmul.f32 %v1245, %v1247
    %v1249 = vadd.f32 %v1245, %v1248
    %vm1250 = vweird.f32 %v1019
    %vm1251 = vweird.f32 %v1245
    %vm1252 = vmor %vm1250, %vm1251
    %v1253 = vsel %vm1252, %v1245, %v1249
    %v1254 = vand.u32 2147483647, %v1019
    %vm1255 = vcmp.eq.f32.partialorder %v1254, 8.507059e+37
    %v1256 = vand.u32 %v1019, 2147483648
    %v1257 = vor.u32 1.1754944e-38, %v1256
    %v1258 = vsel %vm1255, %v1257, %v1253
    %v1259 = vmul.f32 %v971, %v1258
    %v1261 = vsel %vm443, %v1034, 0
    %1263 = vmatpush.msra.mxu0 0.0
    %1264 = vmatpush.msra.mxu0 0.0
    %1265 = vmatpush.msra.mxu0 0.0
    %1266 = vmatpush.msra.mxu0 0.0
    %1267 = vmatpush.msra.mxu0 0.0
    %1268 = vmatpush.msra.mxu0 0.0
    %1269 = vmatpush.msra.mxu0 0.0
    %1270 = vmatpush.msra.mxu0 0.0
    %1271 = vmatpush.msra.mxu0 0.0
    %1272 = vmatpush.msra.mxu0 0.0
    %1273 = vmatpush.msra.mxu0 0.0
    %1274 = vmatpush.msra.mxu0 0.0
    %1275 = vmatpush.msra.mxu0 0.0
    %1276 = vmatpush.msra.mxu0 0.0
    %1277 = vmatpush.msra.mxu0 0.0
    %1278 = vmatpush.msra.mxu0 %v396
    %1279 = vmatmul.f32.gmra.mxu0 %v1261
    %v1280 = vpop.f32.mrf.mxu0
    %v1281 = vadd.f32 0.0, %v1280
    %1282 = vdwg.mxu0
    %v1284 = vsel %vm443, %v1049, 0
    %1286 = vmatpush.msra.mxu0 0.0
    %1287 = vmatpush.msra.mxu0 0.0
    %1288 = vmatpush.msra.mxu0 0.0
    %1289 = vmatpush.msra.mxu0 0.0
    %1290 = vmatpush.msra.mxu0 0.0
    %1291 = vmatpush.msra.mxu0 0.0
    %1292 = vmatpush.msra.mxu0 0.0
    %1293 = vmatpush.msra.mxu0 0.0
    %1294 = vmatpush.msra.mxu0 0.0
    %1295 = vmatpush.msra.mxu0 0.0
    %1296 = vmatpush.msra.mxu0 0.0
    %1297 = vmatpush.msra.mxu0 0.0
    %1298 = vmatpush.msra.mxu0 0.0
    %1299 = vmatpush.msra.mxu0 0.0
    %1300 = vmatpush.msra.mxu0 0.0
    %1301 = vmatpush.msra.mxu0 %v399
    %1302 = vmatmul.f32.gmra.mxu0 %v1284
    %v1303 = vpop.f32.mrf.mxu0
    %v1304 = vadd.f32 0.0, %v1303
    %1305 = vdwg.mxu0
    %v1307 = vsel %vm443, %v1064, 0
    %1309 = vmatpush.msra.mxu0 0.0
    %1310 = vmatpush.msra.mxu0 0.0
    %1311 = vmatpush.msra.mxu0 0.0
    %1312 = vmatpush.msra.mxu0 0.0
    %1313 = vmatpush.msra.mxu0 0.0
    %1314 = vmatpush.msra.mxu0 0.0
    %1315 = vmatpush.msra.mxu0 0.0
    %1316 = vmatpush.msra.mxu0 0.0
    %1317 = vmatpush.msra.mxu0 0.0
    %1318 = vmatpush.msra.mxu0 0.0
    %1319 = vmatpush.msra.mxu0 0.0
    %1320 = vmatpush.msra.mxu0 0.0
    %1321 = vmatpush.msra.mxu0 0.0
    %1322 = vmatpush.msra.mxu0 0.0
    %1323 = vmatpush.msra.mxu0 0.0
    %1324 = vmatpush.msra.mxu0 %v402
    %1325 = vmatmul.f32.gmra.mxu0 %v1307
    %v1326 = vpop.f32.mrf.mxu0
    %v1327 = vadd.f32 0.0, %v1326
    %1328 = vdwg.mxu0
    %v1330 = vsel %vm443, %v1079, 0
    %1332 = vmatpush.msra.mxu0 0.0
    %1333 = vmatpush.msra.mxu0 0.0
    %1334 = vmatpush.msra.mxu0 0.0
    %1335 = vmatpush.msra.mxu0 0.0
    %1336 = vmatpush.msra.mxu0 0.0
    %1337 = vmatpush.msra.mxu0 0.0
    %1338 = vmatpush.msra.mxu0 0.0
    %1339 = vmatpush.msra.mxu0 0.0
    %1340 = vmatpush.msra.mxu0 0.0
    %1341 = vmatpush.msra.mxu0 0.0
    %1342 = vmatpush.msra.mxu0 0.0
    %1343 = vmatpush.msra.mxu0 0.0
    %1344 = vmatpush.msra.mxu0 0.0
    %1345 = vmatpush.msra.mxu0 0.0
    %1346 = vmatpush.msra.mxu0 0.0
    %1347 = vmatpush.msra.mxu0 %v405
    %1348 = vmatmul.f32.gmra.mxu0 %v1330
    %v1349 = vpop.f32.mrf.mxu0
    %v1350 = vadd.f32 0.0, %v1349
    %1351 = vdwg.mxu0
    %v1353 = vsel %vm443, %v1094, 0
    %1355 = vmatpush.msra.mxu0 0.0
    %1356 = vmatpush.msra.mxu0 0.0
    %1357 = vmatpush.msra.mxu0 0.0
    %1358 = vmatpush.msra.mxu0 0.0
    %1359 = vmatpush.msra.mxu0 0.0
    %1360 = vmatpush.msra.mxu0 0.0
    %1361 = vmatpush.msra.mxu0 0.0
    %1362 = vmatpush.msra.mxu0 0.0
    %1363 = vmatpush.msra.mxu0 0.0
    %1364 = vmatpush.msra.mxu0 0.0
    %1365 = vmatpush.msra.mxu0 0.0
    %1366 = vmatpush.msra.mxu0 0.0
    %1367 = vmatpush.msra.mxu0 0.0
    %1368 = vmatpush.msra.mxu0 0.0
    %1369 = vmatpush.msra.mxu0 0.0
    %1370 = vmatpush.msra.mxu0 %v408
    %1371 = vmatmul.f32.gmra.mxu0 %v1353
    %v1372 = vpop.f32.mrf.mxu0
    %v1373 = vadd.f32 0.0, %v1372
    %1374 = vdwg.mxu0
    %v1376 = vsel %vm443, %v1109, 0
    %1378 = vmatpush.msra.mxu0 0.0
    %1379 = vmatpush.msra.mxu0 0.0
    %1380 = vmatpush.msra.mxu0 0.0
    %1381 = vmatpush.msra.mxu0 0.0
    %1382 = vmatpush.msra.mxu0 0.0
    %1383 = vmatpush.msra.mxu0 0.0
    %1384 = vmatpush.msra.mxu0 0.0
    %1385 = vmatpush.msra.mxu0 0.0
    %1386 = vmatpush.msra.mxu0 0.0
    %1387 = vmatpush.msra.mxu0 0.0
    %1388 = vmatpush.msra.mxu0 0.0
    %1389 = vmatpush.msra.mxu0 0.0
    %1390 = vmatpush.msra.mxu0 0.0
    %1391 = vmatpush.msra.mxu0 0.0
    %1392 = vmatpush.msra.mxu0 0.0
    %1393 = vmatpush.msra.mxu0 %v411
    %1394 = vmatmul.f32.gmra.mxu0 %v1376
    %v1395 = vpop.f32.mrf.mxu0
    %v1396 = vadd.f32 0.0, %v1395
    %1397 = vdwg.mxu0
    %v1399 = vsel %vm443, %v1124, 0
    %1401 = vmatpush.msra.mxu0 0.0
    %1402 = vmatpush.msra.mxu0 0.0
    %1403 = vmatpush.msra.mxu0 0.0
    %1404 = vmatpush.msra.mxu0 0.0
    %1405 = vmatpush.msra.mxu0 0.0
    %1406 = vmatpush.msra.mxu0 0.0
    %1407 = vmatpush.msra.mxu0 0.0
    %1408 = vmatpush.msra.mxu0 0.0
    %1409 = vmatpush.msra.mxu0 0.0
    %1410 = vmatpush.msra.mxu0 0.0
    %1411 = vmatpush.msra.mxu0 0.0
    %1412 = vmatpush.msra.mxu0 0.0
    %1413 = vmatpush.msra.mxu0 0.0
    %1414 = vmatpush.msra.mxu0 0.0
    %1415 = vmatpush.msra.mxu0 0.0
    %1416 = vmatpush.msra.mxu0 %v414
    %1417 = vmatmul.f32.gmra.mxu0 %v1399
    %v1418 = vpop.f32.mrf.mxu0
    %v1419 = vadd.f32 0.0, %v1418
    %1420 = vdwg.mxu0
    %v1422 = vsel %vm443, %v1139, 0
    %1424 = vmatpush.msra.mxu0 0.0
    %1425 = vmatpush.msra.mxu0 0.0
    %1426 = vmatpush.msra.mxu0 0.0
    %1427 = vmatpush.msra.mxu0 0.0
    %1428 = vmatpush.msra.mxu0 0.0
    %1429 = vmatpush.msra.mxu0 0.0
    %1430 = vmatpush.msra.mxu0 0.0
    %1431 = vmatpush.msra.mxu0 0.0
    %1432 = vmatpush.msra.mxu0 0.0
    %1433 = vmatpush.msra.mxu0 0.0
    %1434 = vmatpush.msra.mxu0 0.0
    %1435 = vmatpush.msra.mxu0 0.0
    %1436 = vmatpush.msra.mxu0 0.0
    %1437 = vmatpush.msra.mxu0 0.0
    %1438 = vmatpush.msra.mxu0 0.0
    %1439 = vmatpush.msra.mxu0 %v417
    %1440 = vmatmul.f32.gmra.mxu0 %v1422
    %v1441 = vpop.f32.mrf.mxu0
    %v1442 = vadd.f32 0.0, %v1441
    %1443 = vdwg.mxu0
    %v1445 = vsel %vm443, %v1154, 0
    %1447 = vmatpush.msra.mxu0 0.0
    %1448 = vmatpush.msra.mxu0 0.0
    %1449 = vmatpush.msra.mxu0 0.0
    %1450 = vmatpush.msra.mxu0 0.0
    %1451 = vmatpush.msra.mxu0 0.0
    %1452 = vmatpush.msra.mxu0 0.0
    %1453 = vmatpush.msra.mxu0 0.0
    %1454 = vmatpush.msra.mxu0 0.0
    %1455 = vmatpush.msra.mxu0 0.0
    %1456 = vmatpush.msra.mxu0 0.0
    %1457 = vmatpush.msra.mxu0 0.0
    %1458 = vmatpush.msra.mxu0 0.0
    %1459 = vmatpush.msra.mxu0 0.0
    %1460 = vmatpush.msra.mxu0 0.0
    %1461 = vmatpush.msra.mxu0 0.0
    %1462 = vmatpush.msra.mxu0 %v420
    %1463 = vmatmul.f32.gmra.mxu0 %v1445
    %v1464 = vpop.f32.mrf.mxu0
    %v1465 = vadd.f32 0.0, %v1464
    %1466 = vdwg.mxu0
    %v1468 = vsel %vm443, %v1169, 0
    %1470 = vmatpush.msra.mxu0 0.0
    %1471 = vmatpush.msra.mxu0 0.0
    %1472 = vmatpush.msra.mxu0 0.0
    %1473 = vmatpush.msra.mxu0 0.0
    %1474 = vmatpush.msra.mxu0 0.0
    %1475 = vmatpush.msra.mxu0 0.0
    %1476 = vmatpush.msra.mxu0 0.0
    %1477 = vmatpush.msra.mxu0 0.0
    %1478 = vmatpush.msra.mxu0 0.0
    %1479 = vmatpush.msra.mxu0 0.0
    %1480 = vmatpush.msra.mxu0 0.0
    %1481 = vmatpush.msra.mxu0 0.0
    %1482 = vmatpush.msra.mxu0 0.0
    %1483 = vmatpush.msra.mxu0 0.0
    %1484 = vmatpush.msra.mxu0 0.0
    %1485 = vmatpush.msra.mxu0 %v423
    %1486 = vmatmul.f32.gmra.mxu0 %v1468
    %v1487 = vpop.f32.mrf.mxu0
    %v1488 = vadd.f32 0.0, %v1487
    %1489 = vdwg.mxu0
    %v1491 = vsel %vm443, %v1184, 0
    %1493 = vmatpush.msra.mxu0 0.0
    %1494 = vmatpush.msra.mxu0 0.0
    %1495 = vmatpush.msra.mxu0 0.0
    %1496 = vmatpush.msra.mxu0 0.0
    %1497 = vmatpush.msra.mxu0 0.0
    %1498 = vmatpush.msra.mxu0 0.0
    %1499 = vmatpush.msra.mxu0 0.0
    %1500 = vmatpush.msra.mxu0 0.0
    %1501 = vmatpush.msra.mxu0 0.0
    %1502 = vmatpush.msra.mxu0 0.0
    %1503 = vmatpush.msra.mxu0 0.0
    %1504 = vmatpush.msra.mxu0 0.0
    %1505 = vmatpush.msra.mxu0 0.0
    %1506 = vmatpush.msra.mxu0 0.0
    %1507 = vmatpush.msra.mxu0 0.0
    %1508 = vmatpush.msra.mxu0 %v426
    %1509 = vmatmul.f32.gmra.mxu0 %v1491
    %v1510 = vpop.f32.mrf.mxu0
    %v1511 = vadd.f32 0.0, %v1510
    %1512 = vdwg.mxu0
    %v1514 = vsel %vm443, %v1199, 0
    %1516 = vmatpush.msra.mxu0 0.0
    %1517 = vmatpush.msra.mxu0 0.0
    %1518 = vmatpush.msra.mxu0 0.0
    %1519 = vmatpush.msra.mxu0 0.0
    %1520 = vmatpush.msra.mxu0 0.0
    %1521 = vmatpush.msra.mxu0 0.0
    %1522 = vmatpush.msra.mxu0 0.0
    %1523 = vmatpush.msra.mxu0 0.0
    %1524 = vmatpush.msra.mxu0 0.0
    %1525 = vmatpush.msra.mxu0 0.0
    %1526 = vmatpush.msra.mxu0 0.0
    %1527 = vmatpush.msra.mxu0 0.0
    %1528 = vmatpush.msra.mxu0 0.0
    %1529 = vmatpush.msra.mxu0 0.0
    %1530 = vmatpush.msra.mxu0 0.0
    %1531 = vmatpush.msra.mxu0 %v429
    %1532 = vmatmul.f32.gmra.mxu0 %v1514
    %v1533 = vpop.f32.mrf.mxu0
    %v1534 = vadd.f32 0.0, %v1533
    %1535 = vdwg.mxu0
    %v1537 = vsel %vm443, %v1214, 0
    %1539 = vmatpush.msra.mxu0 0.0
    %1540 = vmatpush.msra.mxu0 0.0
    %1541 = vmatpush.msra.mxu0 0.0
    %1542 = vmatpush.msra.mxu0 0.0
    %1543 = vmatpush.msra.mxu0 0.0
    %1544 = vmatpush.msra.mxu0 0.0
    %1545 = vmatpush.msra.mxu0 0.0
    %1546 = vmatpush.msra.mxu0 0.0
    %1547 = vmatpush.msra.mxu0 0.0
    %1548 = vmatpush.msra.mxu0 0.0
    %1549 = vmatpush.msra.mxu0 0.0
    %1550 = vmatpush.msra.mxu0 0.0
    %1551 = vmatpush.msra.mxu0 0.0
    %1552 = vmatpush.msra.mxu0 0.0
    %1553 = vmatpush.msra.mxu0 0.0
    %1554 = vmatpush.msra.mxu0 %v432
    %1555 = vmatmul.f32.gmra.mxu0 %v1537
    %v1556 = vpop.f32.mrf.mxu0
    %v1557 = vadd.f32 0.0, %v1556
    %1558 = vdwg.mxu0
    %v1560 = vsel %vm443, %v1229, 0
    %1562 = vmatpush.msra.mxu0 0.0
    %1563 = vmatpush.msra.mxu0 0.0
    %1564 = vmatpush.msra.mxu0 0.0
    %1565 = vmatpush.msra.mxu0 0.0
    %1566 = vmatpush.msra.mxu0 0.0
    %1567 = vmatpush.msra.mxu0 0.0
    %1568 = vmatpush.msra.mxu0 0.0
    %1569 = vmatpush.msra.mxu0 0.0
    %1570 = vmatpush.msra.mxu0 0.0
    %1571 = vmatpush.msra.mxu0 0.0
    %1572 = vmatpush.msra.mxu0 0.0
    %1573 = vmatpush.msra.mxu0 0.0
    %1574 = vmatpush.msra.mxu0 0.0
    %1575 = vmatpush.msra.mxu0 0.0
    %1576 = vmatpush.msra.mxu0 0.0
    %1577 = vmatpush.msra.mxu0 %v435
    %1578 = vmatmul.f32.gmra.mxu0 %v1560
    %v1579 = vpop.f32.mrf.mxu0
    %v1580 = vadd.f32 0.0, %v1579
    %1581 = vdwg.mxu0
    %v1583 = vsel %vm443, %v1244, 0
    %1585 = vmatpush.msra.mxu0 0.0
    %1586 = vmatpush.msra.mxu0 0.0
    %1587 = vmatpush.msra.mxu0 0.0
    %1588 = vmatpush.msra.mxu0 0.0
    %1589 = vmatpush.msra.mxu0 0.0
    %1590 = vmatpush.msra.mxu0 0.0
    %1591 = vmatpush.msra.mxu0 0.0
    %1592 = vmatpush.msra.mxu0 0.0
    %1593 = vmatpush.msra.mxu0 0.0
    %1594 = vmatpush.msra.mxu0 0.0
    %1595 = vmatpush.msra.mxu0 0.0
    %1596 = vmatpush.msra.mxu0 0.0
    %1597 = vmatpush.msra.mxu0 0.0
    %1598 = vmatpush.msra.mxu0 0.0
    %1599 = vmatpush.msra.mxu0 0.0
    %1600 = vmatpush.msra.mxu0 %v438
    %1601 = vmatmul.f32.gmra.mxu0 %v1583
    %v1602 = vpop.f32.mrf.mxu0
    %v1603 = vadd.f32 0.0, %v1602
    %1604 = vdwg.mxu0
    %v1606 = vsel %vm443, %v1259, 0
    %1608 = vmatpush.msra.mxu0 0.0
    %1609 = vmatpush.msra.mxu0 0.0
    %1610 = vmatpush.msra.mxu0 0.0
    %1611 = vmatpush.msra.mxu0 0.0
    %1612 = vmatpush.msra.mxu0 0.0
    %1613 = vmatpush.msra.mxu0 0.0
    %1614 = vmatpush.msra.mxu0 0.0
    %1615 = vmatpush.msra.mxu0 0.0
    %1616 = vmatpush.msra.mxu0 0.0
    %1617 = vmatpush.msra.mxu0 0.0
    %1618 = vmatpush.msra.mxu0 0.0
    %1619 = vmatpush.msra.mxu0 0.0
    %1620 = vmatpush.msra.mxu0 0.0
    %1621 = vmatpush.msra.mxu0 0.0
    %1622 = vmatpush.msra.mxu0 0.0
    %1623 = vmatpush.msra.mxu0 %v441
    %1624 = vmatmul.f32.gmra.mxu0 %v1606
    %v1625 = vpop.f32.mrf.mxu0
    %v1626 = vadd.f32 0.0, %v1625
    %1627 = vdwg.mxu0
    %1628 = vst.msk [vmem:[#allocation2] sm:$0xff] %vm443, %v1281
    %1629 = vst.msk [vmem:[#allocation2 + $0x8] sm:$0xff] %vm443, %v1304
    %1630 = vst.msk [vmem:[#allocation2 + $0x10] sm:$0xff] %vm443, %v1327
    %1631 = vst.msk [vmem:[#allocation2 + $0x18] sm:$0xff] %vm443, %v1350
    %1632 = vst.msk [vmem:[#allocation2 + $0x20] sm:$0xff] %vm443, %v1373
    %1633 = vst.msk [vmem:[#allocation2 + $0x28] sm:$0xff] %vm443, %v1396
    %1634 = vst.msk [vmem:[#allocation2 + $0x30] sm:$0xff] %vm443, %v1419
    %1635 = vst.msk [vmem:[#allocation2 + $0x38] sm:$0xff] %vm443, %v1442
    %1636 = vst.msk [vmem:[#allocation2 + $0x40] sm:$0xff] %vm443, %v1465
    %1637 = vst.msk [vmem:[#allocation2 + $0x48] sm:$0xff] %vm443, %v1488
    %1638 = vst.msk [vmem:[#allocation2 + $0x50] sm:$0xff] %vm443, %v1511
    %1639 = vst.msk [vmem:[#allocation2 + $0x58] sm:$0xff] %vm443, %v1534
    %1640 = vst.msk [vmem:[#allocation2 + $0x60] sm:$0xff] %vm443, %v1557
    %1641 = vst.msk [vmem:[#allocation2 + $0x68] sm:$0xff] %vm443, %v1580
    %1642 = vst.msk [vmem:[#allocation2 + $0x70] sm:$0xff] %vm443, %v1603
    %1643 = vst.msk [vmem:[#allocation2 + $0x78] sm:$0xff] %vm443, %v1626
    %1644 = vrot.lane.b32.xlu0 %v150, 120
    %v1645 = vpop.permute.xlu0 %1644
    %1646 = vrot.lane.b32.xlu0 %v273, 120
    %v1647 = vpop.permute.xlu0 %1646
    %v1648 = vsel %vm443, %v1645, 0
    %v1650 = vsel %vm443, %v1647, 0
    %1652 = vmatpush.xpose.msra.mxu0 0.0
    %1653 = vmatpush.xpose.msra.mxu0 0.0
    %1654 = vmatpush.xpose.msra.mxu0 0.0
    %1655 = vmatpush.xpose.msra.mxu0 0.0
    %1656 = vmatpush.xpose.msra.mxu0 0.0
    %1657 = vmatpush.xpose.msra.mxu0 0.0
    %1658 = vmatpush.xpose.msra.mxu0 0.0
    %1659 = vmatpush.xpose.msra.mxu0 0.0
    %1660 = vmatpush.xpose.msra.mxu0 0.0
    %1661 = vmatpush.xpose.msra.mxu0 0.0
    %1662 = vmatpush.xpose.msra.mxu0 0.0
    %1663 = vmatpush.xpose.msra.mxu0 0.0
    %1664 = vmatpush.xpose.msra.mxu0 0.0
    %1665 = vmatpush.xpose.msra.mxu0 0.0
    %1666 = vmatpush.xpose.msra.mxu0 0.0
    %1667 = vmatpush.xpose.msra.mxu0 %v1650
    %1668 = vmatmul.f32.gmra.mxu0 %v1648
    %v1669 = vpop.f32.mrf.mxu0
    %v1670 = vadd.f32 0.0, %v1669
    %1671 = vdwg.mxu0
    %1672 = vrot.lane.b32.xlu0 %v153, 120
    %v1673 = vpop.permute.xlu0 %1672
    %1674 = vrot.lane.b32.xlu0 %v276, 120
    %v1675 = vpop.permute.xlu0 %1674
    %v1676 = vsel %vm443, %v1673, 0
    %v1678 = vsel %vm443, %v1675, 0
    %1680 = vmatpush.xpose.msra.mxu0 0.0
    %1681 = vmatpush.xpose.msra.mxu0 0.0
    %1682 = vmatpush.xpose.msra.mxu0 0.0
    %1683 = vmatpush.xpose.msra.mxu0 0.0
    %1684 = vmatpush.xpose.msra.mxu0 0.0
    %1685 = vmatpush.xpose.msra.mxu0 0.0
    %1686 = vmatpush.xpose.msra.mxu0 0.0
    %1687 = vmatpush.xpose.msra.mxu0 0.0
    %1688 = vmatpush.xpose.msra.mxu0 0.0
    %1689 = vmatpush.xpose.msra.mxu0 0.0
    %1690 = vmatpush.xpose.msra.mxu0 0.0
    %1691 = vmatpush.xpose.msra.mxu0 0.0
    %1692 = vmatpush.xpose.msra.mxu0 0.0
    %1693 = vmatpush.xpose.msra.mxu0 0.0
    %1694 = vmatpush.xpose.msra.mxu0 0.0
    %1695 = vmatpush.xpose.msra.mxu0 %v1678
    %1696 = vmatmul.f32.gmra.mxu0 %v1676
    %v1697 = vpop.f32.mrf.mxu0
    %v1698 = vadd.f32 0.0, %v1697
    %1699 = vdwg.mxu0
    %1700 = vrot.lane.b32.xlu0 %v156, 120
    %v1701 = vpop.permute.xlu0 %1700
    %1702 = vrot.lane.b32.xlu0 %v279, 120
    %v1703 = vpop.permute.xlu0 %1702
    %v1704 = vsel %vm443, %v1701, 0
    %v1706 = vsel %vm443, %v1703, 0
    %1708 = vmatpush.xpose.msra.mxu0 0.0
    %1709 = vmatpush.xpose.msra.mxu0 0.0
    %1710 = vmatpush.xpose.msra.mxu0 0.0
    %1711 = vmatpush.xpose.msra.mxu0 0.0
    %1712 = vmatpush.xpose.msra.mxu0 0.0
    %1713 = vmatpush.xpose.msra.mxu0 0.0
    %1714 = vmatpush.xpose.msra.mxu0 0.0
    %1715 = vmatpush.xpose.msra.mxu0 0.0
    %1716 = vmatpush.xpose.msra.mxu0 0.0
    %1717 = vmatpush.xpose.msra.mxu0 0.0
    %1718 = vmatpush.xpose.msra.mxu0 0.0
    %1719 = vmatpush.xpose.msra.mxu0 0.0
    %1720 = vmatpush.xpose.msra.mxu0 0.0
    %1721 = vmatpush.xpose.msra.mxu0 0.0
    %1722 = vmatpush.xpose.msra.mxu0 0.0
    %1723 = vmatpush.xpose.msra.mxu0 %v1706
    %1724 = vmatmul.f32.gmra.mxu0 %v1704
    %v1725 = vpop.f32.mrf.mxu0
    %v1726 = vadd.f32 0.0, %v1725
    %1727 = vdwg.mxu0
    %1728 = vrot.lane.b32.xlu0 %v159, 120
    %v1729 = vpop.permute.xlu0 %1728
    %1730 = vrot.lane.b32.xlu0 %v282, 120
    %v1731 = vpop.permute.xlu0 %1730
    %v1732 = vsel %vm443, %v1729, 0
    %v1734 = vsel %vm443, %v1731, 0
    %1736 = vmatpush.xpose.msra.mxu0 0.0
    %1737 = vmatpush.xpose.msra.mxu0 0.0
    %1738 = vmatpush.xpose.msra.mxu0 0.0
    %1739 = vmatpush.xpose.msra.mxu0 0.0
    %1740 = vmatpush.xpose.msra.mxu0 0.0
    %1741 = vmatpush.xpose.msra.mxu0 0.0
    %1742 = vmatpush.xpose.msra.mxu0 0.0
    %1743 = vmatpush.xpose.msra.mxu0 0.0
    %1744 = vmatpush.xpose.msra.mxu0 0.0
    %1745 = vmatpush.xpose.msra.mxu0 0.0
    %1746 = vmatpush.xpose.msra.mxu0 0.0
    %1747 = vmatpush.xpose.msra.mxu0 0.0
    %1748 = vmatpush.xpose.msra.mxu0 0.0
    %1749 = vmatpush.xpose.msra.mxu0 0.0
    %1750 = vmatpush.xpose.msra.mxu0 0.0
    %1751 = vmatpush.xpose.msra.mxu0 %v1734
    %1752 = vmatmul.f32.gmra.mxu0 %v1732
    %v1753 = vpop.f32.mrf.mxu0
    %v1754 = vadd.f32 0.0, %v1753
    %1755 = vdwg.mxu0
    %1756 = vrot.lane.b32.xlu0 %v162, 120
    %v1757 = vpop.permute.xlu0 %1756
    %1758 = vrot.lane.b32.xlu0 %v285, 120
    %v1759 = vpop.permute.xlu0 %1758
    %v1760 = vsel %vm443, %v1757, 0
    %v1762 = vsel %vm443, %v1759, 0
    %1764 = vmatpush.xpose.msra.mxu0 0.0
    %1765 = vmatpush.xpose.msra.mxu0 0.0
    %1766 = vmatpush.xpose.msra.mxu0 0.0
    %1767 = vmatpush.xpose.msra.mxu0 0.0
    %1768 = vmatpush.xpose.msra.mxu0 0.0
    %1769 = vmatpush.xpose.msra.mxu0 0.0
    %1770 = vmatpush.xpose.msra.mxu0 0.0
    %1771 = vmatpush.xpose.msra.mxu0 0.0
    %1772 = vmatpush.xpose.msra.mxu0 0.0
    %1773 = vmatpush.xpose.msra.mxu0 0.0
    %1774 = vmatpush.xpose.msra.mxu0 0.0
    %1775 = vmatpush.xpose.msra.mxu0 0.0
    %1776 = vmatpush.xpose.msra.mxu0 0.0
    %1777 = vmatpush.xpose.msra.mxu0 0.0
    %1778 = vmatpush.xpose.msra.mxu0 0.0
    %1779 = vmatpush.xpose.msra.mxu0 %v1762
    %1780 = vmatmul.f32.gmra.mxu0 %v1760
    %v1781 = vpop.f32.mrf.mxu0
    %v1782 = vadd.f32 0.0, %v1781
    %1783 = vdwg.mxu0
    %1784 = vrot.lane.b32.xlu0 %v165, 120
    %v1785 = vpop.permute.xlu0 %1784
    %1786 = vrot.lane.b32.xlu0 %v288, 120
    %v1787 = vpop.permute.xlu0 %1786
    %v1788 = vsel %vm443, %v1785, 0
    %v1790 = vsel %vm443, %v1787, 0
    %1792 = vmatpush.xpose.msra.mxu0 0.0
    %1793 = vmatpush.xpose.msra.mxu0 0.0
    %1794 = vmatpush.xpose.msra.mxu0 0.0
    %1795 = vmatpush.xpose.msra.mxu0 0.0
    %1796 = vmatpush.xpose.msra.mxu0 0.0
    %1797 = vmatpush.xpose.msra.mxu0 0.0
    %1798 = vmatpush.xpose.msra.mxu0 0.0
    %1799 = vmatpush.xpose.msra.mxu0 0.0
    %1800 = vmatpush.xpose.msra.mxu0 0.0
    %1801 = vmatpush.xpose.msra.mxu0 0.0
    %1802 = vmatpush.xpose.msra.mxu0 0.0
    %1803 = vmatpush.xpose.msra.mxu0 0.0
    %1804 = vmatpush.xpose.msra.mxu0 0.0
    %1805 = vmatpush.xpose.msra.mxu0 0.0
    %1806 = vmatpush.xpose.msra.mxu0 0.0
    %1807 = vmatpush.xpose.msra.mxu0 %v1790
    %1808 = vmatmul.f32.gmra.mxu0 %v1788
    %v1809 = vpop.f32.mrf.mxu0
    %v1810 = vadd.f32 0.0, %v1809
    %1811 = vdwg.mxu0
    %1812 = vrot.lane.b32.xlu0 %v168, 120
    %v1813 = vpop.permute.xlu0 %1812
    %1814 = vrot.lane.b32.xlu0 %v291, 120
    %v1815 = vpop.permute.xlu0 %1814
    %v1816 = vsel %vm443, %v1813, 0
    %v1818 = vsel %vm443, %v1815, 0
    %1820 = vmatpush.xpose.msra.mxu0 0.0
    %1821 = vmatpush.xpose.msra.mxu0 0.0
    %1822 = vmatpush.xpose.msra.mxu0 0.0
    %1823 = vmatpush.xpose.msra.mxu0 0.0
    %1824 = vmatpush.xpose.msra.mxu0 0.0
    %1825 = vmatpush.xpose.msra.mxu0 0.0
    %1826 = vmatpush.xpose.msra.mxu0 0.0
    %1827 = vmatpush.xpose.msra.mxu0 0.0
    %1828 = vmatpush.xpose.msra.mxu0 0.0
    %1829 = vmatpush.xpose.msra.mxu0 0.0
    %1830 = vmatpush.xpose.msra.mxu0 0.0
    %1831 = vmatpush.xpose.msra.mxu0 0.0
    %1832 = vmatpush.xpose.msra.mxu0 0.0
    %1833 = vmatpush.xpose.msra.mxu0 0.0
    %1834 = vmatpush.xpose.msra.mxu0 0.0
    %1835 = vmatpush.xpose.msra.mxu0 %v1818
    %1836 = vmatmul.f32.gmra.mxu0 %v1816
    %v1837 = vpop.f32.mrf.mxu0
    %v1838 = vadd.f32 0.0, %v1837
    %1839 = vdwg.mxu0
    %1840 = vrot.lane.b32.xlu0 %v171, 120
    %v1841 = vpop.permute.xlu0 %1840
    %1842 = vrot.lane.b32.xlu0 %v294, 120
    %v1843 = vpop.permute.xlu0 %1842
    %v1844 = vsel %vm443, %v1841, 0
    %v1846 = vsel %vm443, %v1843, 0
    %1848 = vmatpush.xpose.msra.mxu0 0.0
    %1849 = vmatpush.xpose.msra.mxu0 0.0
    %1850 = vmatpush.xpose.msra.mxu0 0.0
    %1851 = vmatpush.xpose.msra.mxu0 0.0
    %1852 = vmatpush.xpose.msra.mxu0 0.0
    %1853 = vmatpush.xpose.msra.mxu0 0.0
    %1854 = vmatpush.xpose.msra.mxu0 0.0
    %1855 = vmatpush.xpose.msra.mxu0 0.0
    %1856 = vmatpush.xpose.msra.mxu0 0.0
    %1857 = vmatpush.xpose.msra.mxu0 0.0
    %1858 = vmatpush.xpose.msra.mxu0 0.0
    %1859 = vmatpush.xpose.msra.mxu0 0.0
    %1860 = vmatpush.xpose.msra.mxu0 0.0
    %1861 = vmatpush.xpose.msra.mxu0 0.0
    %1862 = vmatpush.xpose.msra.mxu0 0.0
    %1863 = vmatpush.xpose.msra.mxu0 %v1846
    %1864 = vmatmul.f32.gmra.mxu0 %v1844
    %v1865 = vpop.f32.mrf.mxu0
    %v1866 = vadd.f32 0.0, %v1865
    %1867 = vdwg.mxu0
    %1868 = vrot.lane.b32.xlu0 %v174, 120
    %v1869 = vpop.permute.xlu0 %1868
    %1870 = vrot.lane.b32.xlu0 %v297, 120
    %v1871 = vpop.permute.xlu0 %1870
    %v1872 = vsel %vm443, %v1869, 0
    %v1874 = vsel %vm443, %v1871, 0
    %1876 = vmatpush.xpose.msra.mxu0 0.0
    %1877 = vmatpush.xpose.msra.mxu0 0.0
    %1878 = vmatpush.xpose.msra.mxu0 0.0
    %1879 = vmatpush.xpose.msra.mxu0 0.0
    %1880 = vmatpush.xpose.msra.mxu0 0.0
    %1881 = vmatpush.xpose.msra.mxu0 0.0
    %1882 = vmatpush.xpose.msra.mxu0 0.0
    %1883 = vmatpush.xpose.msra.mxu0 0.0
    %1884 = vmatpush.xpose.msra.mxu0 0.0
    %1885 = vmatpush.xpose.msra.mxu0 0.0
    %1886 = vmatpush.xpose.msra.mxu0 0.0
    %1887 = vmatpush.xpose.msra.mxu0 0.0
    %1888 = vmatpush.xpose.msra.mxu0 0.0
    %1889 = vmatpush.xpose.msra.mxu0 0.0
    %1890 = vmatpush.xpose.msra.mxu0 0.0
    %1891 = vmatpush.xpose.msra.mxu0 %v1874
    %1892 = vmatmul.f32.gmra.mxu0 %v1872
    %v1893 = vpop.f32.mrf.mxu0
    %v1894 = vadd.f32 0.0, %v1893
    %1895 = vdwg.mxu0
    %1896 = vrot.lane.b32.xlu0 %v177, 120
    %v1897 = vpop.permute.xlu0 %1896
    %1898 = vrot.lane.b32.xlu0 %v300, 120
    %v1899 = vpop.permute.xlu0 %1898
    %v1900 = vsel %vm443, %v1897, 0
    %v1902 = vsel %vm443, %v1899, 0
    %1904 = vmatpush.xpose.msra.mxu0 0.0
    %1905 = vmatpush.xpose.msra.mxu0 0.0
    %1906 = vmatpush.xpose.msra.mxu0 0.0
    %1907 = vmatpush.xpose.msra.mxu0 0.0
    %1908 = vmatpush.xpose.msra.mxu0 0.0
    %1909 = vmatpush.xpose.msra.mxu0 0.0
    %1910 = vmatpush.xpose.msra.mxu0 0.0
    %1911 = vmatpush.xpose.msra.mxu0 0.0
    %1912 = vmatpush.xpose.msra.mxu0 0.0
    %1913 = vmatpush.xpose.msra.mxu0 0.0
    %1914 = vmatpush.xpose.msra.mxu0 0.0
    %1915 = vmatpush.xpose.msra.mxu0 0.0
    %1916 = vmatpush.xpose.msra.mxu0 0.0
    %1917 = vmatpush.xpose.msra.mxu0 0.0
    %1918 = vmatpush.xpose.msra.mxu0 0.0
    %1919 = vmatpush.xpose.msra.mxu0 %v1902
    %1920 = vmatmul.f32.gmra.mxu0 %v1900
    %v1921 = vpop.f32.mrf.mxu0
    %v1922 = vadd.f32 0.0, %v1921
    %1923 = vdwg.mxu0
    %1924 = vrot.lane.b32.xlu0 %v180, 120
    %v1925 = vpop.permute.xlu0 %1924
    %1926 = vrot.lane.b32.xlu0 %v303, 120
    %v1927 = vpop.permute.xlu0 %1926
    %v1928 = vsel %vm443, %v1925, 0
    %v1930 = vsel %vm443, %v1927, 0
    %1932 = vmatpush.xpose.msra.mxu0 0.0
    %1933 = vmatpush.xpose.msra.mxu0 0.0
    %1934 = vmatpush.xpose.msra.mxu0 0.0
    %1935 = vmatpush.xpose.msra.mxu0 0.0
    %1936 = vmatpush.xpose.msra.mxu0 0.0
    %1937 = vmatpush.xpose.msra.mxu0 0.0
    %1938 = vmatpush.xpose.msra.mxu0 0.0
    %1939 = vmatpush.xpose.msra.mxu0 0.0
    %1940 = vmatpush.xpose.msra.mxu0 0.0
    %1941 = vmatpush.xpose.msra.mxu0 0.0
    %1942 = vmatpush.xpose.msra.mxu0 0.0
    %1943 = vmatpush.xpose.msra.mxu0 0.0
    %1944 = vmatpush.xpose.msra.mxu0 0.0
    %1945 = vmatpush.xpose.msra.mxu0 0.0
    %1946 = vmatpush.xpose.msra.mxu0 0.0
    %1947 = vmatpush.xpose.msra.mxu0 %v1930
    %1948 = vmatmul.f32.gmra.mxu0 %v1928
    %v1949 = vpop.f32.mrf.mxu0
    %v1950 = vadd.f32 0.0, %v1949
    %1951 = vdwg.mxu0
    %1952 = vrot.lane.b32.xlu0 %v183, 120
    %v1953 = vpop.permute.xlu0 %1952
    %1954 = vrot.lane.b32.xlu0 %v306, 120
    %v1955 = vpop.permute.xlu0 %1954
    %v1956 = vsel %vm443, %v1953, 0
    %v1958 = vsel %vm443, %v1955, 0
    %1960 = vmatpush.xpose.msra.mxu0 0.0
    %1961 = vmatpush.xpose.msra.mxu0 0.0
    %1962 = vmatpush.xpose.msra.mxu0 0.0
    %1963 = vmatpush.xpose.msra.mxu0 0.0
    %1964 = vmatpush.xpose.msra.mxu0 0.0
    %1965 = vmatpush.xpose.msra.mxu0 0.0
    %1966 = vmatpush.xpose.msra.mxu0 0.0
    %1967 = vmatpush.xpose.msra.mxu0 0.0
    %1968 = vmatpush.xpose.msra.mxu0 0.0
    %1969 = vmatpush.xpose.msra.mxu0 0.0
    %1970 = vmatpush.xpose.msra.mxu0 0.0
    %1971 = vmatpush.xpose.msra.mxu0 0.0
    %1972 = vmatpush.xpose.msra.mxu0 0.0
    %1973 = vmatpush.xpose.msra.mxu0 0.0
    %1974 = vmatpush.xpose.msra.mxu0 0.0
    %1975 = vmatpush.xpose.msra.mxu0 %v1958
    %1976 = vmatmul.f32.gmra.mxu0 %v1956
    %v1977 = vpop.f32.mrf.mxu0
    %v1978 = vadd.f32 0.0, %v1977
    %1979 = vdwg.mxu0
    %1980 = vrot.lane.b32.xlu0 %v186, 120
    %v1981 = vpop.permute.xlu0 %1980
    %1982 = vrot.lane.b32.xlu0 %v309, 120
    %v1983 = vpop.permute.xlu0 %1982
    %v1984 = vsel %vm443, %v1981, 0
    %v1986 = vsel %vm443, %v1983, 0
    %1988 = vmatpush.xpose.msra.mxu0 0.0
    %1989 = vmatpush.xpose.msra.mxu0 0.0
    %1990 = vmatpush.xpose.msra.mxu0 0.0
    %1991 = vmatpush.xpose.msra.mxu0 0.0
    %1992 = vmatpush.xpose.msra.mxu0 0.0
    %1993 = vmatpush.xpose.msra.mxu0 0.0
    %1994 = vmatpush.xpose.msra.mxu0 0.0
    %1995 = vmatpush.xpose.msra.mxu0 0.0
    %1996 = vmatpush.xpose.msra.mxu0 0.0
    %1997 = vmatpush.xpose.msra.mxu0 0.0
    %1998 = vmatpush.xpose.msra.mxu0 0.0
    %1999 = vmatpush.xpose.msra.mxu0 0.0
    %2000 = vmatpush.xpose.msra.mxu0 0.0
    %2001 = vmatpush.xpose.msra.mxu0 0.0
    %2002 = vmatpush.xpose.msra.mxu0 0.0
    %2003 = vmatpush.xpose.msra.mxu0 %v1986
    %2004 = vmatmul.f32.gmra.mxu0 %v1984
    %v2005 = vpop.f32.mrf.mxu0
    %v2006 = vadd.f32 0.0, %v2005
    %2007 = vdwg.mxu0
    %2008 = vrot.lane.b32.xlu0 %v189, 120
    %v2009 = vpop.permute.xlu0 %2008
    %2010 = vrot.lane.b32.xlu0 %v312, 120
    %v2011 = vpop.permute.xlu0 %2010
    %v2012 = vsel %vm443, %v2009, 0
    %v2014 = vsel %vm443, %v2011, 0
    %2016 = vmatpush.xpose.msra.mxu0 0.0
    %2017 = vmatpush.xpose.msra.mxu0 0.0
    %2018 = vmatpush.xpose.msra.mxu0 0.0
    %2019 = vmatpush.xpose.msra.mxu0 0.0
    %2020 = vmatpush.xpose.msra.mxu0 0.0
    %2021 = vmatpush.xpose.msra.mxu0 0.0
    %2022 = vmatpush.xpose.msra.mxu0 0.0
    %2023 = vmatpush.xpose.msra.mxu0 0.0
    %2024 = vmatpush.xpose.msra.mxu0 0.0
    %2025 = vmatpush.xpose.msra.mxu0 0.0
    %2026 = vmatpush.xpose.msra.mxu0 0.0
    %2027 = vmatpush.xpose.msra.mxu0 0.0
    %2028 = vmatpush.xpose.msra.mxu0 0.0
    %2029 = vmatpush.xpose.msra.mxu0 0.0
    %2030 = vmatpush.xpose.msra.mxu0 0.0
    %2031 = vmatpush.xpose.msra.mxu0 %v2014
    %2032 = vmatmul.f32.gmra.mxu0 %v2012
    %v2033 = vpop.f32.mrf.mxu0
    %v2034 = vadd.f32 0.0, %v2033
    %2035 = vdwg.mxu0
    %2036 = vrot.lane.b32.xlu0 %v192, 120
    %v2037 = vpop.permute.xlu0 %2036
    %2038 = vrot.lane.b32.xlu0 %v315, 120
    %v2039 = vpop.permute.xlu0 %2038
    %v2040 = vsel %vm443, %v2037, 0
    %v2042 = vsel %vm443, %v2039, 0
    %2044 = vmatpush.xpose.msra.mxu0 0.0
    %2045 = vmatpush.xpose.msra.mxu0 0.0
    %2046 = vmatpush.xpose.msra.mxu0 0.0
    %2047 = vmatpush.xpose.msra.mxu0 0.0
    %2048 = vmatpush.xpose.msra.mxu0 0.0
    %2049 = vmatpush.xpose.msra.mxu0 0.0
    %2050 = vmatpush.xpose.msra.mxu0 0.0
    %2051 = vmatpush.xpose.msra.mxu0 0.0
    %2052 = vmatpush.xpose.msra.mxu0 0.0
    %2053 = vmatpush.xpose.msra.mxu0 0.0
    %2054 = vmatpush.xpose.msra.mxu0 0.0
    %2055 = vmatpush.xpose.msra.mxu0 0.0
    %2056 = vmatpush.xpose.msra.mxu0 0.0
    %2057 = vmatpush.xpose.msra.mxu0 0.0
    %2058 = vmatpush.xpose.msra.mxu0 0.0
    %2059 = vmatpush.xpose.msra.mxu0 %v2042
    %2060 = vmatmul.f32.gmra.mxu0 %v2040
    %v2061 = vpop.f32.mrf.mxu0
    %v2062 = vadd.f32 0.0, %v2061
    %2063 = vdwg.mxu0
    %2064 = vrot.lane.b32.xlu0 %v195, 120
    %v2065 = vpop.permute.xlu0 %2064
    %2066 = vrot.lane.b32.xlu0 %v318, 120
    %v2067 = vpop.permute.xlu0 %2066
    %v2068 = vsel %vm443, %v2065, 0
    %v2070 = vsel %vm443, %v2067, 0
    %2072 = vmatpush.xpose.msra.mxu0 0.0
    %2073 = vmatpush.xpose.msra.mxu0 0.0
    %2074 = vmatpush.xpose.msra.mxu0 0.0
    %2075 = vmatpush.xpose.msra.mxu0 0.0
    %2076 = vmatpush.xpose.msra.mxu0 0.0
    %2077 = vmatpush.xpose.msra.mxu0 0.0
    %2078 = vmatpush.xpose.msra.mxu0 0.0
    %2079 = vmatpush.xpose.msra.mxu0 0.0
    %2080 = vmatpush.xpose.msra.mxu0 0.0
    %2081 = vmatpush.xpose.msra.mxu0 0.0
    %2082 = vmatpush.xpose.msra.mxu0 0.0
    %2083 = vmatpush.xpose.msra.mxu0 0.0
    %2084 = vmatpush.xpose.msra.mxu0 0.0
    %2085 = vmatpush.xpose.msra.mxu0 0.0
    %2086 = vmatpush.xpose.msra.mxu0 0.0
    %2087 = vmatpush.xpose.msra.mxu0 %v2070
    %2088 = vmatmul.f32.gmra.mxu0 %v2068
    %v2089 = vpop.f32.mrf.mxu0
    %v2090 = vadd.f32 0.0, %v2089
    %2091 = vdwg.mxu0
    %v2092 = vmul.f32 %v1670, 0.35355338
    %v2093 = vmul.f32 %v1698, 0.35355338
    %v2094 = vmul.f32 %v1726, 0.35355338
    %v2095 = vmul.f32 %v1754, 0.35355338
    %v2096 = vmul.f32 %v1782, 0.35355338
    %v2097 = vmul.f32 %v1810, 0.35355338
    %v2098 = vmul.f32 %v1838, 0.35355338
    %v2099 = vmul.f32 %v1866, 0.35355338
    %v2100 = vmul.f32 %v1894, 0.35355338
    %v2101 = vmul.f32 %v1922, 0.35355338
    %v2102 = vmul.f32 %v1950, 0.35355338
    %v2103 = vmul.f32 %v1978, 0.35355338
    %v2104 = vmul.f32 %v2006, 0.35355338
    %v2105 = vmul.f32 %v2034, 0.35355338
    %v2106 = vmul.f32 %v2062, 0.35355338
    %v2107 = vmul.f32 %v2090, 0.35355338
    %v2108 = vsel %vm443, %v2092, -inf
    %2109 = vmax.xlane.f32.xlu0 %v2108
    %v2110 = vpop.xlane.xlu0 %2109
    %v2111 = vsel %vm443, %v2093, -inf
    %2112 = vmax.xlane.f32.xlu0 %v2111
    %v2113 = vpop.xlane.xlu0 %2112
    %v2114 = vsel %vm443, %v2094, -inf
    %2115 = vmax.xlane.f32.xlu0 %v2114
    %v2116 = vpop.xlane.xlu0 %2115
    %v2117 = vsel %vm443, %v2095, -inf
    %2118 = vmax.xlane.f32.xlu0 %v2117
    %v2119 = vpop.xlane.xlu0 %2118
    %v2120 = vsel %vm443, %v2096, -inf
    %2121 = vmax.xlane.f32.xlu0 %v2120
    %v2122 = vpop.xlane.xlu0 %2121
    %v2123 = vsel %vm443, %v2097, -inf
    %2124 = vmax.xlane.f32.xlu0 %v2123
    %v2125 = vpop.xlane.xlu0 %2124
    %v2126 = vsel %vm443, %v2098, -inf
    %2127 = vmax.xlane.f32.xlu0 %v2126
    %v2128 = vpop.xlane.xlu0 %2127
    %v2129 = vsel %vm443, %v2099, -inf
    %2130 = vmax.xlane.f32.xlu0 %v2129
    %v2131 = vpop.xlane.xlu0 %2130
    %v2132 = vsel %vm443, %v2100, -inf
    %2133 = vmax.xlane.f32.xlu0 %v2132
    %v2134 = vpop.xlane.xlu0 %2133
    %v2135 = vsel %vm443, %v2101, -inf
    %2136 = vmax.xlane.f32.xlu0 %v2135
    %v2137 = vpop.xlane.xlu0 %2136
    %v2138 = vsel %vm443, %v2102, -inf
    %2139 = vmax.xlane.f32.xlu0 %v2138
    %v2140 = vpop.xlane.xlu0 %2139
    %v2141 = vsel %vm443, %v2103, -inf
    %2142 = vmax.xlane.f32.xlu0 %v2141
    %v2143 = vpop.xlane.xlu0 %2142
    %v2144 = vsel %vm443, %v2104, -inf
    %2145 = vmax.xlane.f32.xlu0 %v2144
    %v2146 = vpop.xlane.xlu0 %2145
    %v2147 = vsel %vm443, %v2105, -inf
    %2148 = vmax.xlane.f32.xlu0 %v2147
    %v2149 = vpop.xlane.xlu0 %2148
    %v2150 = vsel %vm443, %v2106, -inf
    %2151 = vmax.xlane.f32.xlu0 %v2150
    %v2152 = vpop.xlane.xlu0 %2151
    %v2153 = vsel %vm443, %v2107, -inf
    %2154 = vmax.xlane.f32.xlu0 %v2153
    %v2155 = vpop.xlane.xlu0 %2154
    %v2156 = vsub.f32 %v2092, %v2110
    %v2157 = vsub.f32 %v2093, %v2113
    %v2158 = vsub.f32 %v2094, %v2116
    %v2159 = vsub.f32 %v2095, %v2119
    %v2160 = vsub.f32 %v2096, %v2122
    %v2161 = vsub.f32 %v2097, %v2125
    %v2162 = vsub.f32 %v2098, %v2128
    %v2163 = vsub.f32 %v2099, %v2131
    %v2164 = vsub.f32 %v2100, %v2134
    %v2165 = vsub.f32 %v2101, %v2137
    %v2166 = vsub.f32 %v2102, %v2140
    %v2167 = vsub.f32 %v2103, %v2143
    %v2168 = vsub.f32 %v2104, %v2146
    %v2169 = vsub.f32 %v2105, %v2149
    %v2170 = vsub.f32 %v2106, %v2152
    %v2171 = vsub.f32 %v2107, %v2155
    %v2172 = vmul.f32 %v2156, 1.442695
    %v2173 = vpow.pop %v2172
    %v2174 = vmul.f32 %v2157, 1.442695
    %v2175 = vpow.pop %v2174
    %v2176 = vmul.f32 %v2158, 1.442695
    %v2177 = vpow.pop %v2176
    %v2178 = vmul.f32 %v2159, 1.442695
    %v2179 = vpow.pop %v2178
    %v2180 = vmul.f32 %v2160, 1.442695
    %v2181 = vpow.pop %v2180
    %v2182 = vmul.f32 %v2161, 1.442695
    %v2183 = vpow.pop %v2182
    %v2184 = vmul.f32 %v2162, 1.442695
    %v2185 = vpow.pop %v2184
    %v2186 = vmul.f32 %v2163, 1.442695
    %v2187 = vpow.pop %v2186
    %v2188 = vmul.f32 %v2164, 1.442695
    %v2189 = vpow.pop %v2188
    %v2190 = vmul.f32 %v2165, 1.442695
    %v2191 = vpow.pop %v2190
    %v2192 = vmul.f32 %v2166, 1.442695
    %v2193 = vpow.pop %v2192
    %v2194 = vmul.f32 %v2167, 1.442695
    %v2195 = vpow.pop %v2194
    %v2196 = vmul.f32 %v2168, 1.442695
    %v2197 = vpow.pop %v2196
    %v2198 = vmul.f32 %v2169, 1.442695
    %v2199 = vpow.pop %v2198
    %v2200 = vmul.f32 %v2170, 1.442695
    %v2201 = vpow.pop %v2200
    %v2202 = vmul.f32 %v2171, 1.442695
    %v2203 = vpow.pop %v2202
    %v2204 = vsel %vm443, %v2173, 0.0
    %2205 = vadd.xlane.f32.xlu0 %v2204
    %v2206 = vpop.xlane.xlu0 %2205
    %v2207 = vsel %vm443, %v2175, 0.0
    %2208 = vadd.xlane.f32.xlu0 %v2207
    %v2209 = vpop.xlane.xlu0 %2208
    %v2210 = vsel %vm443, %v2177, 0.0
    %2211 = vadd.xlane.f32.xlu0 %v2210
    %v2212 = vpop.xlane.xlu0 %2211
    %v2213 = vsel %vm443, %v2179, 0.0
    %2214 = vadd.xlane.f32.xlu0 %v2213
    %v2215 = vpop.xlane.xlu0 %2214
    %v2216 = vsel %vm443, %v2181, 0.0
    %2217 = vadd.xlane.f32.xlu0 %v2216
    %v2218 = vpop.xlane.xlu0 %2217
    %v2219 = vsel %vm443, %v2183, 0.0
    %2220 = vadd.xlane.f32.xlu0 %v2219
    %v2221 = vpop.xlane.xlu0 %2220
    %v2222 = vsel %vm443, %v2185, 0.0
    %2223 = vadd.xlane.f32.xlu0 %v2222
    %v2224 = vpop.xlane.xlu0 %2223
    %v2225 = vsel %vm443, %v2187, 0.0
    %2226 = vadd.xlane.f32.xlu0 %v2225
    %v2227 = vpop.xlane.xlu0 %2226
    %v2228 = vsel %vm443, %v2189, 0.0
    %2229 = vadd.xlane.f32.xlu0 %v2228
    %v2230 = vpop.xlane.xlu0 %2229
    %v2231 = vsel %vm443, %v2191, 0.0
    %2232 = vadd.xlane.f32.xlu0 %v2231
    %v2233 = vpop.xlane.xlu0 %2232
    %v2234 = vsel %vm443, %v2193, 0.0
    %2235 = vadd.xlane.f32.xlu0 %v2234
    %v2236 = vpop.xlane.xlu0 %2235
    %v2237 = vsel %vm443, %v2195, 0.0
    %2238 = vadd.xlane.f32.xlu0 %v2237
    %v2239 = vpop.xlane.xlu0 %2238
    %v2240 = vsel %vm443, %v2197, 0.0
    %2241 = vadd.xlane.f32.xlu0 %v2240
    %v2242 = vpop.xlane.xlu0 %2241
    %v2243 = vsel %vm443, %v2199, 0.0
    %2244 = vadd.xlane.f32.xlu0 %v2243
    %v2245 = vpop.xlane.xlu0 %2244
    %v2246 = vsel %vm443, %v2201, 0.0
    %2247 = vadd.xlane.f32.xlu0 %v2246
    %v2248 = vpop.xlane.xlu0 %2247
    %v2249 = vsel %vm443, %v2203, 0.0
    %2250 = vadd.xlane.f32.xlu0 %v2249
    %v2251 = vpop.xlane.xlu0 %2250
    %v2252 = vrcp.pop %v2206
    %v2253 = vmul.f32 %v2206, %v2252
    %v2254 = vsub.f32 1.0, %v2253
    %v2255 = vmul.f32 %v2252, %v2254
    %v2256 = vadd.f32 %v2252, %v2255
    %vm2257 = vweird.f32 %v2206
    %vm2258 = vweird.f32 %v2252
    %vm2259 = vmor %vm2257, %vm2258
    %v2260 = vsel %vm2259, %v2252, %v2256
    %v2261 = vand.u32 2147483647, %v2206
    %vm2262 = vcmp.eq.f32.partialorder %v2261, 8.507059e+37
    %v2263 = vand.u32 %v2206, 2147483648
    %v2264 = vor.u32 1.1754944e-38, %v2263
    %v2265 = vsel %vm2262, %v2264, %v2260
    %v2266 = vmul.f32 %v2173, %v2265
    %v2267 = vrcp.pop %v2209
    %v2268 = vmul.f32 %v2209, %v2267
    %v2269 = vsub.f32 1.0, %v2268
    %v2270 = vmul.f32 %v2267, %v2269
    %v2271 = vadd.f32 %v2267, %v2270
    %vm2272 = vweird.f32 %v2209
    %vm2273 = vweird.f32 %v2267
    %vm2274 = vmor %vm2272, %vm2273
    %v2275 = vsel %vm2274, %v2267, %v2271
    %v2276 = vand.u32 2147483647, %v2209
    %vm2277 = vcmp.eq.f32.partialorder %v2276, 8.507059e+37
    %v2278 = vand.u32 %v2209, 2147483648
    %v2279 = vor.u32 1.1754944e-38, %v2278
    %v2280 = vsel %vm2277, %v2279, %v2275
    %v2281 = vmul.f32 %v2175, %v2280
    %v2282 = vrcp.pop %v2212
    %v2283 = vmul.f32 %v2212, %v2282
    %v2284 = vsub.f32 1.0, %v2283
    %v2285 = vmul.f32 %v2282, %v2284
    %v2286 = vadd.f32 %v2282, %v2285
    %vm2287 = vweird.f32 %v2212
    %vm2288 = vweird.f32 %v2282
    %vm2289 = vmor %vm2287, %vm2288
    %v2290 = vsel %vm2289, %v2282, %v2286
    %v2291 = vand.u32 2147483647, %v2212
    %vm2292 = vcmp.eq.f32.partialorder %v2291, 8.507059e+37
    %v2293 = vand.u32 %v2212, 2147483648
    %v2294 = vor.u32 1.1754944e-38, %v2293
    %v2295 = vsel %vm2292, %v2294, %v2290
    %v2296 = vmul.f32 %v2177, %v2295
    %v2297 = vrcp.pop %v2215
    %v2298 = vmul.f32 %v2215, %v2297
    %v2299 = vsub.f32 1.0, %v2298
    %v2300 = vmul.f32 %v2297, %v2299
    %v2301 = vadd.f32 %v2297, %v2300
    %vm2302 = vweird.f32 %v2215
    %vm2303 = vweird.f32 %v2297
    %vm2304 = vmor %vm2302, %vm2303
    %v2305 = vsel %vm2304, %v2297, %v2301
    %v2306 = vand.u32 2147483647, %v2215
    %vm2307 = vcmp.eq.f32.partialorder %v2306, 8.507059e+37
    %v2308 = vand.u32 %v2215, 2147483648
    %v2309 = vor.u32 1.1754944e-38, %v2308
    %v2310 = vsel %vm2307, %v2309, %v2305
    %v2311 = vmul.f32 %v2179, %v2310
    %v2312 = vrcp.pop %v2218
    %v2313 = vmul.f32 %v2218, %v2312
    %v2314 = vsub.f32 1.0, %v2313
    %v2315 = vmul.f32 %v2312, %v2314
    %v2316 = vadd.f32 %v2312, %v2315
    %vm2317 = vweird.f32 %v2218
    %vm2318 = vweird.f32 %v2312
    %vm2319 = vmor %vm2317, %vm2318
    %v2320 = vsel %vm2319, %v2312, %v2316
    %v2321 = vand.u32 2147483647, %v2218
    %vm2322 = vcmp.eq.f32.partialorder %v2321, 8.507059e+37
    %v2323 = vand.u32 %v2218, 2147483648
    %v2324 = vor.u32 1.1754944e-38, %v2323
    %v2325 = vsel %vm2322, %v2324, %v2320
    %v2326 = vmul.f32 %v2181, %v2325
    %v2327 = vrcp.pop %v2221
    %v2328 = vmul.f32 %v2221, %v2327
    %v2329 = vsub.f32 1.0, %v2328
    %v2330 = vmul.f32 %v2327, %v2329
    %v2331 = vadd.f32 %v2327, %v2330
    %vm2332 = vweird.f32 %v2221
    %vm2333 = vweird.f32 %v2327
    %vm2334 = vmor %vm2332, %vm2333
    %v2335 = vsel %vm2334, %v2327, %v2331
    %v2336 = vand.u32 2147483647, %v2221
    %vm2337 = vcmp.eq.f32.partialorder %v2336, 8.507059e+37
    %v2338 = vand.u32 %v2221, 2147483648
    %v2339 = vor.u32 1.1754944e-38, %v2338
    %v2340 = vsel %vm2337, %v2339, %v2335
    %v2341 = vmul.f32 %v2183, %v2340
    %v2342 = vrcp.pop %v2224
    %v2343 = vmul.f32 %v2224, %v2342
    %v2344 = vsub.f32 1.0, %v2343
    %v2345 = vmul.f32 %v2342, %v2344
    %v2346 = vadd.f32 %v2342, %v2345
    %vm2347 = vweird.f32 %v2224
    %vm2348 = vweird.f32 %v2342
    %vm2349 = vmor %vm2347, %vm2348
    %v2350 = vsel %vm2349, %v2342, %v2346
    %v2351 = vand.u32 2147483647, %v2224
    %vm2352 = vcmp.eq.f32.partialorder %v2351, 8.507059e+37
    %v2353 = vand.u32 %v2224, 2147483648
    %v2354 = vor.u32 1.1754944e-38, %v2353
    %v2355 = vsel %vm2352, %v2354, %v2350
    %v2356 = vmul.f32 %v2185, %v2355
    %v2357 = vrcp.pop %v2227
    %v2358 = vmul.f32 %v2227, %v2357
    %v2359 = vsub.f32 1.0, %v2358
    %v2360 = vmul.f32 %v2357, %v2359
    %v2361 = vadd.f32 %v2357, %v2360
    %vm2362 = vweird.f32 %v2227
    %vm2363 = vweird.f32 %v2357
    %vm2364 = vmor %vm2362, %vm2363
    %v2365 = vsel %vm2364, %v2357, %v2361
    %v2366 = vand.u32 2147483647, %v2227
    %vm2367 = vcmp.eq.f32.partialorder %v2366, 8.507059e+37
    %v2368 = vand.u32 %v2227, 2147483648
    %v2369 = vor.u32 1.1754944e-38, %v2368
    %v2370 = vsel %vm2367, %v2369, %v2365
    %v2371 = vmul.f32 %v2187, %v2370
    %v2372 = vrcp.pop %v2230
    %v2373 = vmul.f32 %v2230, %v2372
    %v2374 = vsub.f32 1.0, %v2373
    %v2375 = vmul.f32 %v2372, %v2374
    %v2376 = vadd.f32 %v2372, %v2375
    %vm2377 = vweird.f32 %v2230
    %vm2378 = vweird.f32 %v2372
    %vm2379 = vmor %vm2377, %vm2378
    %v2380 = vsel %vm2379, %v2372, %v2376
    %v2381 = vand.u32 2147483647, %v2230
    %vm2382 = vcmp.eq.f32.partialorder %v2381, 8.507059e+37
    %v2383 = vand.u32 %v2230, 2147483648
    %v2384 = vor.u32 1.1754944e-38, %v2383
    %v2385 = vsel %vm2382, %v2384, %v2380
    %v2386 = vmul.f32 %v2189, %v2385
    %v2387 = vrcp.pop %v2233
    %v2388 = vmul.f32 %v2233, %v2387
    %v2389 = vsub.f32 1.0, %v2388
    %v2390 = vmul.f32 %v2387, %v2389
    %v2391 = vadd.f32 %v2387, %v2390
    %vm2392 = vweird.f32 %v2233
    %vm2393 = vweird.f32 %v2387
    %vm2394 = vmor %vm2392, %vm2393
    %v2395 = vsel %vm2394, %v2387, %v2391
    %v2396 = vand.u32 2147483647, %v2233
    %vm2397 = vcmp.eq.f32.partialorder %v2396, 8.507059e+37
    %v2398 = vand.u32 %v2233, 2147483648
    %v2399 = vor.u32 1.1754944e-38, %v2398
    %v2400 = vsel %vm2397, %v2399, %v2395
    %v2401 = vmul.f32 %v2191, %v2400
    %v2402 = vrcp.pop %v2236
    %v2403 = vmul.f32 %v2236, %v2402
    %v2404 = vsub.f32 1.0, %v2403
    %v2405 = vmul.f32 %v2402, %v2404
    %v2406 = vadd.f32 %v2402, %v2405
    %vm2407 = vweird.f32 %v2236
    %vm2408 = vweird.f32 %v2402
    %vm2409 = vmor %vm2407, %vm2408
    %v2410 = vsel %vm2409, %v2402, %v2406
    %v2411 = vand.u32 2147483647, %v2236
    %vm2412 = vcmp.eq.f32.partialorder %v2411, 8.507059e+37
    %v2413 = vand.u32 %v2236, 2147483648
    %v2414 = vor.u32 1.1754944e-38, %v2413
    %v2415 = vsel %vm2412, %v2414, %v2410
    %v2416 = vmul.f32 %v2193, %v2415
    %v2417 = vrcp.pop %v2239
    %v2418 = vmul.f32 %v2239, %v2417
    %v2419 = vsub.f32 1.0, %v2418
    %v2420 = vmul.f32 %v2417, %v2419
    %v2421 = vadd.f32 %v2417, %v2420
    %vm2422 = vweird.f32 %v2239
    %vm2423 = vweird.f32 %v2417
    %vm2424 = vmor %vm2422, %vm2423
    %v2425 = vsel %vm2424, %v2417, %v2421
    %v2426 = vand.u32 2147483647, %v2239
    %vm2427 = vcmp.eq.f32.partialorder %v2426, 8.507059e+37
    %v2428 = vand.u32 %v2239, 2147483648
    %v2429 = vor.u32 1.1754944e-38, %v2428
    %v2430 = vsel %vm2427, %v2429, %v2425
    %v2431 = vmul.f32 %v2195, %v2430
    %v2432 = vrcp.pop %v2242
    %v2433 = vmul.f32 %v2242, %v2432
    %v2434 = vsub.f32 1.0, %v2433
    %v2435 = vmul.f32 %v2432, %v2434
    %v2436 = vadd.f32 %v2432, %v2435
    %vm2437 = vweird.f32 %v2242
    %vm2438 = vweird.f32 %v2432
    %vm2439 = vmor %vm2437, %vm2438
    %v2440 = vsel %vm2439, %v2432, %v2436
    %v2441 = vand.u32 2147483647, %v2242
    %vm2442 = vcmp.eq.f32.partialorder %v2441, 8.507059e+37
    %v2443 = vand.u32 %v2242, 2147483648
    %v2444 = vor.u32 1.1754944e-38, %v2443
    %v2445 = vsel %vm2442, %v2444, %v2440
    %v2446 = vmul.f32 %v2197, %v2445
    %v2447 = vrcp.pop %v2245
    %v2448 = vmul.f32 %v2245, %v2447
    %v2449 = vsub.f32 1.0, %v2448
    %v2450 = vmul.f32 %v2447, %v2449
    %v2451 = vadd.f32 %v2447, %v2450
    %vm2452 = vweird.f32 %v2245
    %vm2453 = vweird.f32 %v2447
    %vm2454 = vmor %vm2452, %vm2453
    %v2455 = vsel %vm2454, %v2447, %v2451
    %v2456 = vand.u32 2147483647, %v2245
    %vm2457 = vcmp.eq.f32.partialorder %v2456, 8.507059e+37
    %v2458 = vand.u32 %v2245, 2147483648
    %v2459 = vor.u32 1.1754944e-38, %v2458
    %v2460 = vsel %vm2457, %v2459, %v2455
    %v2461 = vmul.f32 %v2199, %v2460
    %v2462 = vrcp.pop %v2248
    %v2463 = vmul.f32 %v2248, %v2462
    %v2464 = vsub.f32 1.0, %v2463
    %v2465 = vmul.f32 %v2462, %v2464
    %v2466 = vadd.f32 %v2462, %v2465
    %vm2467 = vweird.f32 %v2248
    %vm2468 = vweird.f32 %v2462
    %vm2469 = vmor %vm2467, %vm2468
    %v2470 = vsel %vm2469, %v2462, %v2466
    %v2471 = vand.u32 2147483647, %v2248
    %vm2472 = vcmp.eq.f32.partialorder %v2471, 8.507059e+37
    %v2473 = vand.u32 %v2248, 2147483648
    %v2474 = vor.u32 1.1754944e-38, %v2473
    %v2475 = vsel %vm2472, %v2474, %v2470
    %v2476 = vmul.f32 %v2201, %v2475
    %v2477 = vrcp.pop %v2251
    %v2478 = vmul.f32 %v2251, %v2477
    %v2479 = vsub.f32 1.0, %v2478
    %v2480 = vmul.f32 %v2477, %v2479
    %v2481 = vadd.f32 %v2477, %v2480
    %vm2482 = vweird.f32 %v2251
    %vm2483 = vweird.f32 %v2477
    %vm2484 = vmor %vm2482, %vm2483
    %v2485 = vsel %vm2484, %v2477, %v2481
    %v2486 = vand.u32 2147483647, %v2251
    %vm2487 = vcmp.eq.f32.partialorder %v2486, 8.507059e+37
    %v2488 = vand.u32 %v2251, 2147483648
    %v2489 = vor.u32 1.1754944e-38, %v2488
    %v2490 = vsel %vm2487, %v2489, %v2485
    %v2491 = vmul.f32 %v2203, %v2490
    %2493 = vrot.lane.b32.xlu0 %v396, 120
    %v2494 = vpop.permute.xlu0 %2493
    %v2497 = vsel %vm443, %v2266, 0
    %2499 = vmatpush.msra.mxu0 0.0
    %2500 = vmatpush.msra.mxu0 0.0
    %2501 = vmatpush.msra.mxu0 0.0
    %2502 = vmatpush.msra.mxu0 0.0
    %2503 = vmatpush.msra.mxu0 0.0
    %2504 = vmatpush.msra.mxu0 0.0
    %2505 = vmatpush.msra.mxu0 0.0
    %2506 = vmatpush.msra.mxu0 0.0
    %2507 = vmatpush.msra.mxu0 0.0
    %2508 = vmatpush.msra.mxu0 0.0
    %2509 = vmatpush.msra.mxu0 0.0
    %2510 = vmatpush.msra.mxu0 0.0
    %2511 = vmatpush.msra.mxu0 0.0
    %2512 = vmatpush.msra.mxu0 0.0
    %2513 = vmatpush.msra.mxu0 0.0
    %2514 = vmatpush.msra.mxu0 %v2494
    %2515 = vmatmul.f32.gmra.mxu0 %v2497
    %v2516 = vpop.f32.mrf.mxu0
    %v2517 = vadd.f32 0.0, %v2516
    %2518 = vdwg.mxu0
    %2520 = vrot.lane.b32.xlu0 %v399, 120
    %v2521 = vpop.permute.xlu0 %2520
    %v2524 = vsel %vm443, %v2281, 0
    %2526 = vmatpush.msra.mxu0 0.0
    %2527 = vmatpush.msra.mxu0 0.0
    %2528 = vmatpush.msra.mxu0 0.0
    %2529 = vmatpush.msra.mxu0 0.0
    %2530 = vmatpush.msra.mxu0 0.0
    %2531 = vmatpush.msra.mxu0 0.0
    %2532 = vmatpush.msra.mxu0 0.0
    %2533 = vmatpush.msra.mxu0 0.0
    %2534 = vmatpush.msra.mxu0 0.0
    %2535 = vmatpush.msra.mxu0 0.0
    %2536 = vmatpush.msra.mxu0 0.0
    %2537 = vmatpush.msra.mxu0 0.0
    %2538 = vmatpush.msra.mxu0 0.0
    %2539 = vmatpush.msra.mxu0 0.0
    %2540 = vmatpush.msra.mxu0 0.0
    %2541 = vmatpush.msra.mxu0 %v2521
    %2542 = vmatmul.f32.gmra.mxu0 %v2524
    %v2543 = vpop.f32.mrf.mxu0
    %v2544 = vadd.f32 0.0, %v2543
    %2545 = vdwg.mxu0
    %2547 = vrot.lane.b32.xlu0 %v402, 120
    %v2548 = vpop.permute.xlu0 %2547
    %v2551 = vsel %vm443, %v2296, 0
    %2553 = vmatpush.msra.mxu0 0.0
    %2554 = vmatpush.msra.mxu0 0.0
    %2555 = vmatpush.msra.mxu0 0.0
    %2556 = vmatpush.msra.mxu0 0.0
    %2557 = vmatpush.msra.mxu0 0.0
    %2558 = vmatpush.msra.mxu0 0.0
    %2559 = vmatpush.msra.mxu0 0.0
    %2560 = vmatpush.msra.mxu0 0.0
    %2561 = vmatpush.msra.mxu0 0.0
    %2562 = vmatpush.msra.mxu0 0.0
    %2563 = vmatpush.msra.mxu0 0.0
    %2564 = vmatpush.msra.mxu0 0.0
    %2565 = vmatpush.msra.mxu0 0.0
    %2566 = vmatpush.msra.mxu0 0.0
    %2567 = vmatpush.msra.mxu0 0.0
    %2568 = vmatpush.msra.mxu0 %v2548
    %2569 = vmatmul.f32.gmra.mxu0 %v2551
    %v2570 = vpop.f32.mrf.mxu0
    %v2571 = vadd.f32 0.0, %v2570
    %2572 = vdwg.mxu0
    %2574 = vrot.lane.b32.xlu0 %v405, 120
    %v2575 = vpop.permute.xlu0 %2574
    %v2578 = vsel %vm443, %v2311, 0
    %2580 = vmatpush.msra.mxu0 0.0
    %2581 = vmatpush.msra.mxu0 0.0
    %2582 = vmatpush.msra.mxu0 0.0
    %2583 = vmatpush.msra.mxu0 0.0
    %2584 = vmatpush.msra.mxu0 0.0
    %2585 = vmatpush.msra.mxu0 0.0
    %2586 = vmatpush.msra.mxu0 0.0
    %2587 = vmatpush.msra.mxu0 0.0
    %2588 = vmatpush.msra.mxu0 0.0
    %2589 = vmatpush.msra.mxu0 0.0
    %2590 = vmatpush.msra.mxu0 0.0
    %2591 = vmatpush.msra.mxu0 0.0
    %2592 = vmatpush.msra.mxu0 0.0
    %2593 = vmatpush.msra.mxu0 0.0
    %2594 = vmatpush.msra.mxu0 0.0
    %2595 = vmatpush.msra.mxu0 %v2575
    %2596 = vmatmul.f32.gmra.mxu0 %v2578
    %v2597 = vpop.f32.mrf.mxu0
    %v2598 = vadd.f32 0.0, %v2597
    %2599 = vdwg.mxu0
    %2601 = vrot.lane.b32.xlu0 %v408, 120
    %v2602 = vpop.permute.xlu0 %2601
    %v2605 = vsel %vm443, %v2326, 0
    %2607 = vmatpush.msra.mxu0 0.0
    %2608 = vmatpush.msra.mxu0 0.0
    %2609 = vmatpush.msra.mxu0 0.0
    %2610 = vmatpush.msra.mxu0 0.0
    %2611 = vmatpush.msra.mxu0 0.0
    %2612 = vmatpush.msra.mxu0 0.0
    %2613 = vmatpush.msra.mxu0 0.0
    %2614 = vmatpush.msra.mxu0 0.0
    %2615 = vmatpush.msra.mxu0 0.0
    %2616 = vmatpush.msra.mxu0 0.0
    %2617 = vmatpush.msra.mxu0 0.0
    %2618 = vmatpush.msra.mxu0 0.0
    %2619 = vmatpush.msra.mxu0 0.0
    %2620 = vmatpush.msra.mxu0 0.0
    %2621 = vmatpush.msra.mxu0 0.0
    %2622 = vmatpush.msra.mxu0 %v2602
    %2623 = vmatmul.f32.gmra.mxu0 %v2605
    %v2624 = vpop.f32.mrf.mxu0
    %v2625 = vadd.f32 0.0, %v2624
    %2626 = vdwg.mxu0
    %2628 = vrot.lane.b32.xlu0 %v411, 120
    %v2629 = vpop.permute.xlu0 %2628
    %v2632 = vsel %vm443, %v2341, 0
    %2634 = vmatpush.msra.mxu0 0.0
    %2635 = vmatpush.msra.mxu0 0.0
    %2636 = vmatpush.msra.mxu0 0.0
    %2637 = vmatpush.msra.mxu0 0.0
    %2638 = vmatpush.msra.mxu0 0.0
    %2639 = vmatpush.msra.mxu0 0.0
    %2640 = vmatpush.msra.mxu0 0.0
    %2641 = vmatpush.msra.mxu0 0.0
    %2642 = vmatpush.msra.mxu0 0.0
    %2643 = vmatpush.msra.mxu0 0.0
    %2644 = vmatpush.msra.mxu0 0.0
    %2645 = vmatpush.msra.mxu0 0.0
    %2646 = vmatpush.msra.mxu0 0.0
    %2647 = vmatpush.msra.mxu0 0.0
    %2648 = vmatpush.msra.mxu0 0.0
    %2649 = vmatpush.msra.mxu0 %v2629
    %2650 = vmatmul.f32.gmra.mxu0 %v2632
    %v2651 = vpop.f32.mrf.mxu0
    %v2652 = vadd.f32 0.0, %v2651
    %2653 = vdwg.mxu0
    %2655 = vrot.lane.b32.xlu0 %v414, 120
    %v2656 = vpop.permute.xlu0 %2655
    %v2659 = vsel %vm443, %v2356, 0
    %2661 = vmatpush.msra.mxu0 0.0
    %2662 = vmatpush.msra.mxu0 0.0
    %2663 = vmatpush.msra.mxu0 0.0
    %2664 = vmatpush.msra.mxu0 0.0
    %2665 = vmatpush.msra.mxu0 0.0
    %2666 = vmatpush.msra.mxu0 0.0
    %2667 = vmatpush.msra.mxu0 0.0
    %2668 = vmatpush.msra.mxu0 0.0
    %2669 = vmatpush.msra.mxu0 0.0
    %2670 = vmatpush.msra.mxu0 0.0
    %2671 = vmatpush.msra.mxu0 0.0
    %2672 = vmatpush.msra.mxu0 0.0
    %2673 = vmatpush.msra.mxu0 0.0
    %2674 = vmatpush.msra.mxu0 0.0
    %2675 = vmatpush.msra.mxu0 0.0
    %2676 = vmatpush.msra.mxu0 %v2656
    %2677 = vmatmul.f32.gmra.mxu0 %v2659
    %v2678 = vpop.f32.mrf.mxu0
    %v2679 = vadd.f32 0.0, %v2678
    %2680 = vdwg.mxu0
    %2682 = vrot.lane.b32.xlu0 %v417, 120
    %v2683 = vpop.permute.xlu0 %2682
    %v2686 = vsel %vm443, %v2371, 0
    %2688 = vmatpush.msra.mxu0 0.0
    %2689 = vmatpush.msra.mxu0 0.0
    %2690 = vmatpush.msra.mxu0 0.0
    %2691 = vmatpush.msra.mxu0 0.0
    %2692 = vmatpush.msra.mxu0 0.0
    %2693 = vmatpush.msra.mxu0 0.0
    %2694 = vmatpush.msra.mxu0 0.0
    %2695 = vmatpush.msra.mxu0 0.0
    %2696 = vmatpush.msra.mxu0 0.0
    %2697 = vmatpush.msra.mxu0 0.0
    %2698 = vmatpush.msra.mxu0 0.0
    %2699 = vmatpush.msra.mxu0 0.0
    %2700 = vmatpush.msra.mxu0 0.0
    %2701 = vmatpush.msra.mxu0 0.0
    %2702 = vmatpush.msra.mxu0 0.0
    %2703 = vmatpush.msra.mxu0 %v2683
    %2704 = vmatmul.f32.gmra.mxu0 %v2686
    %v2705 = vpop.f32.mrf.mxu0
    %v2706 = vadd.f32 0.0, %v2705
    %2707 = vdwg.mxu0
    %2709 = vrot.lane.b32.xlu0 %v420, 120
    %v2710 = vpop.permute.xlu0 %2709
    %v2713 = vsel %vm443, %v2386, 0
    %2715 = vmatpush.msra.mxu0 0.0
    %2716 = vmatpush.msra.mxu0 0.0
    %2717 = vmatpush.msra.mxu0 0.0
    %2718 = vmatpush.msra.mxu0 0.0
    %2719 = vmatpush.msra.mxu0 0.0
    %2720 = vmatpush.msra.mxu0 0.0
    %2721 = vmatpush.msra.mxu0 0.0
    %2722 = vmatpush.msra.mxu0 0.0
    %2723 = vmatpush.msra.mxu0 0.0
    %2724 = vmatpush.msra.mxu0 0.0
    %2725 = vmatpush.msra.mxu0 0.0
    %2726 = vmatpush.msra.mxu0 0.0
    %2727 = vmatpush.msra.mxu0 0.0
    %2728 = vmatpush.msra.mxu0 0.0
    %2729 = vmatpush.msra.mxu0 0.0
    %2730 = vmatpush.msra.mxu0 %v2710
    %2731 = vmatmul.f32.gmra.mxu0 %v2713
    %v2732 = vpop.f32.mrf.mxu0
    %v2733 = vadd.f32 0.0, %v2732
    %2734 = vdwg.mxu0
    %2736 = vrot.lane.b32.xlu0 %v423, 120
    %v2737 = vpop.permute.xlu0 %2736
    %v2740 = vsel %vm443, %v2401, 0
    %2742 = vmatpush.msra.mxu0 0.0
    %2743 = vmatpush.msra.mxu0 0.0
    %2744 = vmatpush.msra.mxu0 0.0
    %2745 = vmatpush.msra.mxu0 0.0
    %2746 = vmatpush.msra.mxu0 0.0
    %2747 = vmatpush.msra.mxu0 0.0
    %2748 = vmatpush.msra.mxu0 0.0
    %2749 = vmatpush.msra.mxu0 0.0
    %2750 = vmatpush.msra.mxu0 0.0
    %2751 = vmatpush.msra.mxu0 0.0
    %2752 = vmatpush.msra.mxu0 0.0
    %2753 = vmatpush.msra.mxu0 0.0
    %2754 = vmatpush.msra.mxu0 0.0
    %2755 = vmatpush.msra.mxu0 0.0
    %2756 = vmatpush.msra.mxu0 0.0
    %2757 = vmatpush.msra.mxu0 %v2737
    %2758 = vmatmul.f32.gmra.mxu0 %v2740
    %v2759 = vpop.f32.mrf.mxu0
    %v2760 = vadd.f32 0.0, %v2759
    %2761 = vdwg.mxu0
    %2763 = vrot.lane.b32.xlu0 %v426, 120
    %v2764 = vpop.permute.xlu0 %2763
    %v2767 = vsel %vm443, %v2416, 0
    %2769 = vmatpush.msra.mxu0 0.0
    %2770 = vmatpush.msra.mxu0 0.0
    %2771 = vmatpush.msra.mxu0 0.0
    %2772 = vmatpush.msra.mxu0 0.0
    %2773 = vmatpush.msra.mxu0 0.0
    %2774 = vmatpush.msra.mxu0 0.0
    %2775 = vmatpush.msra.mxu0 0.0
    %2776 = vmatpush.msra.mxu0 0.0
    %2777 = vmatpush.msra.mxu0 0.0
    %2778 = vmatpush.msra.mxu0 0.0
    %2779 = vmatpush.msra.mxu0 0.0
    %2780 = vmatpush.msra.mxu0 0.0
    %2781 = vmatpush.msra.mxu0 0.0
    %2782 = vmatpush.msra.mxu0 0.0
    %2783 = vmatpush.msra.mxu0 0.0
    %2784 = vmatpush.msra.mxu0 %v2764
    %2785 = vmatmul.f32.gmra.mxu0 %v2767
    %v2786 = vpop.f32.mrf.mxu0
    %v2787 = vadd.f32 0.0, %v2786
    %2788 = vdwg.mxu0
    %2790 = vrot.lane.b32.xlu0 %v429, 120
    %v2791 = vpop.permute.xlu0 %2790
    %v2794 = vsel %vm443, %v2431, 0
    %2796 = vmatpush.msra.mxu0 0.0
    %2797 = vmatpush.msra.mxu0 0.0
    %2798 = vmatpush.msra.mxu0 0.0
    %2799 = vmatpush.msra.mxu0 0.0
    %2800 = vmatpush.msra.mxu0 0.0
    %2801 = vmatpush.msra.mxu0 0.0
    %2802 = vmatpush.msra.mxu0 0.0
    %2803 = vmatpush.msra.mxu0 0.0
    %2804 = vmatpush.msra.mxu0 0.0
    %2805 = vmatpush.msra.mxu0 0.0
    %2806 = vmatpush.msra.mxu0 0.0
    %2807 = vmatpush.msra.mxu0 0.0
    %2808 = vmatpush.msra.mxu0 0.0
    %2809 = vmatpush.msra.mxu0 0.0
    %2810 = vmatpush.msra.mxu0 0.0
    %2811 = vmatpush.msra.mxu0 %v2791
    %2812 = vmatmul.f32.gmra.mxu0 %v2794
    %v2813 = vpop.f32.mrf.mxu0
    %v2814 = vadd.f32 0.0, %v2813
    %2815 = vdwg.mxu0
    %2817 = vrot.lane.b32.xlu0 %v432, 120
    %v2818 = vpop.permute.xlu0 %2817
    %v2821 = vsel %vm443, %v2446, 0
    %2823 = vmatpush.msra.mxu0 0.0
    %2824 = vmatpush.msra.mxu0 0.0
    %2825 = vmatpush.msra.mxu0 0.0
    %2826 = vmatpush.msra.mxu0 0.0
    %2827 = vmatpush.msra.mxu0 0.0
    %2828 = vmatpush.msra.mxu0 0.0
    %2829 = vmatpush.msra.mxu0 0.0
    %2830 = vmatpush.msra.mxu0 0.0
    %2831 = vmatpush.msra.mxu0 0.0
    %2832 = vmatpush.msra.mxu0 0.0
    %2833 = vmatpush.msra.mxu0 0.0
    %2834 = vmatpush.msra.mxu0 0.0
    %2835 = vmatpush.msra.mxu0 0.0
    %2836 = vmatpush.msra.mxu0 0.0
    %2837 = vmatpush.msra.mxu0 0.0
    %2838 = vmatpush.msra.mxu0 %v2818
    %2839 = vmatmul.f32.gmra.mxu0 %v2821
    %v2840 = vpop.f32.mrf.mxu0
    %v2841 = vadd.f32 0.0, %v2840
    %2842 = vdwg.mxu0
    %2844 = vrot.lane.b32.xlu0 %v435, 120
    %v2845 = vpop.permute.xlu0 %2844
    %v2848 = vsel %vm443, %v2461, 0
    %2850 = vmatpush.msra.mxu0 0.0
    %2851 = vmatpush.msra.mxu0 0.0
    %2852 = vmatpush.msra.mxu0 0.0
    %2853 = vmatpush.msra.mxu0 0.0
    %2854 = vmatpush.msra.mxu0 0.0
    %2855 = vmatpush.msra.mxu0 0.0
    %2856 = vmatpush.msra.mxu0 0.0
    %2857 = vmatpush.msra.mxu0 0.0
    %2858 = vmatpush.msra.mxu0 0.0
    %2859 = vmatpush.msra.mxu0 0.0
    %2860 = vmatpush.msra.mxu0 0.0
    %2861 = vmatpush.msra.mxu0 0.0
    %2862 = vmatpush.msra.mxu0 0.0
    %2863 = vmatpush.msra.mxu0 0.0
    %2864 = vmatpush.msra.mxu0 0.0
    %2865 = vmatpush.msra.mxu0 %v2845
    %2866 = vmatmul.f32.gmra.mxu0 %v2848
    %v2867 = vpop.f32.mrf.mxu0
    %v2868 = vadd.f32 0.0, %v2867
    %2869 = vdwg.mxu0
    %2871 = vrot.lane.b32.xlu0 %v438, 120
    %v2872 = vpop.permute.xlu0 %2871
    %v2875 = vsel %vm443, %v2476, 0
    %2877 = vmatpush.msra.mxu0 0.0
    %2878 = vmatpush.msra.mxu0 0.0
    %2879 = vmatpush.msra.mxu0 0.0
    %2880 = vmatpush.msra.mxu0 0.0
    %2881 = vmatpush.msra.mxu0 0.0
    %2882 = vmatpush.msra.mxu0 0.0
    %2883 = vmatpush.msra.mxu0 0.0
    %2884 = vmatpush.msra.mxu0 0.0
    %2885 = vmatpush.msra.mxu0 0.0
    %2886 = vmatpush.msra.mxu0 0.0
    %2887 = vmatpush.msra.mxu0 0.0
    %2888 = vmatpush.msra.mxu0 0.0
    %2889 = vmatpush.msra.mxu0 0.0
    %2890 = vmatpush.msra.mxu0 0.0
    %2891 = vmatpush.msra.mxu0 0.0
    %2892 = vmatpush.msra.mxu0 %v2872
    %2893 = vmatmul.f32.gmra.mxu0 %v2875
    %v2894 = vpop.f32.mrf.mxu0
    %v2895 = vadd.f32 0.0, %v2894
    %2896 = vdwg.mxu0
    %2898 = vrot.lane.b32.xlu0 %v441, 120
    %v2899 = vpop.permute.xlu0 %2898
    %v2902 = vsel %vm443, %v2491, 0
    %2904 = vmatpush.msra.mxu0 0.0
    %2905 = vmatpush.msra.mxu0 0.0
    %2906 = vmatpush.msra.mxu0 0.0
    %2907 = vmatpush.msra.mxu0 0.0
    %2908 = vmatpush.msra.mxu0 0.0
    %2909 = vmatpush.msra.mxu0 0.0
    %2910 = vmatpush.msra.mxu0 0.0
    %2911 = vmatpush.msra.mxu0 0.0
    %2912 = vmatpush.msra.mxu0 0.0
    %2913 = vmatpush.msra.mxu0 0.0
    %2914 = vmatpush.msra.mxu0 0.0
    %2915 = vmatpush.msra.mxu0 0.0
    %2916 = vmatpush.msra.mxu0 0.0
    %2917 = vmatpush.msra.mxu0 0.0
    %2918 = vmatpush.msra.mxu0 0.0
    %2919 = vmatpush.msra.mxu0 %v2899
    %2920 = vmatmul.f32.gmra.mxu0 %v2902
    %v2921 = vpop.f32.mrf.mxu0
    %v2922 = vadd.f32 0.0, %v2921
    %2923 = vdwg.mxu0
    %2940 = vrot.lane.b32.xlu0 %v2517, 8
    %v2941 = vpop.permute.xlu0 %2940
    %2942 = vrot.lane.b32.xlu0 %v2544, 8
    %v2943 = vpop.permute.xlu0 %2942
    %2944 = vrot.lane.b32.xlu0 %v2571, 8
    %v2945 = vpop.permute.xlu0 %2944
    %2946 = vrot.lane.b32.xlu0 %v2598, 8
    %v2947 = vpop.permute.xlu0 %2946
    %2948 = vrot.lane.b32.xlu0 %v2625, 8
    %v2949 = vpop.permute.xlu0 %2948
    %2950 = vrot.lane.b32.xlu0 %v2652, 8
    %v2951 = vpop.permute.xlu0 %2950
    %2952 = vrot.lane.b32.xlu0 %v2679, 8
    %v2953 = vpop.permute.xlu0 %2952
    %2954 = vrot.lane.b32.xlu0 %v2706, 8
    %v2955 = vpop.permute.xlu0 %2954
    %2956 = vrot.lane.b32.xlu0 %v2733, 8
    %v2957 = vpop.permute.xlu0 %2956
    %2958 = vrot.lane.b32.xlu0 %v2760, 8
    %v2959 = vpop.permute.xlu0 %2958
    %2960 = vrot.lane.b32.xlu0 %v2787, 8
    %v2961 = vpop.permute.xlu0 %2960
    %2962 = vrot.lane.b32.xlu0 %v2814, 8
    %v2963 = vpop.permute.xlu0 %2962
    %2964 = vrot.lane.b32.xlu0 %v2841, 8
    %v2965 = vpop.permute.xlu0 %2964
    %2966 = vrot.lane.b32.xlu0 %v2868, 8
    %v2967 = vpop.permute.xlu0 %2966
    %2968 = vrot.lane.b32.xlu0 %v2895, 8
    %v2969 = vpop.permute.xlu0 %2968
    %2970 = vrot.lane.b32.xlu0 %v2922, 8
    %v2971 = vpop.permute.xlu0 %2970
    %vm2988 = vcmask 130112
    %2989 = vst.msk [vmem:[#allocation2] sm:$0xff] %vm2988, %v2941
    %2990 = vst.msk [vmem:[#allocation2 + $0x8] sm:$0xff] %vm2988, %v2943
    %2991 = vst.msk [vmem:[#allocation2 + $0x10] sm:$0xff] %vm2988, %v2945
    %2992 = vst.msk [vmem:[#allocation2 + $0x18] sm:$0xff] %vm2988, %v2947
    %2993 = vst.msk [vmem:[#allocation2 + $0x20] sm:$0xff] %vm2988, %v2949
    %2994 = vst.msk [vmem:[#allocation2 + $0x28] sm:$0xff] %vm2988, %v2951
    %2995 = vst.msk [vmem:[#allocation2 + $0x30] sm:$0xff] %vm2988, %v2953
    %2996 = vst.msk [vmem:[#allocation2 + $0x38] sm:$0xff] %vm2988, %v2955
    %2997 = vst.msk [vmem:[#allocation2 + $0x40] sm:$0xff] %vm2988, %v2957
    %2998 = vst.msk [vmem:[#allocation2 + $0x48] sm:$0xff] %vm2988, %v2959
    %2999 = vst.msk [vmem:[#allocation2 + $0x50] sm:$0xff] %vm2988, %v2961
    %3000 = vst.msk [vmem:[#allocation2 + $0x58] sm:$0xff] %vm2988, %v2963
    %3001 = vst.msk [vmem:[#allocation2 + $0x60] sm:$0xff] %vm2988, %v2965
    %3002 = vst.msk [vmem:[#allocation2 + $0x68] sm:$0xff] %vm2988, %v2967
    %3003 = vst.msk [vmem:[#allocation2 + $0x70] sm:$0xff] %vm2988, %v2969
    %3004 = vst.msk [vmem:[#allocation2 + $0x78] sm:$0xff] %vm2988, %v2971
    %3005 = vrot.lane.b32.xlu0 %v150, 112
    %v3006 = vpop.permute.xlu0 %3005
    %3007 = vrot.lane.b32.xlu0 %v273, 112
    %v3008 = vpop.permute.xlu0 %3007
    %v3009 = vsel %vm443, %v3006, 0
    %v3011 = vsel %vm443, %v3008, 0
    %3013 = vmatpush.xpose.msra.mxu0 0.0
    %3014 = vmatpush.xpose.msra.mxu0 0.0
    %3015 = vmatpush.xpose.msra.mxu0 0.0
    %3016 = vmatpush.xpose.msra.mxu0 0.0
    %3017 = vmatpush.xpose.msra.mxu0 0.0
    %3018 = vmatpush.xpose.msra.mxu0 0.0
    %3019 = vmatpush.xpose.msra.mxu0 0.0
    %3020 = vmatpush.xpose.msra.mxu0 0.0
    %3021 = vmatpush.xpose.msra.mxu0 0.0
    %3022 = vmatpush.xpose.msra.mxu0 0.0
    %3023 = vmatpush.xpose.msra.mxu0 0.0
    %3024 = vmatpush.xpose.msra.mxu0 0.0
    %3025 = vmatpush.xpose.msra.mxu0 0.0
    %3026 = vmatpush.xpose.msra.mxu0 0.0
    %3027 = vmatpush.xpose.msra.mxu0 0.0
    %3028 = vmatpush.xpose.msra.mxu0 %v3011
    %3029 = vmatmul.f32.gmra.mxu0 %v3009
    %v3030 = vpop.f32.mrf.mxu0
    %v3031 = vadd.f32 0.0, %v3030
    %3032 = vdwg.mxu0
    %3033 = vrot.lane.b32.xlu0 %v153, 112
    %v3034 = vpop.permute.xlu0 %3033
    %3035 = vrot.lane.b32.xlu0 %v276, 112
    %v3036 = vpop.permute.xlu0 %3035
    %v3037 = vsel %vm443, %v3034, 0
    %v3039 = vsel %vm443, %v3036, 0
    %3041 = vmatpush.xpose.msra.mxu0 0.0
    %3042 = vmatpush.xpose.msra.mxu0 0.0
    %3043 = vmatpush.xpose.msra.mxu0 0.0
    %3044 = vmatpush.xpose.msra.mxu0 0.0
    %3045 = vmatpush.xpose.msra.mxu0 0.0
    %3046 = vmatpush.xpose.msra.mxu0 0.0
    %3047 = vmatpush.xpose.msra.mxu0 0.0
    %3048 = vmatpush.xpose.msra.mxu0 0.0
    %3049 = vmatpush.xpose.msra.mxu0 0.0
    %3050 = vmatpush.xpose.msra.mxu0 0.0
    %3051 = vmatpush.xpose.msra.mxu0 0.0
    %3052 = vmatpush.xpose.msra.mxu0 0.0
    %3053 = vmatpush.xpose.msra.mxu0 0.0
    %3054 = vmatpush.xpose.msra.mxu0 0.0
    %3055 = vmatpush.xpose.msra.mxu0 0.0
    %3056 = vmatpush.xpose.msra.mxu0 %v3039
    %3057 = vmatmul.f32.gmra.mxu0 %v3037
    %v3058 = vpop.f32.mrf.mxu0
    %v3059 = vadd.f32 0.0, %v3058
    %3060 = vdwg.mxu0
    %3061 = vrot.lane.b32.xlu0 %v156, 112
    %v3062 = vpop.permute.xlu0 %3061
    %3063 = vrot.lane.b32.xlu0 %v279, 112
    %v3064 = vpop.permute.xlu0 %3063
    %v3065 = vsel %vm443, %v3062, 0
    %v3067 = vsel %vm443, %v3064, 0
    %3069 = vmatpush.xpose.msra.mxu0 0.0
    %3070 = vmatpush.xpose.msra.mxu0 0.0
    %3071 = vmatpush.xpose.msra.mxu0 0.0
    %3072 = vmatpush.xpose.msra.mxu0 0.0
    %3073 = vmatpush.xpose.msra.mxu0 0.0
    %3074 = vmatpush.xpose.msra.mxu0 0.0
    %3075 = vmatpush.xpose.msra.mxu0 0.0
    %3076 = vmatpush.xpose.msra.mxu0 0.0
    %3077 = vmatpush.xpose.msra.mxu0 0.0
    %3078 = vmatpush.xpose.msra.mxu0 0.0
    %3079 = vmatpush.xpose.msra.mxu0 0.0
    %3080 = vmatpush.xpose.msra.mxu0 0.0
    %3081 = vmatpush.xpose.msra.mxu0 0.0
    %3082 = vmatpush.xpose.msra.mxu0 0.0
    %3083 = vmatpush.xpose.msra.mxu0 0.0
    %3084 = vmatpush.xpose.msra.mxu0 %v3067
    %3085 = vmatmul.f32.gmra.mxu0 %v3065
    %v3086 = vpop.f32.mrf.mxu0
    %v3087 = vadd.f32 0.0, %v3086
    %3088 = vdwg.mxu0
    %3089 = vrot.lane.b32.xlu0 %v159, 112
    %v3090 = vpop.permute.xlu0 %3089
    %3091 = vrot.lane.b32.xlu0 %v282, 112
    %v3092 = vpop.permute.xlu0 %3091
    %v3093 = vsel %vm443, %v3090, 0
    %v3095 = vsel %vm443, %v3092, 0
    %3097 = vmatpush.xpose.msra.mxu0 0.0
    %3098 = vmatpush.xpose.msra.mxu0 0.0
    %3099 = vmatpush.xpose.msra.mxu0 0.0
    %3100 = vmatpush.xpose.msra.mxu0 0.0
    %3101 = vmatpush.xpose.msra.mxu0 0.0
    %3102 = vmatpush.xpose.msra.mxu0 0.0
    %3103 = vmatpush.xpose.msra.mxu0 0.0
    %3104 = vmatpush.xpose.msra.mxu0 0.0
    %3105 = vmatpush.xpose.msra.mxu0 0.0
    %3106 = vmatpush.xpose.msra.mxu0 0.0
    %3107 = vmatpush.xpose.msra.mxu0 0.0
    %3108 = vmatpush.xpose.msra.mxu0 0.0
    %3109 = vmatpush.xpose.msra.mxu0 0.0
    %3110 = vmatpush.xpose.msra.mxu0 0.0
    %3111 = vmatpush.xpose.msra.mxu0 0.0
    %3112 = vmatpush.xpose.msra.mxu0 %v3095
    %3113 = vmatmul.f32.gmra.mxu0 %v3093
    %v3114 = vpop.f32.mrf.mxu0
    %v3115 = vadd.f32 0.0, %v3114
    %3116 = vdwg.mxu0
    %3117 = vrot.lane.b32.xlu0 %v162, 112
    %v3118 = vpop.permute.xlu0 %3117
    %3119 = vrot.lane.b32.xlu0 %v285, 112
    %v3120 = vpop.permute.xlu0 %3119
    %v3121 = vsel %vm443, %v3118, 0
    %v3123 = vsel %vm443, %v3120, 0
    %3125 = vmatpush.xpose.msra.mxu0 0.0
    %3126 = vmatpush.xpose.msra.mxu0 0.0
    %3127 = vmatpush.xpose.msra.mxu0 0.0
    %3128 = vmatpush.xpose.msra.mxu0 0.0
    %3129 = vmatpush.xpose.msra.mxu0 0.0
    %3130 = vmatpush.xpose.msra.mxu0 0.0
    %3131 = vmatpush.xpose.msra.mxu0 0.0
    %3132 = vmatpush.xpose.msra.mxu0 0.0
    %3133 = vmatpush.xpose.msra.mxu0 0.0
    %3134 = vmatpush.xpose.msra.mxu0 0.0
    %3135 = vmatpush.xpose.msra.mxu0 0.0
    %3136 = vmatpush.xpose.msra.mxu0 0.0
    %3137 = vmatpush.xpose.msra.mxu0 0.0
    %3138 = vmatpush.xpose.msra.mxu0 0.0
    %3139 = vmatpush.xpose.msra.mxu0 0.0
    %3140 = vmatpush.xpose.msra.mxu0 %v3123
    %3141 = vmatmul.f32.gmra.mxu0 %v3121
    %v3142 = vpop.f32.mrf.mxu0
    %v3143 = vadd.f32 0.0, %v3142
    %3144 = vdwg.mxu0
    %3145 = vrot.lane.b32.xlu0 %v165, 112
    %v3146 = vpop.permute.xlu0 %3145
    %3147 = vrot.lane.b32.xlu0 %v288, 112
    %v3148 = vpop.permute.xlu0 %3147
    %v3149 = vsel %vm443, %v3146, 0
    %v3151 = vsel %vm443, %v3148, 0
    %3153 = vmatpush.xpose.msra.mxu0 0.0
    %3154 = vmatpush.xpose.msra.mxu0 0.0
    %3155 = vmatpush.xpose.msra.mxu0 0.0
    %3156 = vmatpush.xpose.msra.mxu0 0.0
    %3157 = vmatpush.xpose.msra.mxu0 0.0
    %3158 = vmatpush.xpose.msra.mxu0 0.0
    %3159 = vmatpush.xpose.msra.mxu0 0.0
    %3160 = vmatpush.xpose.msra.mxu0 0.0
    %3161 = vmatpush.xpose.msra.mxu0 0.0
    %3162 = vmatpush.xpose.msra.mxu0 0.0
    %3163 = vmatpush.xpose.msra.mxu0 0.0
    %3164 = vmatpush.xpose.msra.mxu0 0.0
    %3165 = vmatpush.xpose.msra.mxu0 0.0
    %3166 = vmatpush.xpose.msra.mxu0 0.0
    %3167 = vmatpush.xpose.msra.mxu0 0.0
    %3168 = vmatpush.xpose.msra.mxu0 %v3151
    %3169 = vmatmul.f32.gmra.mxu0 %v3149
    %v3170 = vpop.f32.mrf.mxu0
    %v3171 = vadd.f32 0.0, %v3170
    %3172 = vdwg.mxu0
    %3173 = vrot.lane.b32.xlu0 %v168, 112
    %v3174 = vpop.permute.xlu0 %3173
    %3175 = vrot.lane.b32.xlu0 %v291, 112
    %v3176 = vpop.permute.xlu0 %3175
    %v3177 = vsel %vm443, %v3174, 0
    %v3179 = vsel %vm443, %v3176, 0
    %3181 = vmatpush.xpose.msra.mxu0 0.0
    %3182 = vmatpush.xpose.msra.mxu0 0.0
    %3183 = vmatpush.xpose.msra.mxu0 0.0
    %3184 = vmatpush.xpose.msra.mxu0 0.0
    %3185 = vmatpush.xpose.msra.mxu0 0.0
    %3186 = vmatpush.xpose.msra.mxu0 0.0
    %3187 = vmatpush.xpose.msra.mxu0 0.0
    %3188 = vmatpush.xpose.msra.mxu0 0.0
    %3189 = vmatpush.xpose.msra.mxu0 0.0
    %3190 = vmatpush.xpose.msra.mxu0 0.0
    %3191 = vmatpush.xpose.msra.mxu0 0.0
    %3192 = vmatpush.xpose.msra.mxu0 0.0
    %3193 = vmatpush.xpose.msra.mxu0 0.0
    %3194 = vmatpush.xpose.msra.mxu0 0.0
    %3195 = vmatpush.xpose.msra.mxu0 0.0
    %3196 = vmatpush.xpose.msra.mxu0 %v3179
    %3197 = vmatmul.f32.gmra.mxu0 %v3177
    %v3198 = vpop.f32.mrf.mxu0
    %v3199 = vadd.f32 0.0, %v3198
    %3200 = vdwg.mxu0
    %3201 = vrot.lane.b32.xlu0 %v171, 112
    %v3202 = vpop.permute.xlu0 %3201
    %3203 = vrot.lane.b32.xlu0 %v294, 112
    %v3204 = vpop.permute.xlu0 %3203
    %v3205 = vsel %vm443, %v3202, 0
    %v3207 = vsel %vm443, %v3204, 0
    %3209 = vmatpush.xpose.msra.mxu0 0.0
    %3210 = vmatpush.xpose.msra.mxu0 0.0
    %3211 = vmatpush.xpose.msra.mxu0 0.0
    %3212 = vmatpush.xpose.msra.mxu0 0.0
    %3213 = vmatpush.xpose.msra.mxu0 0.0
    %3214 = vmatpush.xpose.msra.mxu0 0.0
    %3215 = vmatpush.xpose.msra.mxu0 0.0
    %3216 = vmatpush.xpose.msra.mxu0 0.0
    %3217 = vmatpush.xpose.msra.mxu0 0.0
    %3218 = vmatpush.xpose.msra.mxu0 0.0
    %3219 = vmatpush.xpose.msra.mxu0 0.0
    %3220 = vmatpush.xpose.msra.mxu0 0.0
    %3221 = vmatpush.xpose.msra.mxu0 0.0
    %3222 = vmatpush.xpose.msra.mxu0 0.0
    %3223 = vmatpush.xpose.msra.mxu0 0.0
    %3224 = vmatpush.xpose.msra.mxu0 %v3207
    %3225 = vmatmul.f32.gmra.mxu0 %v3205
    %v3226 = vpop.f32.mrf.mxu0
    %v3227 = vadd.f32 0.0, %v3226
    %3228 = vdwg.mxu0
    %3229 = vrot.lane.b32.xlu0 %v174, 112
    %v3230 = vpop.permute.xlu0 %3229
    %3231 = vrot.lane.b32.xlu0 %v297, 112
    %v3232 = vpop.permute.xlu0 %3231
    %v3233 = vsel %vm443, %v3230, 0
    %v3235 = vsel %vm443, %v3232, 0
    %3237 = vmatpush.xpose.msra.mxu0 0.0
    %3238 = vmatpush.xpose.msra.mxu0 0.0
    %3239 = vmatpush.xpose.msra.mxu0 0.0
    %3240 = vmatpush.xpose.msra.mxu0 0.0
    %3241 = vmatpush.xpose.msra.mxu0 0.0
    %3242 = vmatpush.xpose.msra.mxu0 0.0
    %3243 = vmatpush.xpose.msra.mxu0 0.0
    %3244 = vmatpush.xpose.msra.mxu0 0.0
    %3245 = vmatpush.xpose.msra.mxu0 0.0
    %3246 = vmatpush.xpose.msra.mxu0 0.0
    %3247 = vmatpush.xpose.msra.mxu0 0.0
    %3248 = vmatpush.xpose.msra.mxu0 0.0
    %3249 = vmatpush.xpose.msra.mxu0 0.0
    %3250 = vmatpush.xpose.msra.mxu0 0.0
    %3251 = vmatpush.xpose.msra.mxu0 0.0
    %3252 = vmatpush.xpose.msra.mxu0 %v3235
    %3253 = vmatmul.f32.gmra.mxu0 %v3233
    %v3254 = vpop.f32.mrf.mxu0
    %v3255 = vadd.f32 0.0, %v3254
    %3256 = vdwg.mxu0
    %3257 = vrot.lane.b32.xlu0 %v177, 112
    %v3258 = vpop.permute.xlu0 %3257
    %3259 = vrot.lane.b32.xlu0 %v300, 112
    %v3260 = vpop.permute.xlu0 %3259
    %v3261 = vsel %vm443, %v3258, 0
    %v3263 = vsel %vm443, %v3260, 0
    %3265 = vmatpush.xpose.msra.mxu0 0.0
    %3266 = vmatpush.xpose.msra.mxu0 0.0
    %3267 = vmatpush.xpose.msra.mxu0 0.0
    %3268 = vmatpush.xpose.msra.mxu0 0.0
    %3269 = vmatpush.xpose.msra.mxu0 0.0
    %3270 = vmatpush.xpose.msra.mxu0 0.0
    %3271 = vmatpush.xpose.msra.mxu0 0.0
    %3272 = vmatpush.xpose.msra.mxu0 0.0
    %3273 = vmatpush.xpose.msra.mxu0 0.0
    %3274 = vmatpush.xpose.msra.mxu0 0.0
    %3275 = vmatpush.xpose.msra.mxu0 0.0
    %3276 = vmatpush.xpose.msra.mxu0 0.0
    %3277 = vmatpush.xpose.msra.mxu0 0.0
    %3278 = vmatpush.xpose.msra.mxu0 0.0
    %3279 = vmatpush.xpose.msra.mxu0 0.0
    %3280 = vmatpush.xpose.msra.mxu0 %v3263
    %3281 = vmatmul.f32.gmra.mxu0 %v3261
    %v3282 = vpop.f32.mrf.mxu0
    %v3283 = vadd.f32 0.0, %v3282
    %3284 = vdwg.mxu0
    %3285 = vrot.lane.b32.xlu0 %v180, 112
    %v3286 = vpop.permute.xlu0 %3285
    %3287 = vrot.lane.b32.xlu0 %v303, 112
    %v3288 = vpop.permute.xlu0 %3287
    %v3289 = vsel %vm443, %v3286, 0
    %v3291 = vsel %vm443, %v3288, 0
    %3293 = vmatpush.xpose.msra.mxu0 0.0
    %3294 = vmatpush.xpose.msra.mxu0 0.0
    %3295 = vmatpush.xpose.msra.mxu0 0.0
    %3296 = vmatpush.xpose.msra.mxu0 0.0
    %3297 = vmatpush.xpose.msra.mxu0 0.0
    %3298 = vmatpush.xpose.msra.mxu0 0.0
    %3299 = vmatpush.xpose.msra.mxu0 0.0
    %3300 = vmatpush.xpose.msra.mxu0 0.0
    %3301 = vmatpush.xpose.msra.mxu0 0.0
    %3302 = vmatpush.xpose.msra.mxu0 0.0
    %3303 = vmatpush.xpose.msra.mxu0 0.0
    %3304 = vmatpush.xpose.msra.mxu0 0.0
    %3305 = vmatpush.xpose.msra.mxu0 0.0
    %3306 = vmatpush.xpose.msra.mxu0 0.0
    %3307 = vmatpush.xpose.msra.mxu0 0.0
    %3308 = vmatpush.xpose.msra.mxu0 %v3291
    %3309 = vmatmul.f32.gmra.mxu0 %v3289
    %v3310 = vpop.f32.mrf.mxu0
    %v3311 = vadd.f32 0.0, %v3310
    %3312 = vdwg.mxu0
    %3313 = vrot.lane.b32.xlu0 %v183, 112
    %v3314 = vpop.permute.xlu0 %3313
    %3315 = vrot.lane.b32.xlu0 %v306, 112
    %v3316 = vpop.permute.xlu0 %3315
    %v3317 = vsel %vm443, %v3314, 0
    %v3319 = vsel %vm443, %v3316, 0
    %3321 = vmatpush.xpose.msra.mxu0 0.0
    %3322 = vmatpush.xpose.msra.mxu0 0.0
    %3323 = vmatpush.xpose.msra.mxu0 0.0
    %3324 = vmatpush.xpose.msra.mxu0 0.0
    %3325 = vmatpush.xpose.msra.mxu0 0.0
    %3326 = vmatpush.xpose.msra.mxu0 0.0
    %3327 = vmatpush.xpose.msra.mxu0 0.0
    %3328 = vmatpush.xpose.msra.mxu0 0.0
    %3329 = vmatpush.xpose.msra.mxu0 0.0
    %3330 = vmatpush.xpose.msra.mxu0 0.0
    %3331 = vmatpush.xpose.msra.mxu0 0.0
    %3332 = vmatpush.xpose.msra.mxu0 0.0
    %3333 = vmatpush.xpose.msra.mxu0 0.0
    %3334 = vmatpush.xpose.msra.mxu0 0.0
    %3335 = vmatpush.xpose.msra.mxu0 0.0
    %3336 = vmatpush.xpose.msra.mxu0 %v3319
    %3337 = vmatmul.f32.gmra.mxu0 %v3317
    %v3338 = vpop.f32.mrf.mxu0
    %v3339 = vadd.f32 0.0, %v3338
    %3340 = vdwg.mxu0
    %3341 = vrot.lane.b32.xlu0 %v186, 112
    %v3342 = vpop.permute.xlu0 %3341
    %3343 = vrot.lane.b32.xlu0 %v309, 112
    %v3344 = vpop.permute.xlu0 %3343
    %v3345 = vsel %vm443, %v3342, 0
    %v3347 = vsel %vm443, %v3344, 0
    %3349 = vmatpush.xpose.msra.mxu0 0.0
    %3350 = vmatpush.xpose.msra.mxu0 0.0
    %3351 = vmatpush.xpose.msra.mxu0 0.0
    %3352 = vmatpush.xpose.msra.mxu0 0.0
    %3353 = vmatpush.xpose.msra.mxu0 0.0
    %3354 = vmatpush.xpose.msra.mxu0 0.0
    %3355 = vmatpush.xpose.msra.mxu0 0.0
    %3356 = vmatpush.xpose.msra.mxu0 0.0
    %3357 = vmatpush.xpose.msra.mxu0 0.0
    %3358 = vmatpush.xpose.msra.mxu0 0.0
    %3359 = vmatpush.xpose.msra.mxu0 0.0
    %3360 = vmatpush.xpose.msra.mxu0 0.0
    %3361 = vmatpush.xpose.msra.mxu0 0.0
    %3362 = vmatpush.xpose.msra.mxu0 0.0
    %3363 = vmatpush.xpose.msra.mxu0 0.0
    %3364 = vmatpush.xpose.msra.mxu0 %v3347
    %3365 = vmatmul.f32.gmra.mxu0 %v3345
    %v3366 = vpop.f32.mrf.mxu0
    %v3367 = vadd.f32 0.0, %v3366
    %3368 = vdwg.mxu0
    %3369 = vrot.lane.b32.xlu0 %v189, 112
    %v3370 = vpop.permute.xlu0 %3369
    %3371 = vrot.lane.b32.xlu0 %v312, 112
    %v3372 = vpop.permute.xlu0 %3371
    %v3373 = vsel %vm443, %v3370, 0
    %v3375 = vsel %vm443, %v3372, 0
    %3377 = vmatpush.xpose.msra.mxu0 0.0
    %3378 = vmatpush.xpose.msra.mxu0 0.0
    %3379 = vmatpush.xpose.msra.mxu0 0.0
    %3380 = vmatpush.xpose.msra.mxu0 0.0
    %3381 = vmatpush.xpose.msra.mxu0 0.0
    %3382 = vmatpush.xpose.msra.mxu0 0.0
    %3383 = vmatpush.xpose.msra.mxu0 0.0
    %3384 = vmatpush.xpose.msra.mxu0 0.0
    %3385 = vmatpush.xpose.msra.mxu0 0.0
    %3386 = vmatpush.xpose.msra.mxu0 0.0
    %3387 = vmatpush.xpose.msra.mxu0 0.0
    %3388 = vmatpush.xpose.msra.mxu0 0.0
    %3389 = vmatpush.xpose.msra.mxu0 0.0
    %3390 = vmatpush.xpose.msra.mxu0 0.0
    %3391 = vmatpush.xpose.msra.mxu0 0.0
    %3392 = vmatpush.xpose.msra.mxu0 %v3375
    %3393 = vmatmul.f32.gmra.mxu0 %v3373
    %v3394 = vpop.f32.mrf.mxu0
    %v3395 = vadd.f32 0.0, %v3394
    %3396 = vdwg.mxu0
    %3397 = vrot.lane.b32.xlu0 %v192, 112
    %v3398 = vpop.permute.xlu0 %3397
    %3399 = vrot.lane.b32.xlu0 %v315, 112
    %v3400 = vpop.permute.xlu0 %3399
    %v3401 = vsel %vm443, %v3398, 0
    %v3403 = vsel %vm443, %v3400, 0
    %3405 = vmatpush.xpose.msra.mxu0 0.0
    %3406 = vmatpush.xpose.msra.mxu0 0.0
    %3407 = vmatpush.xpose.msra.mxu0 0.0
    %3408 = vmatpush.xpose.msra.mxu0 0.0
    %3409 = vmatpush.xpose.msra.mxu0 0.0
    %3410 = vmatpush.xpose.msra.mxu0 0.0
    %3411 = vmatpush.xpose.msra.mxu0 0.0
    %3412 = vmatpush.xpose.msra.mxu0 0.0
    %3413 = vmatpush.xpose.msra.mxu0 0.0
    %3414 = vmatpush.xpose.msra.mxu0 0.0
    %3415 = vmatpush.xpose.msra.mxu0 0.0
    %3416 = vmatpush.xpose.msra.mxu0 0.0
    %3417 = vmatpush.xpose.msra.mxu0 0.0
    %3418 = vmatpush.xpose.msra.mxu0 0.0
    %3419 = vmatpush.xpose.msra.mxu0 0.0
    %3420 = vmatpush.xpose.msra.mxu0 %v3403
    %3421 = vmatmul.f32.gmra.mxu0 %v3401
    %v3422 = vpop.f32.mrf.mxu0
    %v3423 = vadd.f32 0.0, %v3422
    %3424 = vdwg.mxu0
    %3425 = vrot.lane.b32.xlu0 %v195, 112
    %v3426 = vpop.permute.xlu0 %3425
    %3427 = vrot.lane.b32.xlu0 %v318, 112
    %v3428 = vpop.permute.xlu0 %3427
    %v3429 = vsel %vm443, %v3426, 0
    %v3431 = vsel %vm443, %v3428, 0
    %3433 = vmatpush.xpose.msra.mxu0 0.0
    %3434 = vmatpush.xpose.msra.mxu0 0.0
    %3435 = vmatpush.xpose.msra.mxu0 0.0
    %3436 = vmatpush.xpose.msra.mxu0 0.0
    %3437 = vmatpush.xpose.msra.mxu0 0.0
    %3438 = vmatpush.xpose.msra.mxu0 0.0
    %3439 = vmatpush.xpose.msra.mxu0 0.0
    %3440 = vmatpush.xpose.msra.mxu0 0.0
    %3441 = vmatpush.xpose.msra.mxu0 0.0
    %3442 = vmatpush.xpose.msra.mxu0 0.0
    %3443 = vmatpush.xpose.msra.mxu0 0.0
    %3444 = vmatpush.xpose.msra.mxu0 0.0
    %3445 = vmatpush.xpose.msra.mxu0 0.0
    %3446 = vmatpush.xpose.msra.mxu0 0.0
    %3447 = vmatpush.xpose.msra.mxu0 0.0
    %3448 = vmatpush.xpose.msra.mxu0 %v3431
    %3449 = vmatmul.f32.gmra.mxu0 %v3429
    %v3450 = vpop.f32.mrf.mxu0
    %v3451 = vadd.f32 0.0, %v3450
    %3452 = vdwg.mxu0
    %v3453 = vmul.f32 %v3031, 0.35355338
    %v3454 = vmul.f32 %v3059, 0.35355338
    %v3455 = vmul.f32 %v3087, 0.35355338
    %v3456 = vmul.f32 %v3115, 0.35355338
    %v3457 = vmul.f32 %v3143, 0.35355338
    %v3458 = vmul.f32 %v3171, 0.35355338
    %v3459 = vmul.f32 %v3199, 0.35355338
    %v3460 = vmul.f32 %v3227, 0.35355338
    %v3461 = vmul.f32 %v3255, 0.35355338
    %v3462 = vmul.f32 %v3283, 0.35355338
    %v3463 = vmul.f32 %v3311, 0.35355338
    %v3464 = vmul.f32 %v3339, 0.35355338
    %v3465 = vmul.f32 %v3367, 0.35355338
    %v3466 = vmul.f32 %v3395, 0.35355338
    %v3467 = vmul.f32 %v3423, 0.35355338
    %v3468 = vmul.f32 %v3451, 0.35355338
    %v3469 = vsel %vm443, %v3453, -inf
    %3470 = vmax.xlane.f32.xlu0 %v3469
    %v3471 = vpop.xlane.xlu0 %3470
    %v3472 = vsel %vm443, %v3454, -inf
    %3473 = vmax.xlane.f32.xlu0 %v3472
    %v3474 = vpop.xlane.xlu0 %3473
    %v3475 = vsel %vm443, %v3455, -inf
    %3476 = vmax.xlane.f32.xlu0 %v3475
    %v3477 = vpop.xlane.xlu0 %3476
    %v3478 = vsel %vm443, %v3456, -inf
    %3479 = vmax.xlane.f32.xlu0 %v3478
    %v3480 = vpop.xlane.xlu0 %3479
    %v3481 = vsel %vm443, %v3457, -inf
    %3482 = vmax.xlane.f32.xlu0 %v3481
    %v3483 = vpop.xlane.xlu0 %3482
    %v3484 = vsel %vm443, %v3458, -inf
    %3485 = vmax.xlane.f32.xlu0 %v3484
    %v3486 = vpop.xlane.xlu0 %3485
    %v3487 = vsel %vm443, %v3459, -inf
    %3488 = vmax.xlane.f32.xlu0 %v3487
    %v3489 = vpop.xlane.xlu0 %3488
    %v3490 = vsel %vm443, %v3460, -inf
    %3491 = vmax.xlane.f32.xlu0 %v3490
    %v3492 = vpop.xlane.xlu0 %3491
    %v3493 = vsel %vm443, %v3461, -inf
    %3494 = vmax.xlane.f32.xlu0 %v3493
    %v3495 = vpop.xlane.xlu0 %3494
    %v3496 = vsel %vm443, %v3462, -inf
    %3497 = vmax.xlane.f32.xlu0 %v3496
    %v3498 = vpop.xlane.xlu0 %3497
    %v3499 = vsel %vm443, %v3463, -inf
    %3500 = vmax.xlane.f32.xlu0 %v3499
    %v3501 = vpop.xlane.xlu0 %3500
    %v3502 = vsel %vm443, %v3464, -inf
    %3503 = vmax.xlane.f32.xlu0 %v3502
    %v3504 = vpop.xlane.xlu0 %3503
    %v3505 = vsel %vm443, %v3465, -inf
    %3506 = vmax.xlane.f32.xlu0 %v3505
    %v3507 = vpop.xlane.xlu0 %3506
    %v3508 = vsel %vm443, %v3466, -inf
    %3509 = vmax.xlane.f32.xlu0 %v3508
    %v3510 = vpop.xlane.xlu0 %3509
    %v3511 = vsel %vm443, %v3467, -inf
    %3512 = vmax.xlane.f32.xlu0 %v3511
    %v3513 = vpop.xlane.xlu0 %3512
    %v3514 = vsel %vm443, %v3468, -inf
    %3515 = vmax.xlane.f32.xlu0 %v3514
    %v3516 = vpop.xlane.xlu0 %3515
    %v3517 = vsub.f32 %v3453, %v3471
    %v3518 = vsub.f32 %v3454, %v3474
    %v3519 = vsub.f32 %v3455, %v3477
    %v3520 = vsub.f32 %v3456, %v3480
    %v3521 = vsub.f32 %v3457, %v3483
    %v3522 = vsub.f32 %v3458, %v3486
    %v3523 = vsub.f32 %v3459, %v3489
    %v3524 = vsub.f32 %v3460, %v3492
    %v3525 = vsub.f32 %v3461, %v3495
    %v3526 = vsub.f32 %v3462, %v3498
    %v3527 = vsub.f32 %v3463, %v3501
    %v3528 = vsub.f32 %v3464, %v3504
    %v3529 = vsub.f32 %v3465, %v3507
    %v3530 = vsub.f32 %v3466, %v3510
    %v3531 = vsub.f32 %v3467, %v3513
    %v3532 = vsub.f32 %v3468, %v3516
    %v3533 = vmul.f32 %v3517, 1.442695
    %v3534 = vpow.pop %v3533
    %v3535 = vmul.f32 %v3518, 1.442695
    %v3536 = vpow.pop %v3535
    %v3537 = vmul.f32 %v3519, 1.442695
    %v3538 = vpow.pop %v3537
    %v3539 = vmul.f32 %v3520, 1.442695
    %v3540 = vpow.pop %v3539
    %v3541 = vmul.f32 %v3521, 1.442695
    %v3542 = vpow.pop %v3541
    %v3543 = vmul.f32 %v3522, 1.442695
    %v3544 = vpow.pop %v3543
    %v3545 = vmul.f32 %v3523, 1.442695
    %v3546 = vpow.pop %v3545
    %v3547 = vmul.f32 %v3524, 1.442695
    %v3548 = vpow.pop %v3547
    %v3549 = vmul.f32 %v3525, 1.442695
    %v3550 = vpow.pop %v3549
    %v3551 = vmul.f32 %v3526, 1.442695
    %v3552 = vpow.pop %v3551
    %v3553 = vmul.f32 %v3527, 1.442695
    %v3554 = vpow.pop %v3553
    %v3555 = vmul.f32 %v3528, 1.442695
    %v3556 = vpow.pop %v3555
    %v3557 = vmul.f32 %v3529, 1.442695
    %v3558 = vpow.pop %v3557
    %v3559 = vmul.f32 %v3530, 1.442695
    %v3560 = vpow.pop %v3559
    %v3561 = vmul.f32 %v3531, 1.442695
    %v3562 = vpow.pop %v3561
    %v3563 = vmul.f32 %v3532, 1.442695
    %v3564 = vpow.pop %v3563
    %v3565 = vsel %vm443, %v3534, 0.0
    %3566 = vadd.xlane.f32.xlu0 %v3565
    %v3567 = vpop.xlane.xlu0 %3566
    %v3568 = vsel %vm443, %v3536, 0.0
    %3569 = vadd.xlane.f32.xlu0 %v3568
    %v3570 = vpop.xlane.xlu0 %3569
    %v3571 = vsel %vm443, %v3538, 0.0
    %3572 = vadd.xlane.f32.xlu0 %v3571
    %v3573 = vpop.xlane.xlu0 %3572
    %v3574 = vsel %vm443, %v3540, 0.0
    %3575 = vadd.xlane.f32.xlu0 %v3574
    %v3576 = vpop.xlane.xlu0 %3575
    %v3577 = vsel %vm443, %v3542, 0.0
    %3578 = vadd.xlane.f32.xlu0 %v3577
    %v3579 = vpop.xlane.xlu0 %3578
    %v3580 = vsel %vm443, %v3544, 0.0
    %3581 = vadd.xlane.f32.xlu0 %v3580
    %v3582 = vpop.xlane.xlu0 %3581
    %v3583 = vsel %vm443, %v3546, 0.0
    %3584 = vadd.xlane.f32.xlu0 %v3583
    %v3585 = vpop.xlane.xlu0 %3584
    %v3586 = vsel %vm443, %v3548, 0.0
    %3587 = vadd.xlane.f32.xlu0 %v3586
    %v3588 = vpop.xlane.xlu0 %3587
    %v3589 = vsel %vm443, %v3550, 0.0
    %3590 = vadd.xlane.f32.xlu0 %v3589
    %v3591 = vpop.xlane.xlu0 %3590
    %v3592 = vsel %vm443, %v3552, 0.0
    %3593 = vadd.xlane.f32.xlu0 %v3592
    %v3594 = vpop.xlane.xlu0 %3593
    %v3595 = vsel %vm443, %v3554, 0.0
    %3596 = vadd.xlane.f32.xlu0 %v3595
    %v3597 = vpop.xlane.xlu0 %3596
    %v3598 = vsel %vm443, %v3556, 0.0
    %3599 = vadd.xlane.f32.xlu0 %v3598
    %v3600 = vpop.xlane.xlu0 %3599
    %v3601 = vsel %vm443, %v3558, 0.0
    %3602 = vadd.xlane.f32.xlu0 %v3601
    %v3603 = vpop.xlane.xlu0 %3602
    %v3604 = vsel %vm443, %v3560, 0.0
    %3605 = vadd.xlane.f32.xlu0 %v3604
    %v3606 = vpop.xlane.xlu0 %3605
    %v3607 = vsel %vm443, %v3562, 0.0
    %3608 = vadd.xlane.f32.xlu0 %v3607
    %v3609 = vpop.xlane.xlu0 %3608
    %v3610 = vsel %vm443, %v3564, 0.0
    %3611 = vadd.xlane.f32.xlu0 %v3610
    %v3612 = vpop.xlane.xlu0 %3611
    %v3613 = vrcp.pop %v3567
    %v3614 = vmul.f32 %v3567, %v3613
    %v3615 = vsub.f32 1.0, %v3614
    %v3616 = vmul.f32 %v3613, %v3615
    %v3617 = vadd.f32 %v3613, %v3616
    %vm3618 = vweird.f32 %v3567
    %vm3619 = vweird.f32 %v3613
    %vm3620 = vmor %vm3618, %vm3619
    %v3621 = vsel %vm3620, %v3613, %v3617
    %v3622 = vand.u32 2147483647, %v3567
    %vm3623 = vcmp.eq.f32.partialorder %v3622, 8.507059e+37
    %v3624 = vand.u32 %v3567, 2147483648
    %v3625 = vor.u32 1.1754944e-38, %v3624
    %v3626 = vsel %vm3623, %v3625, %v3621
    %v3627 = vmul.f32 %v3534, %v3626
    %v3628 = vrcp.pop %v3570
    %v3629 = vmul.f32 %v3570, %v3628
    %v3630 = vsub.f32 1.0, %v3629
    %v3631 = vmul.f32 %v3628, %v3630
    %v3632 = vadd.f32 %v3628, %v3631
    %vm3633 = vweird.f32 %v3570
    %vm3634 = vweird.f32 %v3628
    %vm3635 = vmor %vm3633, %vm3634
    %v3636 = vsel %vm3635, %v3628, %v3632
    %v3637 = vand.u32 2147483647, %v3570
    %vm3638 = vcmp.eq.f32.partialorder %v3637, 8.507059e+37
    %v3639 = vand.u32 %v3570, 2147483648
    %v3640 = vor.u32 1.1754944e-38, %v3639
    %v3641 = vsel %vm3638, %v3640, %v3636
    %v3642 = vmul.f32 %v3536, %v3641
    %v3643 = vrcp.pop %v3573
    %v3644 = vmul.f32 %v3573, %v3643
    %v3645 = vsub.f32 1.0, %v3644
    %v3646 = vmul.f32 %v3643, %v3645
    %v3647 = vadd.f32 %v3643, %v3646
    %vm3648 = vweird.f32 %v3573
    %vm3649 = vweird.f32 %v3643
    %vm3650 = vmor %vm3648, %vm3649
    %v3651 = vsel %vm3650, %v3643, %v3647
    %v3652 = vand.u32 2147483647, %v3573
    %vm3653 = vcmp.eq.f32.partialorder %v3652, 8.507059e+37
    %v3654 = vand.u32 %v3573, 2147483648
    %v3655 = vor.u32 1.1754944e-38, %v3654
    %v3656 = vsel %vm3653, %v3655, %v3651
    %v3657 = vmul.f32 %v3538, %v3656
    %v3658 = vrcp.pop %v3576
    %v3659 = vmul.f32 %v3576, %v3658
    %v3660 = vsub.f32 1.0, %v3659
    %v3661 = vmul.f32 %v3658, %v3660
    %v3662 = vadd.f32 %v3658, %v3661
    %vm3663 = vweird.f32 %v3576
    %vm3664 = vweird.f32 %v3658
    %vm3665 = vmor %vm3663, %vm3664
    %v3666 = vsel %vm3665, %v3658, %v3662
    %v3667 = vand.u32 2147483647, %v3576
    %vm3668 = vcmp.eq.f32.partialorder %v3667, 8.507059e+37
    %v3669 = vand.u32 %v3576, 2147483648
    %v3670 = vor.u32 1.1754944e-38, %v3669
    %v3671 = vsel %vm3668, %v3670, %v3666
    %v3672 = vmul.f32 %v3540, %v3671
    %v3673 = vrcp.pop %v3579
    %v3674 = vmul.f32 %v3579, %v3673
    %v3675 = vsub.f32 1.0, %v3674
    %v3676 = vmul.f32 %v3673, %v3675
    %v3677 = vadd.f32 %v3673, %v3676
    %vm3678 = vweird.f32 %v3579
    %vm3679 = vweird.f32 %v3673
    %vm3680 = vmor %vm3678, %vm3679
    %v3681 = vsel %vm3680, %v3673, %v3677
    %v3682 = vand.u32 2147483647, %v3579
    %vm3683 = vcmp.eq.f32.partialorder %v3682, 8.507059e+37
    %v3684 = vand.u32 %v3579, 2147483648
    %v3685 = vor.u32 1.1754944e-38, %v3684
    %v3686 = vsel %vm3683, %v3685, %v3681
    %v3687 = vmul.f32 %v3542, %v3686
    %v3688 = vrcp.pop %v3582
    %v3689 = vmul.f32 %v3582, %v3688
    %v3690 = vsub.f32 1.0, %v3689
    %v3691 = vmul.f32 %v3688, %v3690
    %v3692 = vadd.f32 %v3688, %v3691
    %vm3693 = vweird.f32 %v3582
    %vm3694 = vweird.f32 %v3688
    %vm3695 = vmor %vm3693, %vm3694
    %v3696 = vsel %vm3695, %v3688, %v3692
    %v3697 = vand.u32 2147483647, %v3582
    %vm3698 = vcmp.eq.f32.partialorder %v3697, 8.507059e+37
    %v3699 = vand.u32 %v3582, 2147483648
    %v3700 = vor.u32 1.1754944e-38, %v3699
    %v3701 = vsel %vm3698, %v3700, %v3696
    %v3702 = vmul.f32 %v3544, %v3701
    %v3703 = vrcp.pop %v3585
    %v3704 = vmul.f32 %v3585, %v3703
    %v3705 = vsub.f32 1.0, %v3704
    %v3706 = vmul.f32 %v3703, %v3705
    %v3707 = vadd.f32 %v3703, %v3706
    %vm3708 = vweird.f32 %v3585
    %vm3709 = vweird.f32 %v3703
    %vm3710 = vmor %vm3708, %vm3709
    %v3711 = vsel %vm3710, %v3703, %v3707
    %v3712 = vand.u32 2147483647, %v3585
    %vm3713 = vcmp.eq.f32.partialorder %v3712, 8.507059e+37
    %v3714 = vand.u32 %v3585, 2147483648
    %v3715 = vor.u32 1.1754944e-38, %v3714
    %v3716 = vsel %vm3713, %v3715, %v3711
    %v3717 = vmul.f32 %v3546, %v3716
    %v3718 = vrcp.pop %v3588
    %v3719 = vmul.f32 %v3588, %v3718
    %v3720 = vsub.f32 1.0, %v3719
    %v3721 = vmul.f32 %v3718, %v3720
    %v3722 = vadd.f32 %v3718, %v3721
    %vm3723 = vweird.f32 %v3588
    %vm3724 = vweird.f32 %v3718
    %vm3725 = vmor %vm3723, %vm3724
    %v3726 = vsel %vm3725, %v3718, %v3722
    %v3727 = vand.u32 2147483647, %v3588
    %vm3728 = vcmp.eq.f32.partialorder %v3727, 8.507059e+37
    %v3729 = vand.u32 %v3588, 2147483648
    %v3730 = vor.u32 1.1754944e-38, %v3729
    %v3731 = vsel %vm3728, %v3730, %v3726
    %v3732 = vmul.f32 %v3548, %v3731
    %v3733 = vrcp.pop %v3591
    %v3734 = vmul.f32 %v3591, %v3733
    %v3735 = vsub.f32 1.0, %v3734
    %v3736 = vmul.f32 %v3733, %v3735
    %v3737 = vadd.f32 %v3733, %v3736
    %vm3738 = vweird.f32 %v3591
    %vm3739 = vweird.f32 %v3733
    %vm3740 = vmor %vm3738, %vm3739
    %v3741 = vsel %vm3740, %v3733, %v3737
    %v3742 = vand.u32 2147483647, %v3591
    %vm3743 = vcmp.eq.f32.partialorder %v3742, 8.507059e+37
    %v3744 = vand.u32 %v3591, 2147483648
    %v3745 = vor.u32 1.1754944e-38, %v3744
    %v3746 = vsel %vm3743, %v3745, %v3741
    %v3747 = vmul.f32 %v3550, %v3746
    %v3748 = vrcp.pop %v3594
    %v3749 = vmul.f32 %v3594, %v3748
    %v3750 = vsub.f32 1.0, %v3749
    %v3751 = vmul.f32 %v3748, %v3750
    %v3752 = vadd.f32 %v3748, %v3751
    %vm3753 = vweird.f32 %v3594
    %vm3754 = vweird.f32 %v3748
    %vm3755 = vmor %vm3753, %vm3754
    %v3756 = vsel %vm3755, %v3748, %v3752
    %v3757 = vand.u32 2147483647, %v3594
    %vm3758 = vcmp.eq.f32.partialorder %v3757, 8.507059e+37
    %v3759 = vand.u32 %v3594, 2147483648
    %v3760 = vor.u32 1.1754944e-38, %v3759
    %v3761 = vsel %vm3758, %v3760, %v3756
    %v3762 = vmul.f32 %v3552, %v3761
    %v3763 = vrcp.pop %v3597
    %v3764 = vmul.f32 %v3597, %v3763
    %v3765 = vsub.f32 1.0, %v3764
    %v3766 = vmul.f32 %v3763, %v3765
    %v3767 = vadd.f32 %v3763, %v3766
    %vm3768 = vweird.f32 %v3597
    %vm3769 = vweird.f32 %v3763
    %vm3770 = vmor %vm3768, %vm3769
    %v3771 = vsel %vm3770, %v3763, %v3767
    %v3772 = vand.u32 2147483647, %v3597
    %vm3773 = vcmp.eq.f32.partialorder %v3772, 8.507059e+37
    %v3774 = vand.u32 %v3597, 2147483648
    %v3775 = vor.u32 1.1754944e-38, %v3774
    %v3776 = vsel %vm3773, %v3775, %v3771
    %v3777 = vmul.f32 %v3554, %v3776
    %v3778 = vrcp.pop %v3600
    %v3779 = vmul.f32 %v3600, %v3778
    %v3780 = vsub.f32 1.0, %v3779
    %v3781 = vmul.f32 %v3778, %v3780
    %v3782 = vadd.f32 %v3778, %v3781
    %vm3783 = vweird.f32 %v3600
    %vm3784 = vweird.f32 %v3778
    %vm3785 = vmor %vm3783, %vm3784
    %v3786 = vsel %vm3785, %v3778, %v3782
    %v3787 = vand.u32 2147483647, %v3600
    %vm3788 = vcmp.eq.f32.partialorder %v3787, 8.507059e+37
    %v3789 = vand.u32 %v3600, 2147483648
    %v3790 = vor.u32 1.1754944e-38, %v3789
    %v3791 = vsel %vm3788, %v3790, %v3786
    %v3792 = vmul.f32 %v3556, %v3791
    %v3793 = vrcp.pop %v3603
    %v3794 = vmul.f32 %v3603, %v3793
    %v3795 = vsub.f32 1.0, %v3794
    %v3796 = vmul.f32 %v3793, %v3795
    %v3797 = vadd.f32 %v3793, %v3796
    %vm3798 = vweird.f32 %v3603
    %vm3799 = vweird.f32 %v3793
    %vm3800 = vmor %vm3798, %vm3799
    %v3801 = vsel %vm3800, %v3793, %v3797
    %v3802 = vand.u32 2147483647, %v3603
    %vm3803 = vcmp.eq.f32.partialorder %v3802, 8.507059e+37
    %v3804 = vand.u32 %v3603, 2147483648
    %v3805 = vor.u32 1.1754944e-38, %v3804
    %v3806 = vsel %vm3803, %v3805, %v3801
    %v3807 = vmul.f32 %v3558, %v3806
    %v3808 = vrcp.pop %v3606
    %v3809 = vmul.f32 %v3606, %v3808
    %v3810 = vsub.f32 1.0, %v3809
    %v3811 = vmul.f32 %v3808, %v3810
    %v3812 = vadd.f32 %v3808, %v3811
    %vm3813 = vweird.f32 %v3606
    %vm3814 = vweird.f32 %v3808
    %vm3815 = vmor %vm3813, %vm3814
    %v3816 = vsel %vm3815, %v3808, %v3812
    %v3817 = vand.u32 2147483647, %v3606
    %vm3818 = vcmp.eq.f32.partialorder %v3817, 8.507059e+37
    %v3819 = vand.u32 %v3606, 2147483648
    %v3820 = vor.u32 1.1754944e-38, %v3819
    %v3821 = vsel %vm3818, %v3820, %v3816
    %v3822 = vmul.f32 %v3560, %v3821
    %v3823 = vrcp.pop %v3609
    %v3824 = vmul.f32 %v3609, %v3823
    %v3825 = vsub.f32 1.0, %v3824
    %v3826 = vmul.f32 %v3823, %v3825
    %v3827 = vadd.f32 %v3823, %v3826
    %vm3828 = vweird.f32 %v3609
    %vm3829 = vweird.f32 %v3823
    %vm3830 = vmor %vm3828, %vm3829
    %v3831 = vsel %vm3830, %v3823, %v3827
    %v3832 = vand.u32 2147483647, %v3609
    %vm3833 = vcmp.eq.f32.partialorder %v3832, 8.507059e+37
    %v3834 = vand.u32 %v3609, 2147483648
    %v3835 = vor.u32 1.1754944e-38, %v3834
    %v3836 = vsel %vm3833, %v3835, %v3831
    %v3837 = vmul.f32 %v3562, %v3836
    %v3838 = vrcp.pop %v3612
    %v3839 = vmul.f32 %v3612, %v3838
    %v3840 = vsub.f32 1.0, %v3839
    %v3841 = vmul.f32 %v3838, %v3840
    %v3842 = vadd.f32 %v3838, %v3841
    %vm3843 = vweird.f32 %v3612
    %vm3844 = vweird.f32 %v3838
    %vm3845 = vmor %vm3843, %vm3844
    %v3846 = vsel %vm3845, %v3838, %v3842
    %v3847 = vand.u32 2147483647, %v3612
    %vm3848 = vcmp.eq.f32.partialorder %v3847, 8.507059e+37
    %v3849 = vand.u32 %v3612, 2147483648
    %v3850 = vor.u32 1.1754944e-38, %v3849
    %v3851 = vsel %vm3848, %v3850, %v3846
    %v3852 = vmul.f32 %v3564, %v3851
    %3853 = vrot.lane.b32.xlu0 %v396, 112
    %v3854 = vpop.permute.xlu0 %3853
    %v3857 = vsel %vm443, %v3627, 0
    %3859 = vmatpush.msra.mxu0 0.0
    %3860 = vmatpush.msra.mxu0 0.0
    %3861 = vmatpush.msra.mxu0 0.0
    %3862 = vmatpush.msra.mxu0 0.0
    %3863 = vmatpush.msra.mxu0 0.0
    %3864 = vmatpush.msra.mxu0 0.0
    %3865 = vmatpush.msra.mxu0 0.0
    %3866 = vmatpush.msra.mxu0 0.0
    %3867 = vmatpush.msra.mxu0 0.0
    %3868 = vmatpush.msra.mxu0 0.0
    %3869 = vmatpush.msra.mxu0 0.0
    %3870 = vmatpush.msra.mxu0 0.0
    %3871 = vmatpush.msra.mxu0 0.0
    %3872 = vmatpush.msra.mxu0 0.0
    %3873 = vmatpush.msra.mxu0 0.0
    %3874 = vmatpush.msra.mxu0 %v3854
    %3875 = vmatmul.f32.gmra.mxu0 %v3857
    %v3876 = vpop.f32.mrf.mxu0
    %v3877 = vadd.f32 0.0, %v3876
    %3878 = vdwg.mxu0
    %3879 = vrot.lane.b32.xlu0 %v399, 112
    %v3880 = vpop.permute.xlu0 %3879
    %v3883 = vsel %vm443, %v3642, 0
    %3885 = vmatpush.msra.mxu0 0.0
    %3886 = vmatpush.msra.mxu0 0.0
    %3887 = vmatpush.msra.mxu0 0.0
    %3888 = vmatpush.msra.mxu0 0.0
    %3889 = vmatpush.msra.mxu0 0.0
    %3890 = vmatpush.msra.mxu0 0.0
    %3891 = vmatpush.msra.mxu0 0.0
    %3892 = vmatpush.msra.mxu0 0.0
    %3893 = vmatpush.msra.mxu0 0.0
    %3894 = vmatpush.msra.mxu0 0.0
    %3895 = vmatpush.msra.mxu0 0.0
    %3896 = vmatpush.msra.mxu0 0.0
    %3897 = vmatpush.msra.mxu0 0.0
    %3898 = vmatpush.msra.mxu0 0.0
    %3899 = vmatpush.msra.mxu0 0.0
    %3900 = vmatpush.msra.mxu0 %v3880
    %3901 = vmatmul.f32.gmra.mxu0 %v3883
    %v3902 = vpop.f32.mrf.mxu0
    %v3903 = vadd.f32 0.0, %v3902
    %3904 = vdwg.mxu0
    %3905 = vrot.lane.b32.xlu0 %v402, 112
    %v3906 = vpop.permute.xlu0 %3905
    %v3909 = vsel %vm443, %v3657, 0
    %3911 = vmatpush.msra.mxu0 0.0
    %3912 = vmatpush.msra.mxu0 0.0
    %3913 = vmatpush.msra.mxu0 0.0
    %3914 = vmatpush.msra.mxu0 0.0
    %3915 = vmatpush.msra.mxu0 0.0
    %3916 = vmatpush.msra.mxu0 0.0
    %3917 = vmatpush.msra.mxu0 0.0
    %3918 = vmatpush.msra.mxu0 0.0
    %3919 = vmatpush.msra.mxu0 0.0
    %3920 = vmatpush.msra.mxu0 0.0
    %3921 = vmatpush.msra.mxu0 0.0
    %3922 = vmatpush.msra.mxu0 0.0
    %3923 = vmatpush.msra.mxu0 0.0
    %3924 = vmatpush.msra.mxu0 0.0
    %3925 = vmatpush.msra.mxu0 0.0
    %3926 = vmatpush.msra.mxu0 %v3906
    %3927 = vmatmul.f32.gmra.mxu0 %v3909
    %v3928 = vpop.f32.mrf.mxu0
    %v3929 = vadd.f32 0.0, %v3928
    %3930 = vdwg.mxu0
    %3931 = vrot.lane.b32.xlu0 %v405, 112
    %v3932 = vpop.permute.xlu0 %3931
    %v3935 = vsel %vm443, %v3672, 0
    %3937 = vmatpush.msra.mxu0 0.0
    %3938 = vmatpush.msra.mxu0 0.0
    %3939 = vmatpush.msra.mxu0 0.0
    %3940 = vmatpush.msra.mxu0 0.0
    %3941 = vmatpush.msra.mxu0 0.0
    %3942 = vmatpush.msra.mxu0 0.0
    %3943 = vmatpush.msra.mxu0 0.0
    %3944 = vmatpush.msra.mxu0 0.0
    %3945 = vmatpush.msra.mxu0 0.0
    %3946 = vmatpush.msra.mxu0 0.0
    %3947 = vmatpush.msra.mxu0 0.0
    %3948 = vmatpush.msra.mxu0 0.0
    %3949 = vmatpush.msra.mxu0 0.0
    %3950 = vmatpush.msra.mxu0 0.0
    %3951 = vmatpush.msra.mxu0 0.0
    %3952 = vmatpush.msra.mxu0 %v3932
    %3953 = vmatmul.f32.gmra.mxu0 %v3935
    %v3954 = vpop.f32.mrf.mxu0
    %v3955 = vadd.f32 0.0, %v3954
    %3956 = vdwg.mxu0
    %3957 = vrot.lane.b32.xlu0 %v408, 112
    %v3958 = vpop.permute.xlu0 %3957
    %v3961 = vsel %vm443, %v3687, 0
    %3963 = vmatpush.msra.mxu0 0.0
    %3964 = vmatpush.msra.mxu0 0.0
    %3965 = vmatpush.msra.mxu0 0.0
    %3966 = vmatpush.msra.mxu0 0.0
    %3967 = vmatpush.msra.mxu0 0.0
    %3968 = vmatpush.msra.mxu0 0.0
    %3969 = vmatpush.msra.mxu0 0.0
    %3970 = vmatpush.msra.mxu0 0.0
    %3971 = vmatpush.msra.mxu0 0.0
    %3972 = vmatpush.msra.mxu0 0.0
    %3973 = vmatpush.msra.mxu0 0.0
    %3974 = vmatpush.msra.mxu0 0.0
    %3975 = vmatpush.msra.mxu0 0.0
    %3976 = vmatpush.msra.mxu0 0.0
    %3977 = vmatpush.msra.mxu0 0.0
    %3978 = vmatpush.msra.mxu0 %v3958
    %3979 = vmatmul.f32.gmra.mxu0 %v3961
    %v3980 = vpop.f32.mrf.mxu0
    %v3981 = vadd.f32 0.0, %v3980
    %3982 = vdwg.mxu0
    %3983 = vrot.lane.b32.xlu0 %v411, 112
    %v3984 = vpop.permute.xlu0 %3983
    %v3987 = vsel %vm443, %v3702, 0
    %3989 = vmatpush.msra.mxu0 0.0
    %3990 = vmatpush.msra.mxu0 0.0
    %3991 = vmatpush.msra.mxu0 0.0
    %3992 = vmatpush.msra.mxu0 0.0
    %3993 = vmatpush.msra.mxu0 0.0
    %3994 = vmatpush.msra.mxu0 0.0
    %3995 = vmatpush.msra.mxu0 0.0
    %3996 = vmatpush.msra.mxu0 0.0
    %3997 = vmatpush.msra.mxu0 0.0
    %3998 = vmatpush.msra.mxu0 0.0
    %3999 = vmatpush.msra.mxu0 0.0
    %4000 = vmatpush.msra.mxu0 0.0
    %4001 = vmatpush.msra.mxu0 0.0
    %4002 = vmatpush.msra.mxu0 0.0
    %4003 = vmatpush.msra.mxu0 0.0
    %4004 = vmatpush.msra.mxu0 %v3984
    %4005 = vmatmul.f32.gmra.mxu0 %v3987
    %v4006 = vpop.f32.mrf.mxu0
    %v4007 = vadd.f32 0.0, %v4006
    %4008 = vdwg.mxu0
    %4009 = vrot.lane.b32.xlu0 %v414, 112
    %v4010 = vpop.permute.xlu0 %4009
    %v4013 = vsel %vm443, %v3717, 0
    %4015 = vmatpush.msra.mxu0 0.0
    %4016 = vmatpush.msra.mxu0 0.0
    %4017 = vmatpush.msra.mxu0 0.0
    %4018 = vmatpush.msra.mxu0 0.0
    %4019 = vmatpush.msra.mxu0 0.0
    %4020 = vmatpush.msra.mxu0 0.0
    %4021 = vmatpush.msra.mxu0 0.0
    %4022 = vmatpush.msra.mxu0 0.0
    %4023 = vmatpush.msra.mxu0 0.0
    %4024 = vmatpush.msra.mxu0 0.0
    %4025 = vmatpush.msra.mxu0 0.0
    %4026 = vmatpush.msra.mxu0 0.0
    %4027 = vmatpush.msra.mxu0 0.0
    %4028 = vmatpush.msra.mxu0 0.0
    %4029 = vmatpush.msra.mxu0 0.0
    %4030 = vmatpush.msra.mxu0 %v4010
    %4031 = vmatmul.f32.gmra.mxu0 %v4013
    %v4032 = vpop.f32.mrf.mxu0
    %v4033 = vadd.f32 0.0, %v4032
    %4034 = vdwg.mxu0
    %4035 = vrot.lane.b32.xlu0 %v417, 112
    %v4036 = vpop.permute.xlu0 %4035
    %v4039 = vsel %vm443, %v3732, 0
    %4041 = vmatpush.msra.mxu0 0.0
    %4042 = vmatpush.msra.mxu0 0.0
    %4043 = vmatpush.msra.mxu0 0.0
    %4044 = vmatpush.msra.mxu0 0.0
    %4045 = vmatpush.msra.mxu0 0.0
    %4046 = vmatpush.msra.mxu0 0.0
    %4047 = vmatpush.msra.mxu0 0.0
    %4048 = vmatpush.msra.mxu0 0.0
    %4049 = vmatpush.msra.mxu0 0.0
    %4050 = vmatpush.msra.mxu0 0.0
    %4051 = vmatpush.msra.mxu0 0.0
    %4052 = vmatpush.msra.mxu0 0.0
    %4053 = vmatpush.msra.mxu0 0.0
    %4054 = vmatpush.msra.mxu0 0.0
    %4055 = vmatpush.msra.mxu0 0.0
    %4056 = vmatpush.msra.mxu0 %v4036
    %4057 = vmatmul.f32.gmra.mxu0 %v4039
    %v4058 = vpop.f32.mrf.mxu0
    %v4059 = vadd.f32 0.0, %v4058
    %4060 = vdwg.mxu0
    %4061 = vrot.lane.b32.xlu0 %v420, 112
    %v4062 = vpop.permute.xlu0 %4061
    %v4065 = vsel %vm443, %v3747, 0
    %4067 = vmatpush.msra.mxu0 0.0
    %4068 = vmatpush.msra.mxu0 0.0
    %4069 = vmatpush.msra.mxu0 0.0
    %4070 = vmatpush.msra.mxu0 0.0
    %4071 = vmatpush.msra.mxu0 0.0
    %4072 = vmatpush.msra.mxu0 0.0
    %4073 = vmatpush.msra.mxu0 0.0
    %4074 = vmatpush.msra.mxu0 0.0
    %4075 = vmatpush.msra.mxu0 0.0
    %4076 = vmatpush.msra.mxu0 0.0
    %4077 = vmatpush.msra.mxu0 0.0
    %4078 = vmatpush.msra.mxu0 0.0
    %4079 = vmatpush.msra.mxu0 0.0
    %4080 = vmatpush.msra.mxu0 0.0
    %4081 = vmatpush.msra.mxu0 0.0
    %4082 = vmatpush.msra.mxu0 %v4062
    %4083 = vmatmul.f32.gmra.mxu0 %v4065
    %v4084 = vpop.f32.mrf.mxu0
    %v4085 = vadd.f32 0.0, %v4084
    %4086 = vdwg.mxu0
    %4087 = vrot.lane.b32.xlu0 %v423, 112
    %v4088 = vpop.permute.xlu0 %4087
    %v4091 = vsel %vm443, %v3762, 0
    %4093 = vmatpush.msra.mxu0 0.0
    %4094 = vmatpush.msra.mxu0 0.0
    %4095 = vmatpush.msra.mxu0 0.0
    %4096 = vmatpush.msra.mxu0 0.0
    %4097 = vmatpush.msra.mxu0 0.0
    %4098 = vmatpush.msra.mxu0 0.0
    %4099 = vmatpush.msra.mxu0 0.0
    %4100 = vmatpush.msra.mxu0 0.0
    %4101 = vmatpush.msra.mxu0 0.0
    %4102 = vmatpush.msra.mxu0 0.0
    %4103 = vmatpush.msra.mxu0 0.0
    %4104 = vmatpush.msra.mxu0 0.0
    %4105 = vmatpush.msra.mxu0 0.0
    %4106 = vmatpush.msra.mxu0 0.0
    %4107 = vmatpush.msra.mxu0 0.0
    %4108 = vmatpush.msra.mxu0 %v4088
    %4109 = vmatmul.f32.gmra.mxu0 %v4091
    %v4110 = vpop.f32.mrf.mxu0
    %v4111 = vadd.f32 0.0, %v4110
    %4112 = vdwg.mxu0
    %4113 = vrot.lane.b32.xlu0 %v426, 112
    %v4114 = vpop.permute.xlu0 %4113
    %v4117 = vsel %vm443, %v3777, 0
    %4119 = vmatpush.msra.mxu0 0.0
    %4120 = vmatpush.msra.mxu0 0.0
    %4121 = vmatpush.msra.mxu0 0.0
    %4122 = vmatpush.msra.mxu0 0.0
    %4123 = vmatpush.msra.mxu0 0.0
    %4124 = vmatpush.msra.mxu0 0.0
    %4125 = vmatpush.msra.mxu0 0.0
    %4126 = vmatpush.msra.mxu0 0.0
    %4127 = vmatpush.msra.mxu0 0.0
    %4128 = vmatpush.msra.mxu0 0.0
    %4129 = vmatpush.msra.mxu0 0.0
    %4130 = vmatpush.msra.mxu0 0.0
    %4131 = vmatpush.msra.mxu0 0.0
    %4132 = vmatpush.msra.mxu0 0.0
    %4133 = vmatpush.msra.mxu0 0.0
    %4134 = vmatpush.msra.mxu0 %v4114
    %4135 = vmatmul.f32.gmra.mxu0 %v4117
    %v4136 = vpop.f32.mrf.mxu0
    %v4137 = vadd.f32 0.0, %v4136
    %4138 = vdwg.mxu0
    %4139 = vrot.lane.b32.xlu0 %v429, 112
    %v4140 = vpop.permute.xlu0 %4139
    %v4143 = vsel %vm443, %v3792, 0
    %4145 = vmatpush.msra.mxu0 0.0
    %4146 = vmatpush.msra.mxu0 0.0
    %4147 = vmatpush.msra.mxu0 0.0
    %4148 = vmatpush.msra.mxu0 0.0
    %4149 = vmatpush.msra.mxu0 0.0
    %4150 = vmatpush.msra.mxu0 0.0
    %4151 = vmatpush.msra.mxu0 0.0
    %4152 = vmatpush.msra.mxu0 0.0
    %4153 = vmatpush.msra.mxu0 0.0
    %4154 = vmatpush.msra.mxu0 0.0
    %4155 = vmatpush.msra.mxu0 0.0
    %4156 = vmatpush.msra.mxu0 0.0
    %4157 = vmatpush.msra.mxu0 0.0
    %4158 = vmatpush.msra.mxu0 0.0
    %4159 = vmatpush.msra.mxu0 0.0
    %4160 = vmatpush.msra.mxu0 %v4140
    %4161 = vmatmul.f32.gmra.mxu0 %v4143
    %v4162 = vpop.f32.mrf.mxu0
    %v4163 = vadd.f32 0.0, %v4162
    %4164 = vdwg.mxu0
    %4165 = vrot.lane.b32.xlu0 %v432, 112
    %v4166 = vpop.permute.xlu0 %4165
    %v4169 = vsel %vm443, %v3807, 0
    %4171 = vmatpush.msra.mxu0 0.0
    %4172 = vmatpush.msra.mxu0 0.0
    %4173 = vmatpush.msra.mxu0 0.0
    %4174 = vmatpush.msra.mxu0 0.0
    %4175 = vmatpush.msra.mxu0 0.0
    %4176 = vmatpush.msra.mxu0 0.0
    %4177 = vmatpush.msra.mxu0 0.0
    %4178 = vmatpush.msra.mxu0 0.0
    %4179 = vmatpush.msra.mxu0 0.0
    %4180 = vmatpush.msra.mxu0 0.0
    %4181 = vmatpush.msra.mxu0 0.0
    %4182 = vmatpush.msra.mxu0 0.0
    %4183 = vmatpush.msra.mxu0 0.0
    %4184 = vmatpush.msra.mxu0 0.0
    %4185 = vmatpush.msra.mxu0 0.0
    %4186 = vmatpush.msra.mxu0 %v4166
    %4187 = vmatmul.f32.gmra.mxu0 %v4169
    %v4188 = vpop.f32.mrf.mxu0
    %v4189 = vadd.f32 0.0, %v4188
    %4190 = vdwg.mxu0
    %4191 = vrot.lane.b32.xlu0 %v435, 112
    %v4192 = vpop.permute.xlu0 %4191
    %v4195 = vsel %vm443, %v3822, 0
    %4197 = vmatpush.msra.mxu0 0.0
    %4198 = vmatpush.msra.mxu0 0.0
    %4199 = vmatpush.msra.mxu0 0.0
    %4200 = vmatpush.msra.mxu0 0.0
    %4201 = vmatpush.msra.mxu0 0.0
    %4202 = vmatpush.msra.mxu0 0.0
    %4203 = vmatpush.msra.mxu0 0.0
    %4204 = vmatpush.msra.mxu0 0.0
    %4205 = vmatpush.msra.mxu0 0.0
    %4206 = vmatpush.msra.mxu0 0.0
    %4207 = vmatpush.msra.mxu0 0.0
    %4208 = vmatpush.msra.mxu0 0.0
    %4209 = vmatpush.msra.mxu0 0.0
    %4210 = vmatpush.msra.mxu0 0.0
    %4211 = vmatpush.msra.mxu0 0.0
    %4212 = vmatpush.msra.mxu0 %v4192
    %4213 = vmatmul.f32.gmra.mxu0 %v4195
    %v4214 = vpop.f32.mrf.mxu0
    %v4215 = vadd.f32 0.0, %v4214
    %4216 = vdwg.mxu0
    %4217 = vrot.lane.b32.xlu0 %v438, 112
    %v4218 = vpop.permute.xlu0 %4217
    %v4221 = vsel %vm443, %v3837, 0
    %4223 = vmatpush.msra.mxu0 0.0
    %4224 = vmatpush.msra.mxu0 0.0
    %4225 = vmatpush.msra.mxu0 0.0
    %4226 = vmatpush.msra.mxu0 0.0
    %4227 = vmatpush.msra.mxu0 0.0
    %4228 = vmatpush.msra.mxu0 0.0
    %4229 = vmatpush.msra.mxu0 0.0
    %4230 = vmatpush.msra.mxu0 0.0
    %4231 = vmatpush.msra.mxu0 0.0
    %4232 = vmatpush.msra.mxu0 0.0
    %4233 = vmatpush.msra.mxu0 0.0
    %4234 = vmatpush.msra.mxu0 0.0
    %4235 = vmatpush.msra.mxu0 0.0
    %4236 = vmatpush.msra.mxu0 0.0
    %4237 = vmatpush.msra.mxu0 0.0
    %4238 = vmatpush.msra.mxu0 %v4218
    %4239 = vmatmul.f32.gmra.mxu0 %v4221
    %v4240 = vpop.f32.mrf.mxu0
    %v4241 = vadd.f32 0.0, %v4240
    %4242 = vdwg.mxu0
    %4243 = vrot.lane.b32.xlu0 %v441, 112
    %v4244 = vpop.permute.xlu0 %4243
    %v4247 = vsel %vm443, %v3852, 0
    %4249 = vmatpush.msra.mxu0 0.0
    %4250 = vmatpush.msra.mxu0 0.0
    %4251 = vmatpush.msra.mxu0 0.0
    %4252 = vmatpush.msra.mxu0 0.0
    %4253 = vmatpush.msra.mxu0 0.0
    %4254 = vmatpush.msra.mxu0 0.0
    %4255 = vmatpush.msra.mxu0 0.0
    %4256 = vmatpush.msra.mxu0 0.0
    %4257 = vmatpush.msra.mxu0 0.0
    %4258 = vmatpush.msra.mxu0 0.0
    %4259 = vmatpush.msra.mxu0 0.0
    %4260 = vmatpush.msra.mxu0 0.0
    %4261 = vmatpush.msra.mxu0 0.0
    %4262 = vmatpush.msra.mxu0 0.0
    %4263 = vmatpush.msra.mxu0 0.0
    %4264 = vmatpush.msra.mxu0 %v4244
    %4265 = vmatmul.f32.gmra.mxu0 %v4247
    %v4266 = vpop.f32.mrf.mxu0
    %v4267 = vadd.f32 0.0, %v4266
    %4268 = vdwg.mxu0
    %4285 = vrot.lane.b32.xlu0 %v3877, 16
    %v4286 = vpop.permute.xlu0 %4285
    %4287 = vrot.lane.b32.xlu0 %v3903, 16
    %v4288 = vpop.permute.xlu0 %4287
    %4289 = vrot.lane.b32.xlu0 %v3929, 16
    %v4290 = vpop.permute.xlu0 %4289
    %4291 = vrot.lane.b32.xlu0 %v3955, 16
    %v4292 = vpop.permute.xlu0 %4291
    %4293 = vrot.lane.b32.xlu0 %v3981, 16
    %v4294 = vpop.permute.xlu0 %4293
    %4295 = vrot.lane.b32.xlu0 %v4007, 16
    %v4296 = vpop.permute.xlu0 %4295
    %4297 = vrot.lane.b32.xlu0 %v4033, 16
    %v4298 = vpop.permute.xlu0 %4297
    %4299 = vrot.lane.b32.xlu0 %v4059, 16
    %v4300 = vpop.permute.xlu0 %4299
    %4301 = vrot.lane.b32.xlu0 %v4085, 16
    %v4302 = vpop.permute.xlu0 %4301
    %4303 = vrot.lane.b32.xlu0 %v4111, 16
    %v4304 = vpop.permute.xlu0 %4303
    %4305 = vrot.lane.b32.xlu0 %v4137, 16
    %v4306 = vpop.permute.xlu0 %4305
    %4307 = vrot.lane.b32.xlu0 %v4163, 16
    %v4308 = vpop.permute.xlu0 %4307
    %4309 = vrot.lane.b32.xlu0 %v4189, 16
    %v4310 = vpop.permute.xlu0 %4309
    %4311 = vrot.lane.b32.xlu0 %v4215, 16
    %v4312 = vpop.permute.xlu0 %4311
    %4313 = vrot.lane.b32.xlu0 %v4241, 16
    %v4314 = vpop.permute.xlu0 %4313
    %4315 = vrot.lane.b32.xlu0 %v4267, 16
    %v4316 = vpop.permute.xlu0 %4315
    %vm4333 = vcmask 195712
    %4334 = vst.msk [vmem:[#allocation2] sm:$0xff] %vm4333, %v4286
    %4335 = vst.msk [vmem:[#allocation2 + $0x8] sm:$0xff] %vm4333, %v4288
    %4336 = vst.msk [vmem:[#allocation2 + $0x10] sm:$0xff] %vm4333, %v4290
    %4337 = vst.msk [vmem:[#allocation2 + $0x18] sm:$0xff] %vm4333, %v4292
    %4338 = vst.msk [vmem:[#allocation2 + $0x20] sm:$0xff] %vm4333, %v4294
    %4339 = vst.msk [vmem:[#allocation2 + $0x28] sm:$0xff] %vm4333, %v4296
    %4340 = vst.msk [vmem:[#allocation2 + $0x30] sm:$0xff] %vm4333, %v4298
    %4341 = vst.msk [vmem:[#allocation2 + $0x38] sm:$0xff] %vm4333, %v4300
    %4342 = vst.msk [vmem:[#allocation2 + $0x40] sm:$0xff] %vm4333, %v4302
    %4343 = vst.msk [vmem:[#allocation2 + $0x48] sm:$0xff] %vm4333, %v4304
    %4344 = vst.msk [vmem:[#allocation2 + $0x50] sm:$0xff] %vm4333, %v4306
    %4345 = vst.msk [vmem:[#allocation2 + $0x58] sm:$0xff] %vm4333, %v4308
    %4346 = vst.msk [vmem:[#allocation2 + $0x60] sm:$0xff] %vm4333, %v4310
    %4347 = vst.msk [vmem:[#allocation2 + $0x68] sm:$0xff] %vm4333, %v4312
    %4348 = vst.msk [vmem:[#allocation2 + $0x70] sm:$0xff] %vm4333, %v4314
    %4349 = vst.msk [vmem:[#allocation2 + $0x78] sm:$0xff] %vm4333, %v4316
    %4350 = vrot.lane.b32.xlu0 %v150, 104
    %v4351 = vpop.permute.xlu0 %4350
    %4352 = vrot.lane.b32.xlu0 %v273, 104
    %v4353 = vpop.permute.xlu0 %4352
    %v4354 = vsel %vm443, %v4351, 0
    %v4356 = vsel %vm443, %v4353, 0
    %4358 = vmatpush.xpose.msra.mxu0 0.0
    %4359 = vmatpush.xpose.msra.mxu0 0.0
    %4360 = vmatpush.xpose.msra.mxu0 0.0
    %4361 = vmatpush.xpose.msra.mxu0 0.0
    %4362 = vmatpush.xpose.msra.mxu0 0.0
    %4363 = vmatpush.xpose.msra.mxu0 0.0
    %4364 = vmatpush.xpose.msra.mxu0 0.0
    %4365 = vmatpush.xpose.msra.mxu0 0.0
    %4366 = vmatpush.xpose.msra.mxu0 0.0
    %4367 = vmatpush.xpose.msra.mxu0 0.0
    %4368 = vmatpush.xpose.msra.mxu0 0.0
    %4369 = vmatpush.xpose.msra.mxu0 0.0
    %4370 = vmatpush.xpose.msra.mxu0 0.0
    %4371 = vmatpush.xpose.msra.mxu0 0.0
    %4372 = vmatpush.xpose.msra.mxu0 0.0
    %4373 = vmatpush.xpose.msra.mxu0 %v4356
    %4374 = vmatmul.f32.gmra.mxu0 %v4354
    %v4375 = vpop.f32.mrf.mxu0
    %v4376 = vadd.f32 0.0, %v4375
    %4377 = vdwg.mxu0
    %4378 = vrot.lane.b32.xlu0 %v153, 104
    %v4379 = vpop.permute.xlu0 %4378
    %4380 = vrot.lane.b32.xlu0 %v276, 104
    %v4381 = vpop.permute.xlu0 %4380
    %v4382 = vsel %vm443, %v4379, 0
    %v4384 = vsel %vm443, %v4381, 0
    %4386 = vmatpush.xpose.msra.mxu0 0.0
    %4387 = vmatpush.xpose.msra.mxu0 0.0
    %4388 = vmatpush.xpose.msra.mxu0 0.0
    %4389 = vmatpush.xpose.msra.mxu0 0.0
    %4390 = vmatpush.xpose.msra.mxu0 0.0
    %4391 = vmatpush.xpose.msra.mxu0 0.0
    %4392 = vmatpush.xpose.msra.mxu0 0.0
    %4393 = vmatpush.xpose.msra.mxu0 0.0
    %4394 = vmatpush.xpose.msra.mxu0 0.0
    %4395 = vmatpush.xpose.msra.mxu0 0.0
    %4396 = vmatpush.xpose.msra.mxu0 0.0
    %4397 = vmatpush.xpose.msra.mxu0 0.0
    %4398 = vmatpush.xpose.msra.mxu0 0.0
    %4399 = vmatpush.xpose.msra.mxu0 0.0
    %4400 = vmatpush.xpose.msra.mxu0 0.0
    %4401 = vmatpush.xpose.msra.mxu0 %v4384
    %4402 = vmatmul.f32.gmra.mxu0 %v4382
    %v4403 = vpop.f32.mrf.mxu0
    %v4404 = vadd.f32 0.0, %v4403
    %4405 = vdwg.mxu0
    %4406 = vrot.lane.b32.xlu0 %v156, 104
    %v4407 = vpop.permute.xlu0 %4406
    %4408 = vrot.lane.b32.xlu0 %v279, 104
    %v4409 = vpop.permute.xlu0 %4408
    %v4410 = vsel %vm443, %v4407, 0
    %v4412 = vsel %vm443, %v4409, 0
    %4414 = vmatpush.xpose.msra.mxu0 0.0
    %4415 = vmatpush.xpose.msra.mxu0 0.0
    %4416 = vmatpush.xpose.msra.mxu0 0.0
    %4417 = vmatpush.xpose.msra.mxu0 0.0
    %4418 = vmatpush.xpose.msra.mxu0 0.0
    %4419 = vmatpush.xpose.msra.mxu0 0.0
    %4420 = vmatpush.xpose.msra.mxu0 0.0
    %4421 = vmatpush.xpose.msra.mxu0 0.0
    %4422 = vmatpush.xpose.msra.mxu0 0.0
    %4423 = vmatpush.xpose.msra.mxu0 0.0
    %4424 = vmatpush.xpose.msra.mxu0 0.0
    %4425 = vmatpush.xpose.msra.mxu0 0.0
    %4426 = vmatpush.xpose.msra.mxu0 0.0
    %4427 = vmatpush.xpose.msra.mxu0 0.0
    %4428 = vmatpush.xpose.msra.mxu0 0.0
    %4429 = vmatpush.xpose.msra.mxu0 %v4412
    %4430 = vmatmul.f32.gmra.mxu0 %v4410
    %v4431 = vpop.f32.mrf.mxu0
    %v4432 = vadd.f32 0.0, %v4431
    %4433 = vdwg.mxu0
    %4434 = vrot.lane.b32.xlu0 %v159, 104
    %v4435 = vpop.permute.xlu0 %4434
    %4436 = vrot.lane.b32.xlu0 %v282, 104
    %v4437 = vpop.permute.xlu0 %4436
    %v4438 = vsel %vm443, %v4435, 0
    %v4440 = vsel %vm443, %v4437, 0
    %4442 = vmatpush.xpose.msra.mxu0 0.0
    %4443 = vmatpush.xpose.msra.mxu0 0.0
    %4444 = vmatpush.xpose.msra.mxu0 0.0
    %4445 = vmatpush.xpose.msra.mxu0 0.0
    %4446 = vmatpush.xpose.msra.mxu0 0.0
    %4447 = vmatpush.xpose.msra.mxu0 0.0
    %4448 = vmatpush.xpose.msra.mxu0 0.0
    %4449 = vmatpush.xpose.msra.mxu0 0.0
    %4450 = vmatpush.xpose.msra.mxu0 0.0
    %4451 = vmatpush.xpose.msra.mxu0 0.0
    %4452 = vmatpush.xpose.msra.mxu0 0.0
    %4453 = vmatpush.xpose.msra.mxu0 0.0
    %4454 = vmatpush.xpose.msra.mxu0 0.0
    %4455 = vmatpush.xpose.msra.mxu0 0.0
    %4456 = vmatpush.xpose.msra.mxu0 0.0
    %4457 = vmatpush.xpose.msra.mxu0 %v4440
    %4458 = vmatmul.f32.gmra.mxu0 %v4438
    %v4459 = vpop.f32.mrf.mxu0
    %v4460 = vadd.f32 0.0, %v4459
    %4461 = vdwg.mxu0
    %4462 = vrot.lane.b32.xlu0 %v162, 104
    %v4463 = vpop.permute.xlu0 %4462
    %4464 = vrot.lane.b32.xlu0 %v285, 104
    %v4465 = vpop.permute.xlu0 %4464
    %v4466 = vsel %vm443, %v4463, 0
    %v4468 = vsel %vm443, %v4465, 0
    %4470 = vmatpush.xpose.msra.mxu0 0.0
    %4471 = vmatpush.xpose.msra.mxu0 0.0
    %4472 = vmatpush.xpose.msra.mxu0 0.0
    %4473 = vmatpush.xpose.msra.mxu0 0.0
    %4474 = vmatpush.xpose.msra.mxu0 0.0
    %4475 = vmatpush.xpose.msra.mxu0 0.0
    %4476 = vmatpush.xpose.msra.mxu0 0.0
    %4477 = vmatpush.xpose.msra.mxu0 0.0
    %4478 = vmatpush.xpose.msra.mxu0 0.0
    %4479 = vmatpush.xpose.msra.mxu0 0.0
    %4480 = vmatpush.xpose.msra.mxu0 0.0
    %4481 = vmatpush.xpose.msra.mxu0 0.0
    %4482 = vmatpush.xpose.msra.mxu0 0.0
    %4483 = vmatpush.xpose.msra.mxu0 0.0
    %4484 = vmatpush.xpose.msra.mxu0 0.0
    %4485 = vmatpush.xpose.msra.mxu0 %v4468
    %4486 = vmatmul.f32.gmra.mxu0 %v4466
    %v4487 = vpop.f32.mrf.mxu0
    %v4488 = vadd.f32 0.0, %v4487
    %4489 = vdwg.mxu0
    %4490 = vrot.lane.b32.xlu0 %v165, 104
    %v4491 = vpop.permute.xlu0 %4490
    %4492 = vrot.lane.b32.xlu0 %v288, 104
    %v4493 = vpop.permute.xlu0 %4492
    %v4494 = vsel %vm443, %v4491, 0
    %v4496 = vsel %vm443, %v4493, 0
    %4498 = vmatpush.xpose.msra.mxu0 0.0
    %4499 = vmatpush.xpose.msra.mxu0 0.0
    %4500 = vmatpush.xpose.msra.mxu0 0.0
    %4501 = vmatpush.xpose.msra.mxu0 0.0
    %4502 = vmatpush.xpose.msra.mxu0 0.0
    %4503 = vmatpush.xpose.msra.mxu0 0.0
    %4504 = vmatpush.xpose.msra.mxu0 0.0
    %4505 = vmatpush.xpose.msra.mxu0 0.0
    %4506 = vmatpush.xpose.msra.mxu0 0.0
    %4507 = vmatpush.xpose.msra.mxu0 0.0
    %4508 = vmatpush.xpose.msra.mxu0 0.0
    %4509 = vmatpush.xpose.msra.mxu0 0.0
    %4510 = vmatpush.xpose.msra.mxu0 0.0
    %4511 = vmatpush.xpose.msra.mxu0 0.0
    %4512 = vmatpush.xpose.msra.mxu0 0.0
    %4513 = vmatpush.xpose.msra.mxu0 %v4496
    %4514 = vmatmul.f32.gmra.mxu0 %v4494
    %v4515 = vpop.f32.mrf.mxu0
    %v4516 = vadd.f32 0.0, %v4515
    %4517 = vdwg.mxu0
    %4518 = vrot.lane.b32.xlu0 %v168, 104
    %v4519 = vpop.permute.xlu0 %4518
    %4520 = vrot.lane.b32.xlu0 %v291, 104
    %v4521 = vpop.permute.xlu0 %4520
    %v4522 = vsel %vm443, %v4519, 0
    %v4524 = vsel %vm443, %v4521, 0
    %4526 = vmatpush.xpose.msra.mxu0 0.0
    %4527 = vmatpush.xpose.msra.mxu0 0.0
    %4528 = vmatpush.xpose.msra.mxu0 0.0
    %4529 = vmatpush.xpose.msra.mxu0 0.0
    %4530 = vmatpush.xpose.msra.mxu0 0.0
    %4531 = vmatpush.xpose.msra.mxu0 0.0
    %4532 = vmatpush.xpose.msra.mxu0 0.0
    %4533 = vmatpush.xpose.msra.mxu0 0.0
    %4534 = vmatpush.xpose.msra.mxu0 0.0
    %4535 = vmatpush.xpose.msra.mxu0 0.0
    %4536 = vmatpush.xpose.msra.mxu0 0.0
    %4537 = vmatpush.xpose.msra.mxu0 0.0
    %4538 = vmatpush.xpose.msra.mxu0 0.0
    %4539 = vmatpush.xpose.msra.mxu0 0.0
    %4540 = vmatpush.xpose.msra.mxu0 0.0
    %4541 = vmatpush.xpose.msra.mxu0 %v4524
    %4542 = vmatmul.f32.gmra.mxu0 %v4522
    %v4543 = vpop.f32.mrf.mxu0
    %v4544 = vadd.f32 0.0, %v4543
    %4545 = vdwg.mxu0
    %4546 = vrot.lane.b32.xlu0 %v171, 104
    %v4547 = vpop.permute.xlu0 %4546
    %4548 = vrot.lane.b32.xlu0 %v294, 104
    %v4549 = vpop.permute.xlu0 %4548
    %v4550 = vsel %vm443, %v4547, 0
    %v4552 = vsel %vm443, %v4549, 0
    %4554 = vmatpush.xpose.msra.mxu0 0.0
    %4555 = vmatpush.xpose.msra.mxu0 0.0
    %4556 = vmatpush.xpose.msra.mxu0 0.0
    %4557 = vmatpush.xpose.msra.mxu0 0.0
    %4558 = vmatpush.xpose.msra.mxu0 0.0
    %4559 = vmatpush.xpose.msra.mxu0 0.0
    %4560 = vmatpush.xpose.msra.mxu0 0.0
    %4561 = vmatpush.xpose.msra.mxu0 0.0
    %4562 = vmatpush.xpose.msra.mxu0 0.0
    %4563 = vmatpush.xpose.msra.mxu0 0.0
    %4564 = vmatpush.xpose.msra.mxu0 0.0
    %4565 = vmatpush.xpose.msra.mxu0 0.0
    %4566 = vmatpush.xpose.msra.mxu0 0.0
    %4567 = vmatpush.xpose.msra.mxu0 0.0
    %4568 = vmatpush.xpose.msra.mxu0 0.0
    %4569 = vmatpush.xpose.msra.mxu0 %v4552
    %4570 = vmatmul.f32.gmra.mxu0 %v4550
    %v4571 = vpop.f32.mrf.mxu0
    %v4572 = vadd.f32 0.0, %v4571
    %4573 = vdwg.mxu0
    %4574 = vrot.lane.b32.xlu0 %v174, 104
    %v4575 = vpop.permute.xlu0 %4574
    %4576 = vrot.lane.b32.xlu0 %v297, 104
    %v4577 = vpop.permute.xlu0 %4576
    %v4578 = vsel %vm443, %v4575, 0
    %v4580 = vsel %vm443, %v4577, 0
    %4582 = vmatpush.xpose.msra.mxu0 0.0
    %4583 = vmatpush.xpose.msra.mxu0 0.0
    %4584 = vmatpush.xpose.msra.mxu0 0.0
    %4585 = vmatpush.xpose.msra.mxu0 0.0
    %4586 = vmatpush.xpose.msra.mxu0 0.0
    %4587 = vmatpush.xpose.msra.mxu0 0.0
    %4588 = vmatpush.xpose.msra.mxu0 0.0
    %4589 = vmatpush.xpose.msra.mxu0 0.0
    %4590 = vmatpush.xpose.msra.mxu0 0.0
    %4591 = vmatpush.xpose.msra.mxu0 0.0
    %4592 = vmatpush.xpose.msra.mxu0 0.0
    %4593 = vmatpush.xpose.msra.mxu0 0.0
    %4594 = vmatpush.xpose.msra.mxu0 0.0
    %4595 = vmatpush.xpose.msra.mxu0 0.0
    %4596 = vmatpush.xpose.msra.mxu0 0.0
    %4597 = vmatpush.xpose.msra.mxu0 %v4580
    %4598 = vmatmul.f32.gmra.mxu0 %v4578
    %v4599 = vpop.f32.mrf.mxu0
    %v4600 = vadd.f32 0.0, %v4599
    %4601 = vdwg.mxu0
    %4602 = vrot.lane.b32.xlu0 %v177, 104
    %v4603 = vpop.permute.xlu0 %4602
    %4604 = vrot.lane.b32.xlu0 %v300, 104
    %v4605 = vpop.permute.xlu0 %4604
    %v4606 = vsel %vm443, %v4603, 0
    %v4608 = vsel %vm443, %v4605, 0
    %4610 = vmatpush.xpose.msra.mxu0 0.0
    %4611 = vmatpush.xpose.msra.mxu0 0.0
    %4612 = vmatpush.xpose.msra.mxu0 0.0
    %4613 = vmatpush.xpose.msra.mxu0 0.0
    %4614 = vmatpush.xpose.msra.mxu0 0.0
    %4615 = vmatpush.xpose.msra.mxu0 0.0
    %4616 = vmatpush.xpose.msra.mxu0 0.0
    %4617 = vmatpush.xpose.msra.mxu0 0.0
    %4618 = vmatpush.xpose.msra.mxu0 0.0
    %4619 = vmatpush.xpose.msra.mxu0 0.0
    %4620 = vmatpush.xpose.msra.mxu0 0.0
    %4621 = vmatpush.xpose.msra.mxu0 0.0
    %4622 = vmatpush.xpose.msra.mxu0 0.0
    %4623 = vmatpush.xpose.msra.mxu0 0.0
    %4624 = vmatpush.xpose.msra.mxu0 0.0
    %4625 = vmatpush.xpose.msra.mxu0 %v4608
    %4626 = vmatmul.f32.gmra.mxu0 %v4606
    %v4627 = vpop.f32.mrf.mxu0
    %v4628 = vadd.f32 0.0, %v4627
    %4629 = vdwg.mxu0
    %4630 = vrot.lane.b32.xlu0 %v180, 104
    %v4631 = vpop.permute.xlu0 %4630
    %4632 = vrot.lane.b32.xlu0 %v303, 104
    %v4633 = vpop.permute.xlu0 %4632
    %v4634 = vsel %vm443, %v4631, 0
    %v4636 = vsel %vm443, %v4633, 0
    %4638 = vmatpush.xpose.msra.mxu0 0.0
    %4639 = vmatpush.xpose.msra.mxu0 0.0
    %4640 = vmatpush.xpose.msra.mxu0 0.0
    %4641 = vmatpush.xpose.msra.mxu0 0.0
    %4642 = vmatpush.xpose.msra.mxu0 0.0
    %4643 = vmatpush.xpose.msra.mxu0 0.0
    %4644 = vmatpush.xpose.msra.mxu0 0.0
    %4645 = vmatpush.xpose.msra.mxu0 0.0
    %4646 = vmatpush.xpose.msra.mxu0 0.0
    %4647 = vmatpush.xpose.msra.mxu0 0.0
    %4648 = vmatpush.xpose.msra.mxu0 0.0
    %4649 = vmatpush.xpose.msra.mxu0 0.0
    %4650 = vmatpush.xpose.msra.mxu0 0.0
    %4651 = vmatpush.xpose.msra.mxu0 0.0
    %4652 = vmatpush.xpose.msra.mxu0 0.0
    %4653 = vmatpush.xpose.msra.mxu0 %v4636
    %4654 = vmatmul.f32.gmra.mxu0 %v4634
    %v4655 = vpop.f32.mrf.mxu0
    %v4656 = vadd.f32 0.0, %v4655
    %4657 = vdwg.mxu0
    %4658 = vrot.lane.b32.xlu0 %v183, 104
    %v4659 = vpop.permute.xlu0 %4658
    %4660 = vrot.lane.b32.xlu0 %v306, 104
    %v4661 = vpop.permute.xlu0 %4660
    %v4662 = vsel %vm443, %v4659, 0
    %v4664 = vsel %vm443, %v4661, 0
    %4666 = vmatpush.xpose.msra.mxu0 0.0
    %4667 = vmatpush.xpose.msra.mxu0 0.0
    %4668 = vmatpush.xpose.msra.mxu0 0.0
    %4669 = vmatpush.xpose.msra.mxu0 0.0
    %4670 = vmatpush.xpose.msra.mxu0 0.0
    %4671 = vmatpush.xpose.msra.mxu0 0.0
    %4672 = vmatpush.xpose.msra.mxu0 0.0
    %4673 = vmatpush.xpose.msra.mxu0 0.0
    %4674 = vmatpush.xpose.msra.mxu0 0.0
    %4675 = vmatpush.xpose.msra.mxu0 0.0
    %4676 = vmatpush.xpose.msra.mxu0 0.0
    %4677 = vmatpush.xpose.msra.mxu0 0.0
    %4678 = vmatpush.xpose.msra.mxu0 0.0
    %4679 = vmatpush.xpose.msra.mxu0 0.0
    %4680 = vmatpush.xpose.msra.mxu0 0.0
    %4681 = vmatpush.xpose.msra.mxu0 %v4664
    %4682 = vmatmul.f32.gmra.mxu0 %v4662
    %v4683 = vpop.f32.mrf.mxu0
    %v4684 = vadd.f32 0.0, %v4683
    %4685 = vdwg.mxu0
    %4686 = vrot.lane.b32.xlu0 %v186, 104
    %v4687 = vpop.permute.xlu0 %4686
    %4688 = vrot.lane.b32.xlu0 %v309, 104
    %v4689 = vpop.permute.xlu0 %4688
    %v4690 = vsel %vm443, %v4687, 0
    %v4692 = vsel %vm443, %v4689, 0
    %4694 = vmatpush.xpose.msra.mxu0 0.0
    %4695 = vmatpush.xpose.msra.mxu0 0.0
    %4696 = vmatpush.xpose.msra.mxu0 0.0
    %4697 = vmatpush.xpose.msra.mxu0 0.0
    %4698 = vmatpush.xpose.msra.mxu0 0.0
    %4699 = vmatpush.xpose.msra.mxu0 0.0
    %4700 = vmatpush.xpose.msra.mxu0 0.0
    %4701 = vmatpush.xpose.msra.mxu0 0.0
    %4702 = vmatpush.xpose.msra.mxu0 0.0
    %4703 = vmatpush.xpose.msra.mxu0 0.0
    %4704 = vmatpush.xpose.msra.mxu0 0.0
    %4705 = vmatpush.xpose.msra.mxu0 0.0
    %4706 = vmatpush.xpose.msra.mxu0 0.0
    %4707 = vmatpush.xpose.msra.mxu0 0.0
    %4708 = vmatpush.xpose.msra.mxu0 0.0
    %4709 = vmatpush.xpose.msra.mxu0 %v4692
    %4710 = vmatmul.f32.gmra.mxu0 %v4690
    %v4711 = vpop.f32.mrf.mxu0
    %v4712 = vadd.f32 0.0, %v4711
    %4713 = vdwg.mxu0
    %4714 = vrot.lane.b32.xlu0 %v189, 104
    %v4715 = vpop.permute.xlu0 %4714
    %4716 = vrot.lane.b32.xlu0 %v312, 104
    %v4717 = vpop.permute.xlu0 %4716
    %v4718 = vsel %vm443, %v4715, 0
    %v4720 = vsel %vm443, %v4717, 0
    %4722 = vmatpush.xpose.msra.mxu0 0.0
    %4723 = vmatpush.xpose.msra.mxu0 0.0
    %4724 = vmatpush.xpose.msra.mxu0 0.0
    %4725 = vmatpush.xpose.msra.mxu0 0.0
    %4726 = vmatpush.xpose.msra.mxu0 0.0
    %4727 = vmatpush.xpose.msra.mxu0 0.0
    %4728 = vmatpush.xpose.msra.mxu0 0.0
    %4729 = vmatpush.xpose.msra.mxu0 0.0
    %4730 = vmatpush.xpose.msra.mxu0 0.0
    %4731 = vmatpush.xpose.msra.mxu0 0.0
    %4732 = vmatpush.xpose.msra.mxu0 0.0
    %4733 = vmatpush.xpose.msra.mxu0 0.0
    %4734 = vmatpush.xpose.msra.mxu0 0.0
    %4735 = vmatpush.xpose.msra.mxu0 0.0
    %4736 = vmatpush.xpose.msra.mxu0 0.0
    %4737 = vmatpush.xpose.msra.mxu0 %v4720
    %4738 = vmatmul.f32.gmra.mxu0 %v4718
    %v4739 = vpop.f32.mrf.mxu0
    %v4740 = vadd.f32 0.0, %v4739
    %4741 = vdwg.mxu0
    %4742 = vrot.lane.b32.xlu0 %v192, 104
    %v4743 = vpop.permute.xlu0 %4742
    %4744 = vrot.lane.b32.xlu0 %v315, 104
    %v4745 = vpop.permute.xlu0 %4744
    %v4746 = vsel %vm443, %v4743, 0
    %v4748 = vsel %vm443, %v4745, 0
    %4750 = vmatpush.xpose.msra.mxu0 0.0
    %4751 = vmatpush.xpose.msra.mxu0 0.0
    %4752 = vmatpush.xpose.msra.mxu0 0.0
    %4753 = vmatpush.xpose.msra.mxu0 0.0
    %4754 = vmatpush.xpose.msra.mxu0 0.0
    %4755 = vmatpush.xpose.msra.mxu0 0.0
    %4756 = vmatpush.xpose.msra.mxu0 0.0
    %4757 = vmatpush.xpose.msra.mxu0 0.0
    %4758 = vmatpush.xpose.msra.mxu0 0.0
    %4759 = vmatpush.xpose.msra.mxu0 0.0
    %4760 = vmatpush.xpose.msra.mxu0 0.0
    %4761 = vmatpush.xpose.msra.mxu0 0.0
    %4762 = vmatpush.xpose.msra.mxu0 0.0
    %4763 = vmatpush.xpose.msra.mxu0 0.0
    %4764 = vmatpush.xpose.msra.mxu0 0.0
    %4765 = vmatpush.xpose.msra.mxu0 %v4748
    %4766 = vmatmul.f32.gmra.mxu0 %v4746
    %v4767 = vpop.f32.mrf.mxu0
    %v4768 = vadd.f32 0.0, %v4767
    %4769 = vdwg.mxu0
    %4770 = vrot.lane.b32.xlu0 %v195, 104
    %v4771 = vpop.permute.xlu0 %4770
    %4772 = vrot.lane.b32.xlu0 %v318, 104
    %v4773 = vpop.permute.xlu0 %4772
    %v4774 = vsel %vm443, %v4771, 0
    %v4776 = vsel %vm443, %v4773, 0
    %4778 = vmatpush.xpose.msra.mxu0 0.0
    %4779 = vmatpush.xpose.msra.mxu0 0.0
    %4780 = vmatpush.xpose.msra.mxu0 0.0
    %4781 = vmatpush.xpose.msra.mxu0 0.0
    %4782 = vmatpush.xpose.msra.mxu0 0.0
    %4783 = vmatpush.xpose.msra.mxu0 0.0
    %4784 = vmatpush.xpose.msra.mxu0 0.0
    %4785 = vmatpush.xpose.msra.mxu0 0.0
    %4786 = vmatpush.xpose.msra.mxu0 0.0
    %4787 = vmatpush.xpose.msra.mxu0 0.0
    %4788 = vmatpush.xpose.msra.mxu0 0.0
    %4789 = vmatpush.xpose.msra.mxu0 0.0
    %4790 = vmatpush.xpose.msra.mxu0 0.0
    %4791 = vmatpush.xpose.msra.mxu0 0.0
    %4792 = vmatpush.xpose.msra.mxu0 0.0
    %4793 = vmatpush.xpose.msra.mxu0 %v4776
    %4794 = vmatmul.f32.gmra.mxu0 %v4774
    %v4795 = vpop.f32.mrf.mxu0
    %v4796 = vadd.f32 0.0, %v4795
    %4797 = vdwg.mxu0
    %v4798 = vmul.f32 %v4376, 0.35355338
    %v4799 = vmul.f32 %v4404, 0.35355338
    %v4800 = vmul.f32 %v4432, 0.35355338
    %v4801 = vmul.f32 %v4460, 0.35355338
    %v4802 = vmul.f32 %v4488, 0.35355338
    %v4803 = vmul.f32 %v4516, 0.35355338
    %v4804 = vmul.f32 %v4544, 0.35355338
    %v4805 = vmul.f32 %v4572, 0.35355338
    %v4806 = vmul.f32 %v4600, 0.35355338
    %v4807 = vmul.f32 %v4628, 0.35355338
    %v4808 = vmul.f32 %v4656, 0.35355338
    %v4809 = vmul.f32 %v4684, 0.35355338
    %v4810 = vmul.f32 %v4712, 0.35355338
    %v4811 = vmul.f32 %v4740, 0.35355338
    %v4812 = vmul.f32 %v4768, 0.35355338
    %v4813 = vmul.f32 %v4796, 0.35355338
    %v4814 = vsel %vm443, %v4798, -inf
    %4815 = vmax.xlane.f32.xlu0 %v4814
    %v4816 = vpop.xlane.xlu0 %4815
    %v4817 = vsel %vm443, %v4799, -inf
    %4818 = vmax.xlane.f32.xlu0 %v4817
    %v4819 = vpop.xlane.xlu0 %4818
    %v4820 = vsel %vm443, %v4800, -inf
    %4821 = vmax.xlane.f32.xlu0 %v4820
    %v4822 = vpop.xlane.xlu0 %4821
    %v4823 = vsel %vm443, %v4801, -inf
    %4824 = vmax.xlane.f32.xlu0 %v4823
    %v4825 = vpop.xlane.xlu0 %4824
    %v4826 = vsel %vm443, %v4802, -inf
    %4827 = vmax.xlane.f32.xlu0 %v4826
    %v4828 = vpop.xlane.xlu0 %4827
    %v4829 = vsel %vm443, %v4803, -inf
    %4830 = vmax.xlane.f32.xlu0 %v4829
    %v4831 = vpop.xlane.xlu0 %4830
    %v4832 = vsel %vm443, %v4804, -inf
    %4833 = vmax.xlane.f32.xlu0 %v4832
    %v4834 = vpop.xlane.xlu0 %4833
    %v4835 = vsel %vm443, %v4805, -inf
    %4836 = vmax.xlane.f32.xlu0 %v4835
    %v4837 = vpop.xlane.xlu0 %4836
    %v4838 = vsel %vm443, %v4806, -inf
    %4839 = vmax.xlane.f32.xlu0 %v4838
    %v4840 = vpop.xlane.xlu0 %4839
    %v4841 = vsel %vm443, %v4807, -inf
    %4842 = vmax.xlane.f32.xlu0 %v4841
    %v4843 = vpop.xlane.xlu0 %4842
    %v4844 = vsel %vm443, %v4808, -inf
    %4845 = vmax.xlane.f32.xlu0 %v4844
    %v4846 = vpop.xlane.xlu0 %4845
    %v4847 = vsel %vm443, %v4809, -inf
    %4848 = vmax.xlane.f32.xlu0 %v4847
    %v4849 = vpop.xlane.xlu0 %4848
    %v4850 = vsel %vm443, %v4810, -inf
    %4851 = vmax.xlane.f32.xlu0 %v4850
    %v4852 = vpop.xlane.xlu0 %4851
    %v4853 = vsel %vm443, %v4811, -inf
    %4854 = vmax.xlane.f32.xlu0 %v4853
    %v4855 = vpop.xlane.xlu0 %4854
    %v4856 = vsel %vm443, %v4812, -inf
    %4857 = vmax.xlane.f32.xlu0 %v4856
    %v4858 = vpop.xlane.xlu0 %4857
    %v4859 = vsel %vm443, %v4813, -inf
    %4860 = vmax.xlane.f32.xlu0 %v4859
    %v4861 = vpop.xlane.xlu0 %4860
    %v4862 = vsub.f32 %v4798, %v4816
    %v4863 = vsub.f32 %v4799, %v4819
    %v4864 = vsub.f32 %v4800, %v4822
    %v4865 = vsub.f32 %v4801, %v4825
    %v4866 = vsub.f32 %v4802, %v4828
    %v4867 = vsub.f32 %v4803, %v4831
    %v4868 = vsub.f32 %v4804, %v4834
    %v4869 = vsub.f32 %v4805, %v4837
    %v4870 = vsub.f32 %v4806, %v4840
    %v4871 = vsub.f32 %v4807, %v4843
    %v4872 = vsub.f32 %v4808, %v4846
    %v4873 = vsub.f32 %v4809, %v4849
    %v4874 = vsub.f32 %v4810, %v4852
    %v4875 = vsub.f32 %v4811, %v4855
    %v4876 = vsub.f32 %v4812, %v4858
    %v4877 = vsub.f32 %v4813, %v4861
    %v4878 = vmul.f32 %v4862, 1.442695
    %v4879 = vpow.pop %v4878
    %v4880 = vmul.f32 %v4863, 1.442695
    %v4881 = vpow.pop %v4880
    %v4882 = vmul.f32 %v4864, 1.442695
    %v4883 = vpow.pop %v4882
    %v4884 = vmul.f32 %v4865, 1.442695
    %v4885 = vpow.pop %v4884
    %v4886 = vmul.f32 %v4866, 1.442695
    %v4887 = vpow.pop %v4886
    %v4888 = vmul.f32 %v4867, 1.442695
    %v4889 = vpow.pop %v4888
    %v4890 = vmul.f32 %v4868, 1.442695
    %v4891 = vpow.pop %v4890
    %v4892 = vmul.f32 %v4869, 1.442695
    %v4893 = vpow.pop %v4892
    %v4894 = vmul.f32 %v4870, 1.442695
    %v4895 = vpow.pop %v4894
    %v4896 = vmul.f32 %v4871, 1.442695
    %v4897 = vpow.pop %v4896
    %v4898 = vmul.f32 %v4872, 1.442695
    %v4899 = vpow.pop %v4898
    %v4900 = vmul.f32 %v4873, 1.442695
    %v4901 = vpow.pop %v4900
    %v4902 = vmul.f32 %v4874, 1.442695
    %v4903 = vpow.pop %v4902
    %v4904 = vmul.f32 %v4875, 1.442695
    %v4905 = vpow.pop %v4904
    %v4906 = vmul.f32 %v4876, 1.442695
    %v4907 = vpow.pop %v4906
    %v4908 = vmul.f32 %v4877, 1.442695
    %v4909 = vpow.pop %v4908
    %v4910 = vsel %vm443, %v4879, 0.0
    %4911 = vadd.xlane.f32.xlu0 %v4910
    %v4912 = vpop.xlane.xlu0 %4911
    %v4913 = vsel %vm443, %v4881, 0.0
    %4914 = vadd.xlane.f32.xlu0 %v4913
    %v4915 = vpop.xlane.xlu0 %4914
    %v4916 = vsel %vm443, %v4883, 0.0
    %4917 = vadd.xlane.f32.xlu0 %v4916
    %v4918 = vpop.xlane.xlu0 %4917
    %v4919 = vsel %vm443, %v4885, 0.0
    %4920 = vadd.xlane.f32.xlu0 %v4919
    %v4921 = vpop.xlane.xlu0 %4920
    %v4922 = vsel %vm443, %v4887, 0.0
    %4923 = vadd.xlane.f32.xlu0 %v4922
    %v4924 = vpop.xlane.xlu0 %4923
    %v4925 = vsel %vm443, %v4889, 0.0
    %4926 = vadd.xlane.f32.xlu0 %v4925
    %v4927 = vpop.xlane.xlu0 %4926
    %v4928 = vsel %vm443, %v4891, 0.0
    %4929 = vadd.xlane.f32.xlu0 %v4928
    %v4930 = vpop.xlane.xlu0 %4929
    %v4931 = vsel %vm443, %v4893, 0.0
    %4932 = vadd.xlane.f32.xlu0 %v4931
    %v4933 = vpop.xlane.xlu0 %4932
    %v4934 = vsel %vm443, %v4895, 0.0
    %4935 = vadd.xlane.f32.xlu0 %v4934
    %v4936 = vpop.xlane.xlu0 %4935
    %v4937 = vsel %vm443, %v4897, 0.0
    %4938 = vadd.xlane.f32.xlu0 %v4937
    %v4939 = vpop.xlane.xlu0 %4938
    %v4940 = vsel %vm443, %v4899, 0.0
    %4941 = vadd.xlane.f32.xlu0 %v4940
    %v4942 = vpop.xlane.xlu0 %4941
    %v4943 = vsel %vm443, %v4901, 0.0
    %4944 = vadd.xlane.f32.xlu0 %v4943
    %v4945 = vpop.xlane.xlu0 %4944
    %v4946 = vsel %vm443, %v4903, 0.0
    %4947 = vadd.xlane.f32.xlu0 %v4946
    %v4948 = vpop.xlane.xlu0 %4947
    %v4949 = vsel %vm443, %v4905, 0.0
    %4950 = vadd.xlane.f32.xlu0 %v4949
    %v4951 = vpop.xlane.xlu0 %4950
    %v4952 = vsel %vm443, %v4907, 0.0
    %4953 = vadd.xlane.f32.xlu0 %v4952
    %v4954 = vpop.xlane.xlu0 %4953
    %v4955 = vsel %vm443, %v4909, 0.0
    %4956 = vadd.xlane.f32.xlu0 %v4955
    %v4957 = vpop.xlane.xlu0 %4956
    %v4958 = vrcp.pop %v4912
    %v4959 = vmul.f32 %v4912, %v4958
    %v4960 = vsub.f32 1.0, %v4959
    %v4961 = vmul.f32 %v4958, %v4960
    %v4962 = vadd.f32 %v4958, %v4961
    %vm4963 = vweird.f32 %v4912
    %vm4964 = vweird.f32 %v4958
    %vm4965 = vmor %vm4963, %vm4964
    %v4966 = vsel %vm4965, %v4958, %v4962
    %v4967 = vand.u32 2147483647, %v4912
    %vm4968 = vcmp.eq.f32.partialorder %v4967, 8.507059e+37
    %v4969 = vand.u32 %v4912, 2147483648
    %v4970 = vor.u32 1.1754944e-38, %v4969
    %v4971 = vsel %vm4968, %v4970, %v4966
    %v4972 = vmul.f32 %v4879, %v4971
    %v4973 = vrcp.pop %v4915
    %v4974 = vmul.f32 %v4915, %v4973
    %v4975 = vsub.f32 1.0, %v4974
    %v4976 = vmul.f32 %v4973, %v4975
    %v4977 = vadd.f32 %v4973, %v4976
    %vm4978 = vweird.f32 %v4915
    %vm4979 = vweird.f32 %v4973
    %vm4980 = vmor %vm4978, %vm4979
    %v4981 = vsel %vm4980, %v4973, %v4977
    %v4982 = vand.u32 2147483647, %v4915
    %vm4983 = vcmp.eq.f32.partialorder %v4982, 8.507059e+37
    %v4984 = vand.u32 %v4915, 2147483648
    %v4985 = vor.u32 1.1754944e-38, %v4984
    %v4986 = vsel %vm4983, %v4985, %v4981
    %v4987 = vmul.f32 %v4881, %v4986
    %v4988 = vrcp.pop %v4918
    %v4989 = vmul.f32 %v4918, %v4988
    %v4990 = vsub.f32 1.0, %v4989
    %v4991 = vmul.f32 %v4988, %v4990
    %v4992 = vadd.f32 %v4988, %v4991
    %vm4993 = vweird.f32 %v4918
    %vm4994 = vweird.f32 %v4988
    %vm4995 = vmor %vm4993, %vm4994
    %v4996 = vsel %vm4995, %v4988, %v4992
    %v4997 = vand.u32 2147483647, %v4918
    %vm4998 = vcmp.eq.f32.partialorder %v4997, 8.507059e+37
    %v4999 = vand.u32 %v4918, 2147483648
    %v5000 = vor.u32 1.1754944e-38, %v4999
    %v5001 = vsel %vm4998, %v5000, %v4996
    %v5002 = vmul.f32 %v4883, %v5001
    %v5003 = vrcp.pop %v4921
    %v5004 = vmul.f32 %v4921, %v5003
    %v5005 = vsub.f32 1.0, %v5004
    %v5006 = vmul.f32 %v5003, %v5005
    %v5007 = vadd.f32 %v5003, %v5006
    %vm5008 = vweird.f32 %v4921
    %vm5009 = vweird.f32 %v5003
    %vm5010 = vmor %vm5008, %vm5009
    %v5011 = vsel %vm5010, %v5003, %v5007
    %v5012 = vand.u32 2147483647, %v4921
    %vm5013 = vcmp.eq.f32.partialorder %v5012, 8.507059e+37
    %v5014 = vand.u32 %v4921, 2147483648
    %v5015 = vor.u32 1.1754944e-38, %v5014
    %v5016 = vsel %vm5013, %v5015, %v5011
    %v5017 = vmul.f32 %v4885, %v5016
    %v5018 = vrcp.pop %v4924
    %v5019 = vmul.f32 %v4924, %v5018
    %v5020 = vsub.f32 1.0, %v5019
    %v5021 = vmul.f32 %v5018, %v5020
    %v5022 = vadd.f32 %v5018, %v5021
    %vm5023 = vweird.f32 %v4924
    %vm5024 = vweird.f32 %v5018
    %vm5025 = vmor %vm5023, %vm5024
    %v5026 = vsel %vm5025, %v5018, %v5022
    %v5027 = vand.u32 2147483647, %v4924
    %vm5028 = vcmp.eq.f32.partialorder %v5027, 8.507059e+37
    %v5029 = vand.u32 %v4924, 2147483648
    %v5030 = vor.u32 1.1754944e-38, %v5029
    %v5031 = vsel %vm5028, %v5030, %v5026
    %v5032 = vmul.f32 %v4887, %v5031
    %v5033 = vrcp.pop %v4927
    %v5034 = vmul.f32 %v4927, %v5033
    %v5035 = vsub.f32 1.0, %v5034
    %v5036 = vmul.f32 %v5033, %v5035
    %v5037 = vadd.f32 %v5033, %v5036
    %vm5038 = vweird.f32 %v4927
    %vm5039 = vweird.f32 %v5033
    %vm5040 = vmor %vm5038, %vm5039
    %v5041 = vsel %vm5040, %v5033, %v5037
    %v5042 = vand.u32 2147483647, %v4927
    %vm5043 = vcmp.eq.f32.partialorder %v5042, 8.507059e+37
    %v5044 = vand.u32 %v4927, 2147483648
    %v5045 = vor.u32 1.1754944e-38, %v5044
    %v5046 = vsel %vm5043, %v5045, %v5041
    %v5047 = vmul.f32 %v4889, %v5046
    %v5048 = vrcp.pop %v4930
    %v5049 = vmul.f32 %v4930, %v5048
    %v5050 = vsub.f32 1.0, %v5049
    %v5051 = vmul.f32 %v5048, %v5050
    %v5052 = vadd.f32 %v5048, %v5051
    %vm5053 = vweird.f32 %v4930
    %vm5054 = vweird.f32 %v5048
    %vm5055 = vmor %vm5053, %vm5054
    %v5056 = vsel %vm5055, %v5048, %v5052
    %v5057 = vand.u32 2147483647, %v4930
    %vm5058 = vcmp.eq.f32.partialorder %v5057, 8.507059e+37
    %v5059 = vand.u32 %v4930, 2147483648
    %v5060 = vor.u32 1.1754944e-38, %v5059
    %v5061 = vsel %vm5058, %v5060, %v5056
    %v5062 = vmul.f32 %v4891, %v5061
    %v5063 = vrcp.pop %v4933
    %v5064 = vmul.f32 %v4933, %v5063
    %v5065 = vsub.f32 1.0, %v5064
    %v5066 = vmul.f32 %v5063, %v5065
    %v5067 = vadd.f32 %v5063, %v5066
    %vm5068 = vweird.f32 %v4933
    %vm5069 = vweird.f32 %v5063
    %vm5070 = vmor %vm5068, %vm5069
    %v5071 = vsel %vm5070, %v5063, %v5067
    %v5072 = vand.u32 2147483647, %v4933
    %vm5073 = vcmp.eq.f32.partialorder %v5072, 8.507059e+37
    %v5074 = vand.u32 %v4933, 2147483648
    %v5075 = vor.u32 1.1754944e-38, %v5074
    %v5076 = vsel %vm5073, %v5075, %v5071
    %v5077 = vmul.f32 %v4893, %v5076
    %v5078 = vrcp.pop %v4936
    %v5079 = vmul.f32 %v4936, %v5078
    %v5080 = vsub.f32 1.0, %v5079
    %v5081 = vmul.f32 %v5078, %v5080
    %v5082 = vadd.f32 %v5078, %v5081
    %vm5083 = vweird.f32 %v4936
    %vm5084 = vweird.f32 %v5078
    %vm5085 = vmor %vm5083, %vm5084
    %v5086 = vsel %vm5085, %v5078, %v5082
    %v5087 = vand.u32 2147483647, %v4936
    %vm5088 = vcmp.eq.f32.partialorder %v5087, 8.507059e+37
    %v5089 = vand.u32 %v4936, 2147483648
    %v5090 = vor.u32 1.1754944e-38, %v5089
    %v5091 = vsel %vm5088, %v5090, %v5086
    %v5092 = vmul.f32 %v4895, %v5091
    %v5093 = vrcp.pop %v4939
    %v5094 = vmul.f32 %v4939, %v5093
    %v5095 = vsub.f32 1.0, %v5094
    %v5096 = vmul.f32 %v5093, %v5095
    %v5097 = vadd.f32 %v5093, %v5096
    %vm5098 = vweird.f32 %v4939
    %vm5099 = vweird.f32 %v5093
    %vm5100 = vmor %vm5098, %vm5099
    %v5101 = vsel %vm5100, %v5093, %v5097
    %v5102 = vand.u32 2147483647, %v4939
    %vm5103 = vcmp.eq.f32.partialorder %v5102, 8.507059e+37
    %v5104 = vand.u32 %v4939, 2147483648
    %v5105 = vor.u32 1.1754944e-38, %v5104
    %v5106 = vsel %vm5103, %v5105, %v5101
    %v5107 = vmul.f32 %v4897, %v5106
    %v5108 = vrcp.pop %v4942
    %v5109 = vmul.f32 %v4942, %v5108
    %v5110 = vsub.f32 1.0, %v5109
    %v5111 = vmul.f32 %v5108, %v5110
    %v5112 = vadd.f32 %v5108, %v5111
    %vm5113 = vweird.f32 %v4942
    %vm5114 = vweird.f32 %v5108
    %vm5115 = vmor %vm5113, %vm5114
    %v5116 = vsel %vm5115, %v5108, %v5112
    %v5117 = vand.u32 2147483647, %v4942
    %vm5118 = vcmp.eq.f32.partialorder %v5117, 8.507059e+37
    %v5119 = vand.u32 %v4942, 2147483648
    %v5120 = vor.u32 1.1754944e-38, %v5119
    %v5121 = vsel %vm5118, %v5120, %v5116
    %v5122 = vmul.f32 %v4899, %v5121
    %v5123 = vrcp.pop %v4945
    %v5124 = vmul.f32 %v4945, %v5123
    %v5125 = vsub.f32 1.0, %v5124
    %v5126 = vmul.f32 %v5123, %v5125
    %v5127 = vadd.f32 %v5123, %v5126
    %vm5128 = vweird.f32 %v4945
    %vm5129 = vweird.f32 %v5123
    %vm5130 = vmor %vm5128, %vm5129
    %v5131 = vsel %vm5130, %v5123, %v5127
    %v5132 = vand.u32 2147483647, %v4945
    %vm5133 = vcmp.eq.f32.partialorder %v5132, 8.507059e+37
    %v5134 = vand.u32 %v4945, 2147483648
    %v5135 = vor.u32 1.1754944e-38, %v5134
    %v5136 = vsel %vm5133, %v5135, %v5131
    %v5137 = vmul.f32 %v4901, %v5136
    %v5138 = vrcp.pop %v4948
    %v5139 = vmul.f32 %v4948, %v5138
    %v5140 = vsub.f32 1.0, %v5139
    %v5141 = vmul.f32 %v5138, %v5140
    %v5142 = vadd.f32 %v5138, %v5141
    %vm5143 = vweird.f32 %v4948
    %vm5144 = vweird.f32 %v5138
    %vm5145 = vmor %vm5143, %vm5144
    %v5146 = vsel %vm5145, %v5138, %v5142
    %v5147 = vand.u32 2147483647, %v4948
    %vm5148 = vcmp.eq.f32.partialorder %v5147, 8.507059e+37
    %v5149 = vand.u32 %v4948, 2147483648
    %v5150 = vor.u32 1.1754944e-38, %v5149
    %v5151 = vsel %vm5148, %v5150, %v5146
    %v5152 = vmul.f32 %v4903, %v5151
    %v5153 = vrcp.pop %v4951
    %v5154 = vmul.f32 %v4951, %v5153
    %v5155 = vsub.f32 1.0, %v5154
    %v5156 = vmul.f32 %v5153, %v5155
    %v5157 = vadd.f32 %v5153, %v5156
    %vm5158 = vweird.f32 %v4951
    %vm5159 = vweird.f32 %v5153
    %vm5160 = vmor %vm5158, %vm5159
    %v5161 = vsel %vm5160, %v5153, %v5157
    %v5162 = vand.u32 2147483647, %v4951
    %vm5163 = vcmp.eq.f32.partialorder %v5162, 8.507059e+37
    %v5164 = vand.u32 %v4951, 2147483648
    %v5165 = vor.u32 1.1754944e-38, %v5164
    %v5166 = vsel %vm5163, %v5165, %v5161
    %v5167 = vmul.f32 %v4905, %v5166
    %v5168 = vrcp.pop %v4954
    %v5169 = vmul.f32 %v4954, %v5168
    %v5170 = vsub.f32 1.0, %v5169
    %v5171 = vmul.f32 %v5168, %v5170
    %v5172 = vadd.f32 %v5168, %v5171
    %vm5173 = vweird.f32 %v4954
    %vm5174 = vweird.f32 %v5168
    %vm5175 = vmor %vm5173, %vm5174
    %v5176 = vsel %vm5175, %v5168, %v5172
    %v5177 = vand.u32 2147483647, %v4954
    %vm5178 = vcmp.eq.f32.partialorder %v5177, 8.507059e+37
    %v5179 = vand.u32 %v4954, 2147483648
    %v5180 = vor.u32 1.1754944e-38, %v5179
    %v5181 = vsel %vm5178, %v5180, %v5176
    %v5182 = vmul.f32 %v4907, %v5181
    %v5183 = vrcp.pop %v4957
    %v5184 = vmul.f32 %v4957, %v5183
    %v5185 = vsub.f32 1.0, %v5184
    %v5186 = vmul.f32 %v5183, %v5185
    %v5187 = vadd.f32 %v5183, %v5186
    %vm5188 = vweird.f32 %v4957
    %vm5189 = vweird.f32 %v5183
    %vm5190 = vmor %vm5188, %vm5189
    %v5191 = vsel %vm5190, %v5183, %v5187
    %v5192 = vand.u32 2147483647, %v4957
    %vm5193 = vcmp.eq.f32.partialorder %v5192, 8.507059e+37
    %v5194 = vand.u32 %v4957, 2147483648
    %v5195 = vor.u32 1.1754944e-38, %v5194
    %v5196 = vsel %vm5193, %v5195, %v5191
    %v5197 = vmul.f32 %v4909, %v5196
    %5198 = vrot.lane.b32.xlu0 %v396, 104
    %v5199 = vpop.permute.xlu0 %5198
    %v5202 = vsel %vm443, %v4972, 0
    %5204 = vmatpush.msra.mxu0 0.0
    %5205 = vmatpush.msra.mxu0 0.0
    %5206 = vmatpush.msra.mxu0 0.0
    %5207 = vmatpush.msra.mxu0 0.0
    %5208 = vmatpush.msra.mxu0 0.0
    %5209 = vmatpush.msra.mxu0 0.0
    %5210 = vmatpush.msra.mxu0 0.0
    %5211 = vmatpush.msra.mxu0 0.0
    %5212 = vmatpush.msra.mxu0 0.0
    %5213 = vmatpush.msra.mxu0 0.0
    %5214 = vmatpush.msra.mxu0 0.0
    %5215 = vmatpush.msra.mxu0 0.0
    %5216 = vmatpush.msra.mxu0 0.0
    %5217 = vmatpush.msra.mxu0 0.0
    %5218 = vmatpush.msra.mxu0 0.0
    %5219 = vmatpush.msra.mxu0 %v5199
    %5220 = vmatmul.f32.gmra.mxu0 %v5202
    %v5221 = vpop.f32.mrf.mxu0
    %v5222 = vadd.f32 0.0, %v5221
    %5223 = vdwg.mxu0
    %5224 = vrot.lane.b32.xlu0 %v399, 104
    %v5225 = vpop.permute.xlu0 %5224
    %v5228 = vsel %vm443, %v4987, 0
    %5230 = vmatpush.msra.mxu0 0.0
    %5231 = vmatpush.msra.mxu0 0.0
    %5232 = vmatpush.msra.mxu0 0.0
    %5233 = vmatpush.msra.mxu0 0.0
    %5234 = vmatpush.msra.mxu0 0.0
    %5235 = vmatpush.msra.mxu0 0.0
    %5236 = vmatpush.msra.mxu0 0.0
    %5237 = vmatpush.msra.mxu0 0.0
    %5238 = vmatpush.msra.mxu0 0.0
    %5239 = vmatpush.msra.mxu0 0.0
    %5240 = vmatpush.msra.mxu0 0.0
    %5241 = vmatpush.msra.mxu0 0.0
    %5242 = vmatpush.msra.mxu0 0.0
    %5243 = vmatpush.msra.mxu0 0.0
    %5244 = vmatpush.msra.mxu0 0.0
    %5245 = vmatpush.msra.mxu0 %v5225
    %5246 = vmatmul.f32.gmra.mxu0 %v5228
    %v5247 = vpop.f32.mrf.mxu0
    %v5248 = vadd.f32 0.0, %v5247
    %5249 = vdwg.mxu0
    %5250 = vrot.lane.b32.xlu0 %v402, 104
    %v5251 = vpop.permute.xlu0 %5250
    %v5254 = vsel %vm443, %v5002, 0
    %5256 = vmatpush.msra.mxu0 0.0
    %5257 = vmatpush.msra.mxu0 0.0
    %5258 = vmatpush.msra.mxu0 0.0
    %5259 = vmatpush.msra.mxu0 0.0
    %5260 = vmatpush.msra.mxu0 0.0
    %5261 = vmatpush.msra.mxu0 0.0
    %5262 = vmatpush.msra.mxu0 0.0
    %5263 = vmatpush.msra.mxu0 0.0
    %5264 = vmatpush.msra.mxu0 0.0
    %5265 = vmatpush.msra.mxu0 0.0
    %5266 = vmatpush.msra.mxu0 0.0
    %5267 = vmatpush.msra.mxu0 0.0
    %5268 = vmatpush.msra.mxu0 0.0
    %5269 = vmatpush.msra.mxu0 0.0
    %5270 = vmatpush.msra.mxu0 0.0
    %5271 = vmatpush.msra.mxu0 %v5251
    %5272 = vmatmul.f32.gmra.mxu0 %v5254
    %v5273 = vpop.f32.mrf.mxu0
    %v5274 = vadd.f32 0.0, %v5273
    %5275 = vdwg.mxu0
    %5276 = vrot.lane.b32.xlu0 %v405, 104
    %v5277 = vpop.permute.xlu0 %5276
    %v5280 = vsel %vm443, %v5017, 0
    %5282 = vmatpush.msra.mxu0 0.0
    %5283 = vmatpush.msra.mxu0 0.0
    %5284 = vmatpush.msra.mxu0 0.0
    %5285 = vmatpush.msra.mxu0 0.0
    %5286 = vmatpush.msra.mxu0 0.0
    %5287 = vmatpush.msra.mxu0 0.0
    %5288 = vmatpush.msra.mxu0 0.0
    %5289 = vmatpush.msra.mxu0 0.0
    %5290 = vmatpush.msra.mxu0 0.0
    %5291 = vmatpush.msra.mxu0 0.0
    %5292 = vmatpush.msra.mxu0 0.0
    %5293 = vmatpush.msra.mxu0 0.0
    %5294 = vmatpush.msra.mxu0 0.0
    %5295 = vmatpush.msra.mxu0 0.0
    %5296 = vmatpush.msra.mxu0 0.0
    %5297 = vmatpush.msra.mxu0 %v5277
    %5298 = vmatmul.f32.gmra.mxu0 %v5280
    %v5299 = vpop.f32.mrf.mxu0
    %v5300 = vadd.f32 0.0, %v5299
    %5301 = vdwg.mxu0
    %5302 = vrot.lane.b32.xlu0 %v408, 104
    %v5303 = vpop.permute.xlu0 %5302
    %v5306 = vsel %vm443, %v5032, 0
    %5308 = vmatpush.msra.mxu0 0.0
    %5309 = vmatpush.msra.mxu0 0.0
    %5310 = vmatpush.msra.mxu0 0.0
    %5311 = vmatpush.msra.mxu0 0.0
    %5312 = vmatpush.msra.mxu0 0.0
    %5313 = vmatpush.msra.mxu0 0.0
    %5314 = vmatpush.msra.mxu0 0.0
    %5315 = vmatpush.msra.mxu0 0.0
    %5316 = vmatpush.msra.mxu0 0.0
    %5317 = vmatpush.msra.mxu0 0.0
    %5318 = vmatpush.msra.mxu0 0.0
    %5319 = vmatpush.msra.mxu0 0.0
    %5320 = vmatpush.msra.mxu0 0.0
    %5321 = vmatpush.msra.mxu0 0.0
    %5322 = vmatpush.msra.mxu0 0.0
    %5323 = vmatpush.msra.mxu0 %v5303
    %5324 = vmatmul.f32.gmra.mxu0 %v5306
    %v5325 = vpop.f32.mrf.mxu0
    %v5326 = vadd.f32 0.0, %v5325
    %5327 = vdwg.mxu0
    %5328 = vrot.lane.b32.xlu0 %v411, 104
    %v5329 = vpop.permute.xlu0 %5328
    %v5332 = vsel %vm443, %v5047, 0
    %5334 = vmatpush.msra.mxu0 0.0
    %5335 = vmatpush.msra.mxu0 0.0
    %5336 = vmatpush.msra.mxu0 0.0
    %5337 = vmatpush.msra.mxu0 0.0
    %5338 = vmatpush.msra.mxu0 0.0
    %5339 = vmatpush.msra.mxu0 0.0
    %5340 = vmatpush.msra.mxu0 0.0
    %5341 = vmatpush.msra.mxu0 0.0
    %5342 = vmatpush.msra.mxu0 0.0
    %5343 = vmatpush.msra.mxu0 0.0
    %5344 = vmatpush.msra.mxu0 0.0
    %5345 = vmatpush.msra.mxu0 0.0
    %5346 = vmatpush.msra.mxu0 0.0
    %5347 = vmatpush.msra.mxu0 0.0
    %5348 = vmatpush.msra.mxu0 0.0
    %5349 = vmatpush.msra.mxu0 %v5329
    %5350 = vmatmul.f32.gmra.mxu0 %v5332
    %v5351 = vpop.f32.mrf.mxu0
    %v5352 = vadd.f32 0.0, %v5351
    %5353 = vdwg.mxu0
    %5354 = vrot.lane.b32.xlu0 %v414, 104
    %v5355 = vpop.permute.xlu0 %5354
    %v5358 = vsel %vm443, %v5062, 0
    %5360 = vmatpush.msra.mxu0 0.0
    %5361 = vmatpush.msra.mxu0 0.0
    %5362 = vmatpush.msra.mxu0 0.0
    %5363 = vmatpush.msra.mxu0 0.0
    %5364 = vmatpush.msra.mxu0 0.0
    %5365 = vmatpush.msra.mxu0 0.0
    %5366 = vmatpush.msra.mxu0 0.0
    %5367 = vmatpush.msra.mxu0 0.0
    %5368 = vmatpush.msra.mxu0 0.0
    %5369 = vmatpush.msra.mxu0 0.0
    %5370 = vmatpush.msra.mxu0 0.0
    %5371 = vmatpush.msra.mxu0 0.0
    %5372 = vmatpush.msra.mxu0 0.0
    %5373 = vmatpush.msra.mxu0 0.0
    %5374 = vmatpush.msra.mxu0 0.0
    %5375 = vmatpush.msra.mxu0 %v5355
    %5376 = vmatmul.f32.gmra.mxu0 %v5358
    %v5377 = vpop.f32.mrf.mxu0
    %v5378 = vadd.f32 0.0, %v5377
    %5379 = vdwg.mxu0
    %5380 = vrot.lane.b32.xlu0 %v417, 104
    %v5381 = vpop.permute.xlu0 %5380
    %v5384 = vsel %vm443, %v5077, 0
    %5386 = vmatpush.msra.mxu0 0.0
    %5387 = vmatpush.msra.mxu0 0.0
    %5388 = vmatpush.msra.mxu0 0.0
    %5389 = vmatpush.msra.mxu0 0.0
    %5390 = vmatpush.msra.mxu0 0.0
    %5391 = vmatpush.msra.mxu0 0.0
    %5392 = vmatpush.msra.mxu0 0.0
    %5393 = vmatpush.msra.mxu0 0.0
    %5394 = vmatpush.msra.mxu0 0.0
    %5395 = vmatpush.msra.mxu0 0.0
    %5396 = vmatpush.msra.mxu0 0.0
    %5397 = vmatpush.msra.mxu0 0.0
    %5398 = vmatpush.msra.mxu0 0.0
    %5399 = vmatpush.msra.mxu0 0.0
    %5400 = vmatpush.msra.mxu0 0.0
    %5401 = vmatpush.msra.mxu0 %v5381
    %5402 = vmatmul.f32.gmra.mxu0 %v5384
    %v5403 = vpop.f32.mrf.mxu0
    %v5404 = vadd.f32 0.0, %v5403
    %5405 = vdwg.mxu0
    %5406 = vrot.lane.b32.xlu0 %v420, 104
    %v5407 = vpop.permute.xlu0 %5406
    %v5410 = vsel %vm443, %v5092, 0
    %5412 = vmatpush.msra.mxu0 0.0
    %5413 = vmatpush.msra.mxu0 0.0
    %5414 = vmatpush.msra.mxu0 0.0
    %5415 = vmatpush.msra.mxu0 0.0
    %5416 = vmatpush.msra.mxu0 0.0
    %5417 = vmatpush.msra.mxu0 0.0
    %5418 = vmatpush.msra.mxu0 0.0
    %5419 = vmatpush.msra.mxu0 0.0
    %5420 = vmatpush.msra.mxu0 0.0
    %5421 = vmatpush.msra.mxu0 0.0
    %5422 = vmatpush.msra.mxu0 0.0
    %5423 = vmatpush.msra.mxu0 0.0
    %5424 = vmatpush.msra.mxu0 0.0
    %5425 = vmatpush.msra.mxu0 0.0
    %5426 = vmatpush.msra.mxu0 0.0
    %5427 = vmatpush.msra.mxu0 %v5407
    %5428 = vmatmul.f32.gmra.mxu0 %v5410
    %v5429 = vpop.f32.mrf.mxu0
    %v5430 = vadd.f32 0.0, %v5429
    %5431 = vdwg.mxu0
    %5432 = vrot.lane.b32.xlu0 %v423, 104
    %v5433 = vpop.permute.xlu0 %5432
    %v5436 = vsel %vm443, %v5107, 0
    %5438 = vmatpush.msra.mxu0 0.0
    %5439 = vmatpush.msra.mxu0 0.0
    %5440 = vmatpush.msra.mxu0 0.0
    %5441 = vmatpush.msra.mxu0 0.0
    %5442 = vmatpush.msra.mxu0 0.0
    %5443 = vmatpush.msra.mxu0 0.0
    %5444 = vmatpush.msra.mxu0 0.0
    %5445 = vmatpush.msra.mxu0 0.0
    %5446 = vmatpush.msra.mxu0 0.0
    %5447 = vmatpush.msra.mxu0 0.0
    %5448 = vmatpush.msra.mxu0 0.0
    %5449 = vmatpush.msra.mxu0 0.0
    %5450 = vmatpush.msra.mxu0 0.0
    %5451 = vmatpush.msra.mxu0 0.0
    %5452 = vmatpush.msra.mxu0 0.0
    %5453 = vmatpush.msra.mxu0 %v5433
    %5454 = vmatmul.f32.gmra.mxu0 %v5436
    %v5455 = vpop.f32.mrf.mxu0
    %v5456 = vadd.f32 0.0, %v5455
    %5457 = vdwg.mxu0
    %5458 = vrot.lane.b32.xlu0 %v426, 104
    %v5459 = vpop.permute.xlu0 %5458
    %v5462 = vsel %vm443, %v5122, 0
    %5464 = vmatpush.msra.mxu0 0.0
    %5465 = vmatpush.msra.mxu0 0.0
    %5466 = vmatpush.msra.mxu0 0.0
    %5467 = vmatpush.msra.mxu0 0.0
    %5468 = vmatpush.msra.mxu0 0.0
    %5469 = vmatpush.msra.mxu0 0.0
    %5470 = vmatpush.msra.mxu0 0.0
    %5471 = vmatpush.msra.mxu0 0.0
    %5472 = vmatpush.msra.mxu0 0.0
    %5473 = vmatpush.msra.mxu0 0.0
    %5474 = vmatpush.msra.mxu0 0.0
    %5475 = vmatpush.msra.mxu0 0.0
    %5476 = vmatpush.msra.mxu0 0.0
    %5477 = vmatpush.msra.mxu0 0.0
    %5478 = vmatpush.msra.mxu0 0.0
    %5479 = vmatpush.msra.mxu0 %v5459
    %5480 = vmatmul.f32.gmra.mxu0 %v5462
    %v5481 = vpop.f32.mrf.mxu0
    %v5482 = vadd.f32 0.0, %v5481
    %5483 = vdwg.mxu0
    %5484 = vrot.lane.b32.xlu0 %v429, 104
    %v5485 = vpop.permute.xlu0 %5484
    %v5488 = vsel %vm443, %v5137, 0
    %5490 = vmatpush.msra.mxu0 0.0
    %5491 = vmatpush.msra.mxu0 0.0
    %5492 = vmatpush.msra.mxu0 0.0
    %5493 = vmatpush.msra.mxu0 0.0
    %5494 = vmatpush.msra.mxu0 0.0
    %5495 = vmatpush.msra.mxu0 0.0
    %5496 = vmatpush.msra.mxu0 0.0
    %5497 = vmatpush.msra.mxu0 0.0
    %5498 = vmatpush.msra.mxu0 0.0
    %5499 = vmatpush.msra.mxu0 0.0
    %5500 = vmatpush.msra.mxu0 0.0
    %5501 = vmatpush.msra.mxu0 0.0
    %5502 = vmatpush.msra.mxu0 0.0
    %5503 = vmatpush.msra.mxu0 0.0
    %5504 = vmatpush.msra.mxu0 0.0
    %5505 = vmatpush.msra.mxu0 %v5485
    %5506 = vmatmul.f32.gmra.mxu0 %v5488
    %v5507 = vpop.f32.mrf.mxu0
    %v5508 = vadd.f32 0.0, %v5507
    %5509 = vdwg.mxu0
    %5510 = vrot.lane.b32.xlu0 %v432, 104
    %v5511 = vpop.permute.xlu0 %5510
    %v5514 = vsel %vm443, %v5152, 0
    %5516 = vmatpush.msra.mxu0 0.0
    %5517 = vmatpush.msra.mxu0 0.0
    %5518 = vmatpush.msra.mxu0 0.0
    %5519 = vmatpush.msra.mxu0 0.0
    %5520 = vmatpush.msra.mxu0 0.0
    %5521 = vmatpush.msra.mxu0 0.0
    %5522 = vmatpush.msra.mxu0 0.0
    %5523 = vmatpush.msra.mxu0 0.0
    %5524 = vmatpush.msra.mxu0 0.0
    %5525 = vmatpush.msra.mxu0 0.0
    %5526 = vmatpush.msra.mxu0 0.0
    %5527 = vmatpush.msra.mxu0 0.0
    %5528 = vmatpush.msra.mxu0 0.0
    %5529 = vmatpush.msra.mxu0 0.0
    %5530 = vmatpush.msra.mxu0 0.0
    %5531 = vmatpush.msra.mxu0 %v5511
    %5532 = vmatmul.f32.gmra.mxu0 %v5514
    %v5533 = vpop.f32.mrf.mxu0
    %v5534 = vadd.f32 0.0, %v5533
    %5535 = vdwg.mxu0
    %5536 = vrot.lane.b32.xlu0 %v435, 104
    %v5537 = vpop.permute.xlu0 %5536
    %v5540 = vsel %vm443, %v5167, 0
    %5542 = vmatpush.msra.mxu0 0.0
    %5543 = vmatpush.msra.mxu0 0.0
    %5544 = vmatpush.msra.mxu0 0.0
    %5545 = vmatpush.msra.mxu0 0.0
    %5546 = vmatpush.msra.mxu0 0.0
    %5547 = vmatpush.msra.mxu0 0.0
    %5548 = vmatpush.msra.mxu0 0.0
    %5549 = vmatpush.msra.mxu0 0.0
    %5550 = vmatpush.msra.mxu0 0.0
    %5551 = vmatpush.msra.mxu0 0.0
    %5552 = vmatpush.msra.mxu0 0.0
    %5553 = vmatpush.msra.mxu0 0.0
    %5554 = vmatpush.msra.mxu0 0.0
    %5555 = vmatpush.msra.mxu0 0.0
    %5556 = vmatpush.msra.mxu0 0.0
    %5557 = vmatpush.msra.mxu0 %v5537
    %5558 = vmatmul.f32.gmra.mxu0 %v5540
    %v5559 = vpop.f32.mrf.mxu0
    %v5560 = vadd.f32 0.0, %v5559
    %5561 = vdwg.mxu0
    %5562 = vrot.lane.b32.xlu0 %v438, 104
    %v5563 = vpop.permute.xlu0 %5562
    %v5566 = vsel %vm443, %v5182, 0
    %5568 = vmatpush.msra.mxu0 0.0
    %5569 = vmatpush.msra.mxu0 0.0
    %5570 = vmatpush.msra.mxu0 0.0
    %5571 = vmatpush.msra.mxu0 0.0
    %5572 = vmatpush.msra.mxu0 0.0
    %5573 = vmatpush.msra.mxu0 0.0
    %5574 = vmatpush.msra.mxu0 0.0
    %5575 = vmatpush.msra.mxu0 0.0
    %5576 = vmatpush.msra.mxu0 0.0
    %5577 = vmatpush.msra.mxu0 0.0
    %5578 = vmatpush.msra.mxu0 0.0
    %5579 = vmatpush.msra.mxu0 0.0
    %5580 = vmatpush.msra.mxu0 0.0
    %5581 = vmatpush.msra.mxu0 0.0
    %5582 = vmatpush.msra.mxu0 0.0
    %5583 = vmatpush.msra.mxu0 %v5563
    %5584 = vmatmul.f32.gmra.mxu0 %v5566
    %v5585 = vpop.f32.mrf.mxu0
    %v5586 = vadd.f32 0.0, %v5585
    %5587 = vdwg.mxu0
    %5588 = vrot.lane.b32.xlu0 %v441, 104
    %v5589 = vpop.permute.xlu0 %5588
    %v5592 = vsel %vm443, %v5197, 0
    %5594 = vmatpush.msra.mxu0 0.0
    %5595 = vmatpush.msra.mxu0 0.0
    %5596 = vmatpush.msra.mxu0 0.0
    %5597 = vmatpush.msra.mxu0 0.0
    %5598 = vmatpush.msra.mxu0 0.0
    %5599 = vmatpush.msra.mxu0 0.0
    %5600 = vmatpush.msra.mxu0 0.0
    %5601 = vmatpush.msra.mxu0 0.0
    %5602 = vmatpush.msra.mxu0 0.0
    %5603 = vmatpush.msra.mxu0 0.0
    %5604 = vmatpush.msra.mxu0 0.0
    %5605 = vmatpush.msra.mxu0 0.0
    %5606 = vmatpush.msra.mxu0 0.0
    %5607 = vmatpush.msra.mxu0 0.0
    %5608 = vmatpush.msra.mxu0 0.0
    %5609 = vmatpush.msra.mxu0 %v5589
    %5610 = vmatmul.f32.gmra.mxu0 %v5592
    %v5611 = vpop.f32.mrf.mxu0
    %v5612 = vadd.f32 0.0, %v5611
    %5613 = vdwg.mxu0
    %5630 = vrot.lane.b32.xlu0 %v5222, 24
    %v5631 = vpop.permute.xlu0 %5630
    %5632 = vrot.lane.b32.xlu0 %v5248, 24
    %v5633 = vpop.permute.xlu0 %5632
    %5634 = vrot.lane.b32.xlu0 %v5274, 24
    %v5635 = vpop.permute.xlu0 %5634
    %5636 = vrot.lane.b32.xlu0 %v5300, 24
    %v5637 = vpop.permute.xlu0 %5636
    %5638 = vrot.lane.b32.xlu0 %v5326, 24
    %v5639 = vpop.permute.xlu0 %5638
    %5640 = vrot.lane.b32.xlu0 %v5352, 24
    %v5641 = vpop.permute.xlu0 %5640
    %5642 = vrot.lane.b32.xlu0 %v5378, 24
    %v5643 = vpop.permute.xlu0 %5642
    %5644 = vrot.lane.b32.xlu0 %v5404, 24
    %v5645 = vpop.permute.xlu0 %5644
    %5646 = vrot.lane.b32.xlu0 %v5430, 24
    %v5647 = vpop.permute.xlu0 %5646
    %5648 = vrot.lane.b32.xlu0 %v5456, 24
    %v5649 = vpop.permute.xlu0 %5648
    %5650 = vrot.lane.b32.xlu0 %v5482, 24
    %v5651 = vpop.permute.xlu0 %5650
    %5652 = vrot.lane.b32.xlu0 %v5508, 24
    %v5653 = vpop.permute.xlu0 %5652
    %5654 = vrot.lane.b32.xlu0 %v5534, 24
    %v5655 = vpop.permute.xlu0 %5654
    %5656 = vrot.lane.b32.xlu0 %v5560, 24
    %v5657 = vpop.permute.xlu0 %5656
    %5658 = vrot.lane.b32.xlu0 %v5586, 24
    %v5659 = vpop.permute.xlu0 %5658
    %5660 = vrot.lane.b32.xlu0 %v5612, 24
    %v5661 = vpop.permute.xlu0 %5660
    %vm5678 = vcmask 261312
    %5679 = vst.msk [vmem:[#allocation2] sm:$0xff] %vm5678, %v5631
    %5680 = vst.msk [vmem:[#allocation2 + $0x8] sm:$0xff] %vm5678, %v5633
    %5681 = vst.msk [vmem:[#allocation2 + $0x10] sm:$0xff] %vm5678, %v5635
    %5682 = vst.msk [vmem:[#allocation2 + $0x18] sm:$0xff] %vm5678, %v5637
    %5683 = vst.msk [vmem:[#allocation2 + $0x20] sm:$0xff] %vm5678, %v5639
    %5684 = vst.msk [vmem:[#allocation2 + $0x28] sm:$0xff] %vm5678, %v5641
    %5685 = vst.msk [vmem:[#allocation2 + $0x30] sm:$0xff] %vm5678, %v5643
    %5686 = vst.msk [vmem:[#allocation2 + $0x38] sm:$0xff] %vm5678, %v5645
    %5687 = vst.msk [vmem:[#allocation2 + $0x40] sm:$0xff] %vm5678, %v5647
    %5688 = vst.msk [vmem:[#allocation2 + $0x48] sm:$0xff] %vm5678, %v5649
    %5689 = vst.msk [vmem:[#allocation2 + $0x50] sm:$0xff] %vm5678, %v5651
    %5690 = vst.msk [vmem:[#allocation2 + $0x58] sm:$0xff] %vm5678, %v5653
    %5691 = vst.msk [vmem:[#allocation2 + $0x60] sm:$0xff] %vm5678, %v5655
    %5692 = vst.msk [vmem:[#allocation2 + $0x68] sm:$0xff] %vm5678, %v5657
    %5693 = vst.msk [vmem:[#allocation2 + $0x70] sm:$0xff] %vm5678, %v5659
    %5694 = vst.msk [vmem:[#allocation2 + $0x78] sm:$0xff] %vm5678, %v5661
    %v5695 = vld [vmem:[#allocation2] sm:$0xff]
    %v5696 = vld [vmem:[#allocation2 + $0x8] sm:$0xff]
    %v5697 = vld [vmem:[#allocation2 + $0x10] sm:$0xff]
    %v5698 = vld [vmem:[#allocation2 + $0x18] sm:$0xff]
    %v5699 = vld [vmem:[#allocation2 + $0x20] sm:$0xff]
    %v5700 = vld [vmem:[#allocation2 + $0x28] sm:$0xff]
    %v5701 = vld [vmem:[#allocation2 + $0x30] sm:$0xff]
    %v5702 = vld [vmem:[#allocation2 + $0x38] sm:$0xff]
    %v5703 = vld [vmem:[#allocation2 + $0x40] sm:$0xff]
    %v5704 = vld [vmem:[#allocation2 + $0x48] sm:$0xff]
    %v5705 = vld [vmem:[#allocation2 + $0x50] sm:$0xff]
    %v5706 = vld [vmem:[#allocation2 + $0x58] sm:$0xff]
    %v5707 = vld [vmem:[#allocation2 + $0x60] sm:$0xff]
    %v5708 = vld [vmem:[#allocation2 + $0x68] sm:$0xff]
    %v5709 = vld [vmem:[#allocation2 + $0x70] sm:$0xff]
    %v5710 = vld [vmem:[#allocation2 + $0x78] sm:$0xff]
    %v5711 = vld [vmem:[%s5] sm:$0xff]
    %v5712 = vld [vmem:[%s5 + $0x8] sm:$0xff]
    %v5713 = vld [vmem:[%s5 + $0x10] sm:$0xff]
    %v5714 = vld [vmem:[%s5 + $0x18] sm:$0xff]
    %v5715 = vld [vmem:[%s6] sm:$0x1]
    %v5717 = vperm.slane %v5715, 0
    %v5720 = vsel %vm83, %v5695, 0
    %v5723 = vsel %vm83, %v5696, 0
    %v5726 = vsel %vm83, %v5697, 0
    %v5729 = vsel %vm83, %v5698, 0
    %v5732 = vsel %vm83, %v5699, 0
    %v5735 = vsel %vm83, %v5700, 0
    %v5738 = vsel %vm83, %v5701, 0
    %v5741 = vsel %vm83, %v5702, 0
    %v5744 = vsel %vm83, %v5703, 0
    %v5747 = vsel %vm83, %v5704, 0
    %v5750 = vsel %vm83, %v5705, 0
    %v5753 = vsel %vm83, %v5706, 0
    %v5756 = vsel %vm83, %v5707, 0
    %v5759 = vsel %vm83, %v5708, 0
    %v5762 = vsel %vm83, %v5709, 0
    %v5765 = vsel %vm83, %v5710, 0
    %5767 = vmatpush.msra.mxu0 0.0
    %5768 = vmatpush.msra.mxu0 0.0
    %5769 = vmatpush.msra.mxu0 0.0
    %5770 = vmatpush.msra.mxu0 0.0
    %5771 = vmatpush.msra.mxu0 0.0
    %5772 = vmatpush.msra.mxu0 0.0
    %5773 = vmatpush.msra.mxu0 0.0
    %5774 = vmatpush.msra.mxu0 0.0
    %5775 = vmatpush.msra.mxu0 0.0
    %5776 = vmatpush.msra.mxu0 0.0
    %5777 = vmatpush.msra.mxu0 0.0
    %5778 = vmatpush.msra.mxu0 0.0
    %5779 = vmatpush.msra.mxu0 %v5714
    %5780 = vmatpush.msra.mxu0 %v5713
    %5781 = vmatpush.msra.mxu0 %v5712
    %5782 = vmatpush.msra.mxu0 %v5711
    %5783 = vmatmul.f32.gmra.mxu0 %v5720
    %v5784 = vpop.f32.mrf.mxu0
    %v5785 = vadd.f32 %v5717, %v5784
    %5786 = vmatmul.f32.gmra.mxu0 %v5723
    %v5787 = vpop.f32.mrf.mxu0
    %v5788 = vadd.f32 %v5717, %v5787
    %5789 = vmatmul.f32.gmra.mxu0 %v5726
    %v5790 = vpop.f32.mrf.mxu0
    %v5791 = vadd.f32 %v5717, %v5790
    %5792 = vmatmul.f32.gmra.mxu0 %v5729
    %v5793 = vpop.f32.mrf.mxu0
    %v5794 = vadd.f32 %v5717, %v5793
    %5795 = vmatmul.f32.gmra.mxu0 %v5732
    %v5796 = vpop.f32.mrf.mxu0
    %v5797 = vadd.f32 %v5717, %v5796
    %5798 = vmatmul.f32.gmra.mxu0 %v5735
    %v5799 = vpop.f32.mrf.mxu0
    %v5800 = vadd.f32 %v5717, %v5799
    %5801 = vmatmul.f32.gmra.mxu0 %v5738
    %v5802 = vpop.f32.mrf.mxu0
    %v5803 = vadd.f32 %v5717, %v5802
    %5804 = vmatmul.f32.gmra.mxu0 %v5741
    %v5805 = vpop.f32.mrf.mxu0
    %v5806 = vadd.f32 %v5717, %v5805
    %5807 = vmatmul.f32.gmra.mxu0 %v5744
    %v5808 = vpop.f32.mrf.mxu0
    %v5809 = vadd.f32 %v5717, %v5808
    %5810 = vmatmul.f32.gmra.mxu0 %v5747
    %v5811 = vpop.f32.mrf.mxu0
    %v5812 = vadd.f32 %v5717, %v5811
    %5813 = vmatmul.f32.gmra.mxu0 %v5750
    %v5814 = vpop.f32.mrf.mxu0
    %v5815 = vadd.f32 %v5717, %v5814
    %5816 = vmatmul.f32.gmra.mxu0 %v5753
    %v5817 = vpop.f32.mrf.mxu0
    %v5818 = vadd.f32 %v5717, %v5817
    %5819 = vmatmul.f32.gmra.mxu0 %v5756
    %v5820 = vpop.f32.mrf.mxu0
    %v5821 = vadd.f32 %v5717, %v5820
    %5822 = vmatmul.f32.gmra.mxu0 %v5759
    %v5823 = vpop.f32.mrf.mxu0
    %v5824 = vadd.f32 %v5717, %v5823
    %5825 = vmatmul.f32.gmra.mxu0 %v5762
    %v5826 = vpop.f32.mrf.mxu0
    %v5827 = vadd.f32 %v5717, %v5826
    %5828 = vmatmul.f32.gmra.mxu0 %v5765
    %v5829 = vpop.f32.mrf.mxu0
    %v5830 = vadd.f32 %v5717, %v5829
    %5831 = vdwg.mxu0
    %5832 = vst.msk [vmem:[#allocation3] sm:$0xff] %vm83, %v5785
    %5833 = vst.msk [vmem:[#allocation3 + $0x8] sm:$0xff] %vm83, %v5788
    %5834 = vst.msk [vmem:[#allocation3 + $0x10] sm:$0xff] %vm83, %v5791
    %5835 = vst.msk [vmem:[#allocation3 + $0x18] sm:$0xff] %vm83, %v5794
    %5836 = vst.msk [vmem:[#allocation3 + $0x20] sm:$0xff] %vm83, %v5797
    %5837 = vst.msk [vmem:[#allocation3 + $0x28] sm:$0xff] %vm83, %v5800
    %5838 = vst.msk [vmem:[#allocation3 + $0x30] sm:$0xff] %vm83, %v5803
    %5839 = vst.msk [vmem:[#allocation3 + $0x38] sm:$0xff] %vm83, %v5806
    %5840 = vst.msk [vmem:[#allocation3 + $0x40] sm:$0xff] %vm83, %v5809
    %5841 = vst.msk [vmem:[#allocation3 + $0x48] sm:$0xff] %vm83, %v5812
    %5842 = vst.msk [vmem:[#allocation3 + $0x50] sm:$0xff] %vm83, %v5815
    %5843 = vst.msk [vmem:[#allocation3 + $0x58] sm:$0xff] %vm83, %v5818
    %5844 = vst.msk [vmem:[#allocation3 + $0x60] sm:$0xff] %vm83, %v5821
    %5845 = vst.msk [vmem:[#allocation3 + $0x68] sm:$0xff] %vm83, %v5824
    %5846 = vst.msk [vmem:[#allocation3 + $0x70] sm:$0xff] %vm83, %v5827
    %5847 = vst.msk [vmem:[#allocation3 + $0x78] sm:$0xff] %vm83, %v5830
    // Predicated region
    $region30: #{tpu_custom_call.1} parent=1 // pred_check
      _
    $region31: #{tpu_custom_call.1} parent=1 // pred_check_branch
      %5849 = sbr.rel (0) target = $region33
    $region32: #{tpu_custom_call.1} parent=1 // pred_region
      %5851 = vsyncadd [#allocation4], 0
      %s5852 = sshll.u32 [#allocation3], 4
      %s5853 = int_to_ptr.vmem [resolvable:$true] %s5852
      %s5854 = sshll.u32 %s7, 4
      %s5855 = int_to_ptr.hbm [resolvable:$true] %s5854
      %5860 = dma.vmem_to_hbm [thread:$0]  %s5853, 2048, %s5855, [#allocation4], 128, 128, 8
    $region33: #{tpu_custom_call.1} parent=1 // pred_fallthru
      _
    // Predicated region
    $region34: #{tpu_custom_call.1} parent=1 // pred_check
      _
    $region35: #{tpu_custom_call.1} parent=1 // pred_check_branch
      %5862 = sbr.rel (0) target = $region37
    $region36: #{tpu_custom_call.1} parent=1 // pred_region
      %5864 = dma.done [#allocation4], 2048
    $region37: #{tpu_custom_call.1} parent=1 // pred_fallthru
      _
    %5865 = vsyncpa [#allocation4], 1

</llo_original>
